<compile_context>
chip_gen: v7x
topology: tpu7x:2x2x1
jax: 0.10.0
libtpu: 0.0.40
codegen_flags: <defaults>
</compile_context>

<pallas_src>
import functools

import jax
import jax.numpy as jnp
import numpy as np
from jax.experimental import pallas as pl
from jax.experimental.pallas import tpu as pltpu


def _layernorm(x, gamma, beta, eps):
    # PyTorch nn.LayerNorm: biased variance over last dim, eps inside rsqrt.
    mu = jnp.mean(x, axis=-1, keepdims=True)
    xc = x - mu
    var = jnp.mean(xc * xc, axis=-1, keepdims=True)
    return xc * jax.lax.rsqrt(var + eps) * gamma + beta


def attn_block_kernel(xq_ref, *refs, n_heads, eps, compute_dtype, exp_dtype,
                      full_seq, cache_kv, approx_recip):
    if full_seq:
        xf_ref = None
        rest = refs
    else:
        xf_ref, *rest = refs
    (wqkv_ref, cb_ref, wo_ref, bo_ref, g1_ref, beta1_ref,
     w1_ref, bf1_ref, w2_ref, bf2_ref, g2_ref, beta2_ref,
     o_ref, q_scr, k_scr, v_scr, proj_scr) = rest

    cd = compute_dtype
    xq = xq_ref[0]                                   # (tq, D) f32 residual path
    tq, D = xq.shape
    H = D // n_heads
    cb = cb_ref[...]                                 # (1, D) f32

    def scatter_heads(dst, mat):                     # (rows, D) -> (nh, rows, H)
        for i in range(n_heads):                     # cheap static relayout only
            dst[i] = mat[:, i * H:(i + 1) * H].astype(cd)

    if full_seq:
        # single fused (tq, D) @ (D, 3D) projection; cb folded into q.
        qkv = jnp.dot(xq.astype(cd), wqkv_ref[...],
                      preferred_element_type=jnp.float32)            # (tq, 3D)
        scatter_heads(q_scr, qkv[:, :D] + cb)
        scatter_heads(k_scr, qkv[:, D:2 * D])
        scatter_heads(v_scr, qkv[:, 2 * D:])
    else:
        q = jnp.dot(xq.astype(cd), wqkv_ref[:, :D],
                    preferred_element_type=jnp.float32) + cb         # (tq, D)
        scatter_heads(q_scr, q)

        def project_kv():
            xf = xf_ref[0].astype(cd)                # (L, D) K/V source (bf16)
            kv = jnp.dot(xf, wqkv_ref[:, D:],
                         preferred_element_type=jnp.float32)         # (L, 2D)
            scatter_heads(k_scr, kv[:, :D])
            scatter_heads(v_scr, kv[:, D:])

        if cache_kv:
            # K/V computed once per batch element (t is the inner, sequential
            # grid axis); cached in VMEM scratch for the remaining query tiles.
            pl.when(pl.program_id(1) == 0)(project_kv)
        else:
            project_kv()

    # Residual + output-projection bias seed the accumulator.
    proj_scr[...] = xq + bo_ref[...]

    def head_body(i, carry):
        q_h = q_scr[i]                               # (tq, H)
        k_h = k_scr[i]                               # (L, H)
        v_h = v_scr[i]                               # (L, H)
        s = jax.lax.dot_general(q_h, k_h, (((1,), (1,)), ((), ())),
                                preferred_element_type=jnp.float32)  # (tq, L)
        s = s - jnp.max(s, axis=-1, keepdims=True)
        p = jnp.exp(s.astype(exp_dtype))             # bf16 exp on v6e/v7x only
        l = jnp.sum(p.astype(jnp.float32), axis=-1, keepdims=True)
        r = pl.reciprocal(l, approx=approx_recip)
        # Normalization deferred past the PV matmul: scales (tq,H), not (tq,L).
        o_h = jnp.dot(p.astype(cd), v_h, preferred_element_type=jnp.float32) * r
        # Per-head slice of the output projection (head-major Wo), accumulated
        # in f32 — mathematically identical to concat(heads) @ Wo.
        proj_scr[...] += jnp.dot(o_h.astype(cd), wo_ref[i],
                                 preferred_element_type=jnp.float32)
        return carry

    jax.lax.fori_loop(0, n_heads, head_body, 0)

    x1 = _layernorm(proj_scr[...], g1_ref[...], beta1_ref[...], eps)   # (tq, D)

    # Feed-forward: Linear -> ReLU -> Linear, residual, LayerNorm.
    h1 = jnp.maximum(
        jnp.dot(x1.astype(cd), w1_ref[...],
                preferred_element_type=jnp.float32) + bf1_ref[...], 0.0)
    ff = jnp.dot(h1.astype(cd), w2_ref[...],
                 preferred_element_type=jnp.float32) + bf2_ref[...]
    out = _layernorm(x1 + ff, g2_ref[...], beta2_ref[...], eps)
    o_ref[0] = out.astype(o_ref.dtype)


def _vmem_capacity_bytes():
    try:
        return int(pltpu.get_tpu_info().vmem_capacity_bytes)
    except Exception:
        return 128 * 1024 * 1024                     # v5e/v6e physical VMEM


def _pick_tq(L, cap):
    """Largest query tile that divides L, is a multiple of 8 and <= cap."""
    if L <= cap:
        return L
    for t in range(int(cap), 7, -1):
        if L % t == 0 and t % 8 == 0:
            return t
    return L                                         # no divisor: one full tile


def _vmem_estimate(tq, L, D, F, H, nh, cd_bytes, full_seq):
    """Rough per-core VMEM residency (bytes) for one grid step, incl. padding."""
    f32 = 4
    lpad = lambda n: -(-n // 128) * 128
    spad = lambda n: -(-n // 8) * 8
    Dp, Fp, Hp, Lp, D3p = lpad(D), lpad(F), lpad(H), lpad(L), lpad(3 * D)
    tqs, Ls = spad(tq), spad(L)
    est = 2 * tqs * Dp * f32                         # xq block (double-buffered)
    est += 2 * tqs * Dp * f32                        # output block
    if not full_seq:
        est += 2 * Ls * Dp * cd_bytes                # xf K/V source
    # Weights (conservatively assume double-buffered) + small vectors.
    est += 2 * cd_bytes * (spad(D) * D3p + nh * spad(H) * Dp
                           + spad(D) * Fp + spad(F) * Dp)
    est += 2 * f32 * (8 * Dp + Fp)
    # Scratch: head-major q/k/v + f32 projection accumulator.
    est += cd_bytes * nh * (tqs + 2 * Ls) * Hp + f32 * tqs * Dp
    # Live intermediates: qkv projection, one head's score/prob row, FFN.
    est += f32 * (tqs * D3p + 3 * tqs * Lp + tqs * Fp + 4 * tqs * Dp)
    if not full_seq:
        est += f32 * Ls * lpad(2 * D)                # K/V projection at t == 0
    return est


def attn_block(x, y, params, n_heads, eps=1e-5, q_tile=None,
               compute_dtype=jnp.bfloat16, out_dtype=jnp.float32):
    # Y only participates via the L1 == L2 assertion in the PyTorch forward.
    assert x.shape[1] == y.shape[1]
    N, L, D = x.shape
    F = params["W1"].shape[1]
    assert D % n_heads == 0
    H = D // n_heads

    cd = compute_dtype
    cd_bytes = jnp.dtype(cd).itemsize

    kind = jax.devices()[0].device_kind.lower()
    n_tc = 2 if "v7" in kind else 1                  # v7x: 2 TensorCores/chip
    use_bf16_exp = (cd == jnp.bfloat16 and
                    any(s in kind for s in ("v6", "v7", "trillium")))
    exp_dtype = jnp.bfloat16 if use_bf16_exp else jnp.float32

    vmem_cap = _vmem_capacity_bytes()
    vmem_limit = max(32 << 20, min(int(0.8 * vmem_cap), 100 << 20))

    if q_tile is None:
        q_tile = 512 if vmem_cap >= (96 << 20) else 128

    # ---- query-tile selection -------------------------------------------
    tq = _pick_tq(L, q_tile)
    if n_tc > 1 and N < n_tc and tq == L:            # keep both v7x cores busy
        alt = _pick_tq(L, max(8, L // n_tc))
        if alt < tq:
            tq = alt
    while True:
        full_seq = (tq == L)
        cache_kv = (not full_seq) and (N >= n_tc)
        if (tq <= 8 or
                _vmem_estimate(tq, L, D, F, H, n_heads, cd_bytes,
                               full_seq) <= vmem_limit):
            break
        nxt = _pick_tq(L, max(8, tq // 2))
        if nxt >= tq:
            break
        tq = nxt
    n_qt = L // tq

    # ---- host-side weight packing ---------------------------------------
    wqkv = jnp.concatenate([params["Wq"], params["Wk"], params["Wv"]],
                           axis=1).astype(cd)                    # (D, 3D)
    wo_h = params["WoT"].reshape(n_heads, H, D).astype(cd)       # head-major Wo
    w1 = params["W1"].astype(cd)
    w2 = params["W2"].astype(cd)
    cb_flat = params["cb"].reshape(1, D).astype(jnp.float32)

    kernel = functools.partial(
        attn_block_kernel, n_heads=n_heads, eps=eps, compute_dtype=cd,
        exp_dtype=exp_dtype, full_seq=full_seq, cache_kv=cache_kv,
        approx_recip=(cd != jnp.float32))

    def _call(weight_bufs):
        def rep(shape):
            nd = len(shape)
            idx = lambda *a, _nd=nd: (0,) * _nd
            if weight_bufs is None:
                return pl.BlockSpec(shape, idx)
            return pl.BlockSpec(
                shape, idx, pipeline_mode=pl.Buffered(buffer_count=weight_bufs))

        if full_seq:
            grid = (N,)
            xq_spec = pl.BlockSpec((1, L, D), lambda b: (b, 0, 0))
            out_spec = pl.BlockSpec((1, L, D), lambda b: (b, 0, 0))
            sem = ("parallel",)
            data_in = (x,)
            data_specs = [xq_spec]
        else:
            grid = (N, n_qt)
            xq_spec = pl.BlockSpec((1, tq, D), lambda b, t: (b, t, 0))
            xf_spec = pl.BlockSpec((1, L, D), lambda b, t: (b, 0, 0))
            out_spec = pl.BlockSpec((1, tq, D), lambda b, t: (b, t, 0))
            # K/V caching requires the t axis to stay sequential on one core.
            sem = ("parallel", "arbitrary" if cache_kv else "parallel")
            data_in = (x, x.astype(cd))          # f32 residual + cd K/V source
            data_specs = [xq_spec, xf_spec]

        in_specs = data_specs + [
            rep((D, 3 * D)),                     # Wqkv
            rep((1, D)),                         # cb (flattened)
            rep((n_heads, H, D)), rep((1, D)),   # Wo (head-major), bo
            rep((1, D)), rep((1, D)),            # ln1 gamma, beta
            rep((D, F)), rep((1, F)),            # W1, b1
            rep((F, D)), rep((1, D)),            # W2, b2
            rep((1, D)), rep((1, D)),            # ln2 gamma, beta
        ]
        scratch = [
            pltpu.VMEM((n_heads, tq, H), cd),    # q, head-major
            pltpu.VMEM((n_heads, L, H), cd),     # k cache
            pltpu.VMEM((n_heads, L, H), cd),     # v cache
            pltpu.VMEM((tq, D), jnp.float32),    # residual + Wo accumulation
        ]
        fn = pl.pallas_call(
            kernel,
            out_shape=jax.ShapeDtypeStruct((N, L, D), out_dtype),
            grid=grid,
            in_specs=in_specs,
            out_specs=out_spec,
            scratch_shapes=scratch,
            compiler_params=pltpu.CompilerParams(
                dimension_semantics=sem, vmem_limit_bytes=vmem_limit))
        return jax.block_until_ready(
            fn(*data_in, wqkv, cb_flat, wo_h, params["bo"],
               params["g1"], params["beta1"], w1, params["b1"],
               w2, params["b2"], params["g2"], params["beta2"]))

    try:
        # Single-buffer the grid-invariant weights: they are fetched once, so
        # double-buffering them only wastes VMEM (matters most on v7x 64 MiB).
        return _call(1)
    except Exception:
        # Fallback if this Pallas build rejects Buffered(1) on input specs.
        return _call(None)


def init_params(key, n_heads, d_model, d_ffn):
    """Deterministic synthetic init (kaiming-uniform-like bounds)."""
    H = d_model // n_heads
    ks = jax.random.split(key, 12)

    def uni(k, shape, fan_in):
        b = 1.0 / np.sqrt(fan_in)
        return jax.random.uniform(k, shape, jnp.float32, -b, b)

    return {
        "Wq": uni(ks[0], (d_model, d_model), d_model),
        "Wk": uni(ks[1], (d_model, d_model), d_model),
        "Wv": uni(ks[2], (d_model, d_model), d_model),
        # cb is torch.zeros(d_model) in __init__; randomized here to exercise
        # the A_c path (stored as (h, H) = cb.view(h, -1)).
        "cb": 0.1 * jax.random.normal(ks[3], (n_heads, H), jnp.float32),
        # nn.Linear stores (out, in); we pre-transpose so kernel does x @ W.
        "WoT": uni(ks[4], (d_model, d_model), d_model),
        "bo": uni(ks[5], (1, d_model), d_model),
        "g1": 1.0 + 0.05 * jax.random.normal(ks[6], (1, d_model), jnp.float32),
        "beta1": 0.05 * jax.random.normal(ks[7], (1, d_model), jnp.float32),
        "W1": uni(ks[8], (d_model, d_ffn), d_model),
        "b1": uni(ks[9], (1, d_ffn), d_model),
        "W2": uni(ks[10], (d_ffn, d_model), d_ffn),
        "b2": uni(ks[11], (1, d_model), d_ffn),
        "g2": jnp.ones((1, d_model), jnp.float32),
        "beta2": jnp.zeros((1, d_model), jnp.float32),
    }


def reference(x, params, n_heads, eps=1e-5):
    """Pure-JAX re-implementation of the PyTorch forward (eval mode, f32)."""
    N, L, D = x.shape
    H = D // n_heads
    q = (x @ params["Wq"]).reshape(N, L, n_heads, H).transpose(0, 2, 1, 3)
    k = (x @ params["Wk"]).reshape(N, L, n_heads, H).transpose(0, 2, 1, 3)
    v = (x @ params["Wv"]).reshape(N, L, n_heads, H).transpose(0, 2, 1, 3)
    cb = jnp.broadcast_to(params["cb"].reshape(1, n_heads, 1, H),
                          (N, n_heads, L, H))
    A = (jnp.einsum("nhid,nhjd->nhij", q, k)
         + jnp.einsum("nhid,nhjd->nhij", cb, k))
    p = jax.nn.softmax(A, axis=-1)
    Oh = jnp.einsum("nhij,nhjd->nhid", p, v)
    O = Oh.transpose(0, 2, 1, 3).reshape(N, L, D)
    x1 = _layernorm(x + O @ params["WoT"] + params["bo"],
                    params["g1"], params["beta1"], eps)
    ff = jnp.maximum(x1 @ params["W1"] + params["b1"], 0.0) @ params["W2"] \
        + params["b2"]
    return _layernorm(x1 + ff, params["g2"], params["beta2"], eps)


if __name__ == "__main__":
    # --- test 1: tiny shapes -> full-sequence (single query tile) path ------
    N, L, n_heads, d_model, d_ffn = 2, 8, 4, 32, 64
    key = jax.random.PRNGKey(0)
    kx, ky, kp = jax.random.split(key, 3)
    X = jax.random.normal(kx, (N, L, d_model), jnp.float32)
    Y = jax.random.normal(ky, (N, L, d_model), jnp.float32)  # only checked for L
    params = init_params(kp, n_heads, d_model, d_ffn)
    ref = reference(X, params, n_heads)

    # Full-precision path (exact reciprocal, f32 matmuls).
    out_f32 = jax.block_until_ready(
        attn_block(X, Y, params, n_heads, compute_dtype=jnp.float32))
    np.testing.assert_allclose(np.asarray(out_f32), np.asarray(ref),
                               rtol=2e-2, atol=2e-2)

    # Default bf16-MXU path (f32 accumulation).
    out_bf16 = jax.block_until_ready(attn_block(X, Y, params, n_heads))
    np.testing.assert_allclose(np.asarray(out_bf16), np.asarray(ref),
                               rtol=5e-2, atol=5e-2)

    # --- test 2: longer sequence -> tiled query path with cached K/V --------
    N2, L2, h2, d2, f2 = 2, 256, 4, 128, 256
    k2x, k2p = jax.random.split(jax.random.PRNGKey(1))
    X2 = jax.random.normal(k2x, (N2, L2, d2), jnp.float32)
    params2 = init_params(k2p, h2, d2, f2)
    ref2 = reference(X2, params2, h2)
    out2 = jax.block_until_ready(
        attn_block(X2, X2, params2, h2, q_tile=128))
    np.testing.assert_allclose(np.asarray(out2), np.asarray(ref2),
                               rtol=7.5e-2, atol=7.5e-2)

    print("KERNEL_OK")
</pallas_src>

<mosaic_0001>
module attributes {stable_mosaic.version = 11 : i64} {
  func.func @attn_block_kernel(%arg0: i32, %arg1: memref<1x8x32xf32, #tpu.memory_space<vmem>>, %arg2: memref<32x96xf32, #tpu.memory_space<vmem>>, %arg3: memref<1x32xf32, #tpu.memory_space<vmem>>, %arg4: memref<4x8x32xf32, #tpu.memory_space<vmem>>, %arg5: memref<1x32xf32, #tpu.memory_space<vmem>>, %arg6: memref<1x32xf32, #tpu.memory_space<vmem>>, %arg7: memref<1x32xf32, #tpu.memory_space<vmem>>, %arg8: memref<32x64xf32, #tpu.memory_space<vmem>>, %arg9: memref<1x64xf32, #tpu.memory_space<vmem>>, %arg10: memref<64x32xf32, #tpu.memory_space<vmem>>, %arg11: memref<1x32xf32, #tpu.memory_space<vmem>>, %arg12: memref<1x32xf32, #tpu.memory_space<vmem>>, %arg13: memref<1x32xf32, #tpu.memory_space<vmem>>, %arg14: memref<1x8x32xf32, #tpu.memory_space<vmem>>, %arg15: memref<4x8x8xf32, #tpu.memory_space<vmem>>, %arg16: memref<4x8x8xf32, #tpu.memory_space<vmem>>, %arg17: memref<4x8x8xf32, #tpu.memory_space<vmem>>, %arg18: memref<8x32xf32, #tpu.memory_space<vmem>>) attributes {dimension_semantics = [#tpu.dimension_semantics<parallel>], iteration_bounds = array<i64: 2>, scalar_prefetch = 0 : i64, scratch_operands = 4 : i64, tpu.core_type = #tpu.core_type<tc>, window_params = [{transform_indices = @transform_0, window_bounds = array<i64: 1, 8, 32>}, {pipeline_mode = #tpu.pipeline_mode<synchronous>, transform_indices = @transform_1, window_bounds = array<i64: 32, 96>}, {pipeline_mode = #tpu.pipeline_mode<synchronous>, transform_indices = @transform_2, window_bounds = array<i64: 1, 32>}, {pipeline_mode = #tpu.pipeline_mode<synchronous>, transform_indices = @transform_3, window_bounds = array<i64: 4, 8, 32>}, {pipeline_mode = #tpu.pipeline_mode<synchronous>, transform_indices = @transform_4, window_bounds = array<i64: 1, 32>}, {pipeline_mode = #tpu.pipeline_mode<synchronous>, transform_indices = @transform_5, window_bounds = array<i64: 1, 32>}, {pipeline_mode = #tpu.pipeline_mode<synchronous>, transform_indices = @transform_6, window_bounds = array<i64: 1, 32>}, {pipeline_mode = #tpu.pipeline_mode<synchronous>, transform_indices = @transform_7, window_bounds = array<i64: 32, 64>}, {pipeline_mode = #tpu.pipeline_mode<synchronous>, transform_indices = @transform_8, window_bounds = array<i64: 1, 64>}, {pipeline_mode = #tpu.pipeline_mode<synchronous>, transform_indices = @transform_9, window_bounds = array<i64: 64, 32>}, {pipeline_mode = #tpu.pipeline_mode<synchronous>, transform_indices = @transform_10, window_bounds = array<i64: 1, 32>}, {pipeline_mode = #tpu.pipeline_mode<synchronous>, transform_indices = @transform_11, window_bounds = array<i64: 1, 32>}, {pipeline_mode = #tpu.pipeline_mode<synchronous>, transform_indices = @transform_12, window_bounds = array<i64: 1, 32>}, {transform_indices = @transform_13, window_bounds = array<i64: 1, 8, 32>}]} {
    %c0 = arith.constant 0 : index
    %c0_0 = arith.constant 0 : index
    %c0_1 = arith.constant 0 : index
    %0 = vector.load %arg1[%c0, %c0_0, %c0_1] : memref<1x8x32xf32, #tpu.memory_space<vmem>>, vector<1x8x32xf32>
    %1 = vector.shape_cast %0 : vector<1x8x32xf32> to vector<8x32xf32>
    %c0_2 = arith.constant 0 : index
    %c0_3 = arith.constant 0 : index
    %2 = vector.load %arg3[%c0_2, %c0_3] : memref<1x32xf32, #tpu.memory_space<vmem>>, vector<1x32xf32>
    %c0_4 = arith.constant 0 : index
    %c0_5 = arith.constant 0 : index
    %3 = vector.load %arg2[%c0_4, %c0_5] : memref<32x96xf32, #tpu.memory_space<vmem>>, vector<32x96xf32>
    %cst = arith.constant dense<0.000000e+00> : vector<8x96xf32>
    %4 = tpu.matmul %1, %3, %cst {dimension_numbers = #tpu.dot_dimension_numbers<[1], [0], [0], [1], [0, 0, 1, 1], [], []>} : vector<8x32xf32>, vector<32x96xf32>, vector<8x96xf32> -> vector<8x96xf32>
    %5 = vector.extract_strided_slice %4 {offsets = [0, 0], sizes = [8, 32], strides = [1, 1]} : vector<8x96xf32> to vector<8x32xf32>
    %6 = vector.broadcast %2 : vector<1x32xf32> to vector<8x32xf32>
    %7 = arith.addf %5, %6 : vector<8x32xf32>
    %8 = vector.extract_strided_slice %7 {offsets = [0, 0], sizes = [8, 8], strides = [1, 1]} : vector<8x32xf32> to vector<8x8xf32>
    %c0_6 = arith.constant 0 : index
    %c0_7 = arith.constant 0 : index
    %c0_8 = arith.constant 0 : index
    %9 = vector.load %arg15[%c0_6, %c0_7, %c0_8] : memref<4x8x8xf32, #tpu.memory_space<vmem>>, vector<1x8x8xf32>
    %10 = vector.shape_cast %9 : vector<1x8x8xf32> to vector<8x8xf32>
    %11 = vector.shape_cast %8 : vector<8x8xf32> to vector<1x8x8xf32>
    tpu.vector_store %arg15[%c0_6, %c0_7, %c0_8], %11 {strides = array<i32>} : memref<4x8x8xf32, #tpu.memory_space<vmem>>, vector<1x8x8xf32>,
    %12 = vector.extract_strided_slice %7 {offsets = [0, 8], sizes = [8, 8], strides = [1, 1]} : vector<8x32xf32> to vector<8x8xf32>
    %c1 = arith.constant 1 : index
    %c0_9 = arith.constant 0 : index
    %c0_10 = arith.constant 0 : index
    %13 = vector.load %arg15[%c1, %c0_9, %c0_10] : memref<4x8x8xf32, #tpu.memory_space<vmem>>, vector<1x8x8xf32>
    %14 = vector.shape_cast %13 : vector<1x8x8xf32> to vector<8x8xf32>
    %15 = vector.shape_cast %12 : vector<8x8xf32> to vector<1x8x8xf32>
    tpu.vector_store %arg15[%c1, %c0_9, %c0_10], %15 {strides = array<i32>} : memref<4x8x8xf32, #tpu.memory_space<vmem>>, vector<1x8x8xf32>,
    %16 = vector.extract_strided_slice %7 {offsets = [0, 16], sizes = [8, 8], strides = [1, 1]} : vector<8x32xf32> to vector<8x8xf32>
    %c2 = arith.constant 2 : index
    %c0_11 = arith.constant 0 : index
    %c0_12 = arith.constant 0 : index
    %17 = vector.load %arg15[%c2, %c0_11, %c0_12] : memref<4x8x8xf32, #tpu.memory_space<vmem>>, vector<1x8x8xf32>
    %18 = vector.shape_cast %17 : vector<1x8x8xf32> to vector<8x8xf32>
    %19 = vector.shape_cast %16 : vector<8x8xf32> to vector<1x8x8xf32>
    tpu.vector_store %arg15[%c2, %c0_11, %c0_12], %19 {strides = array<i32>} : memref<4x8x8xf32, #tpu.memory_space<vmem>>, vector<1x8x8xf32>,
    %20 = vector.extract_strided_slice %7 {offsets = [0, 24], sizes = [8, 8], strides = [1, 1]} : vector<8x32xf32> to vector<8x8xf32>
    %c3 = arith.constant 3 : index
    %c0_13 = arith.constant 0 : index
    %c0_14 = arith.constant 0 : index
    %21 = vector.load %arg15[%c3, %c0_13, %c0_14] : memref<4x8x8xf32, #tpu.memory_space<vmem>>, vector<1x8x8xf32>
    %22 = vector.shape_cast %21 : vector<1x8x8xf32> to vector<8x8xf32>
    %23 = vector.shape_cast %20 : vector<8x8xf32> to vector<1x8x8xf32>
    tpu.vector_store %arg15[%c3, %c0_13, %c0_14], %23 {strides = array<i32>} : memref<4x8x8xf32, #tpu.memory_space<vmem>>, vector<1x8x8xf32>,
    %24 = vector.extract_strided_slice %4 {offsets = [0, 32], sizes = [8, 32], strides = [1, 1]} : vector<8x96xf32> to vector<8x32xf32>
    %25 = vector.extract_strided_slice %24 {offsets = [0, 0], sizes = [8, 8], strides = [1, 1]} : vector<8x32xf32> to vector<8x8xf32>
    %c0_15 = arith.constant 0 : index
    %c0_16 = arith.constant 0 : index
    %c0_17 = arith.constant 0 : index
    %26 = vector.load %arg16[%c0_15, %c0_16, %c0_17] : memref<4x8x8xf32, #tpu.memory_space<vmem>>, vector<1x8x8xf32>
    %27 = vector.shape_cast %26 : vector<1x8x8xf32> to vector<8x8xf32>
    %28 = vector.shape_cast %25 : vector<8x8xf32> to vector<1x8x8xf32>
    tpu.vector_store %arg16[%c0_15, %c0_16, %c0_17], %28 {strides = array<i32>} : memref<4x8x8xf32, #tpu.memory_space<vmem>>, vector<1x8x8xf32>,
    %29 = vector.extract_strided_slice %24 {offsets = [0, 8], sizes = [8, 8], strides = [1, 1]} : vector<8x32xf32> to vector<8x8xf32>
    %c1_18 = arith.constant 1 : index
    %c0_19 = arith.constant 0 : index
    %c0_20 = arith.constant 0 : index
    %30 = vector.load %arg16[%c1_18, %c0_19, %c0_20] : memref<4x8x8xf32, #tpu.memory_space<vmem>>, vector<1x8x8xf32>
    %31 = vector.shape_cast %30 : vector<1x8x8xf32> to vector<8x8xf32>
    %32 = vector.shape_cast %29 : vector<8x8xf32> to vector<1x8x8xf32>
    tpu.vector_store %arg16[%c1_18, %c0_19, %c0_20], %32 {strides = array<i32>} : memref<4x8x8xf32, #tpu.memory_space<vmem>>, vector<1x8x8xf32>,
    %33 = vector.extract_strided_slice %24 {offsets = [0, 16], sizes = [8, 8], strides = [1, 1]} : vector<8x32xf32> to vector<8x8xf32>
    %c2_21 = arith.constant 2 : index
    %c0_22 = arith.constant 0 : index
    %c0_23 = arith.constant 0 : index
    %34 = vector.load %arg16[%c2_21, %c0_22, %c0_23] : memref<4x8x8xf32, #tpu.memory_space<vmem>>, vector<1x8x8xf32>
    %35 = vector.shape_cast %34 : vector<1x8x8xf32> to vector<8x8xf32>
    %36 = vector.shape_cast %33 : vector<8x8xf32> to vector<1x8x8xf32>
    tpu.vector_store %arg16[%c2_21, %c0_22, %c0_23], %36 {strides = array<i32>} : memref<4x8x8xf32, #tpu.memory_space<vmem>>, vector<1x8x8xf32>,
    %37 = vector.extract_strided_slice %24 {offsets = [0, 24], sizes = [8, 8], strides = [1, 1]} : vector<8x32xf32> to vector<8x8xf32>
    %c3_24 = arith.constant 3 : index
    %c0_25 = arith.constant 0 : index
    %c0_26 = arith.constant 0 : index
    %38 = vector.load %arg16[%c3_24, %c0_25, %c0_26] : memref<4x8x8xf32, #tpu.memory_space<vmem>>, vector<1x8x8xf32>
    %39 = vector.shape_cast %38 : vector<1x8x8xf32> to vector<8x8xf32>
    %40 = vector.shape_cast %37 : vector<8x8xf32> to vector<1x8x8xf32>
    tpu.vector_store %arg16[%c3_24, %c0_25, %c0_26], %40 {strides = array<i32>} : memref<4x8x8xf32, #tpu.memory_space<vmem>>, vector<1x8x8xf32>,
    %41 = vector.extract_strided_slice %4 {offsets = [0, 64], sizes = [8, 32], strides = [1, 1]} : vector<8x96xf32> to vector<8x32xf32>
    %42 = vector.extract_strided_slice %41 {offsets = [0, 0], sizes = [8, 8], strides = [1, 1]} : vector<8x32xf32> to vector<8x8xf32>
    %c0_27 = arith.constant 0 : index
    %c0_28 = arith.constant 0 : index
    %c0_29 = arith.constant 0 : index
    %43 = vector.load %arg17[%c0_27, %c0_28, %c0_29] : memref<4x8x8xf32, #tpu.memory_space<vmem>>, vector<1x8x8xf32>
    %44 = vector.shape_cast %43 : vector<1x8x8xf32> to vector<8x8xf32>
    %45 = vector.shape_cast %42 : vector<8x8xf32> to vector<1x8x8xf32>
    tpu.vector_store %arg17[%c0_27, %c0_28, %c0_29], %45 {strides = array<i32>} : memref<4x8x8xf32, #tpu.memory_space<vmem>>, vector<1x8x8xf32>,
    %46 = vector.extract_strided_slice %41 {offsets = [0, 8], sizes = [8, 8], strides = [1, 1]} : vector<8x32xf32> to vector<8x8xf32>
    %c1_30 = arith.constant 1 : index
    %c0_31 = arith.constant 0 : index
    %c0_32 = arith.constant 0 : index
    %47 = vector.load %arg17[%c1_30, %c0_31, %c0_32] : memref<4x8x8xf32, #tpu.memory_space<vmem>>, vector<1x8x8xf32>
    %48 = vector.shape_cast %47 : vector<1x8x8xf32> to vector<8x8xf32>
    %49 = vector.shape_cast %46 : vector<8x8xf32> to vector<1x8x8xf32>
    tpu.vector_store %arg17[%c1_30, %c0_31, %c0_32], %49 {strides = array<i32>} : memref<4x8x8xf32, #tpu.memory_space<vmem>>, vector<1x8x8xf32>,
    %50 = vector.extract_strided_slice %41 {offsets = [0, 16], sizes = [8, 8], strides = [1, 1]} : vector<8x32xf32> to vector<8x8xf32>
    %c2_33 = arith.constant 2 : index
    %c0_34 = arith.constant 0 : index
    %c0_35 = arith.constant 0 : index
    %51 = vector.load %arg17[%c2_33, %c0_34, %c0_35] : memref<4x8x8xf32, #tpu.memory_space<vmem>>, vector<1x8x8xf32>
    %52 = vector.shape_cast %51 : vector<1x8x8xf32> to vector<8x8xf32>
    %53 = vector.shape_cast %50 : vector<8x8xf32> to vector<1x8x8xf32>
    tpu.vector_store %arg17[%c2_33, %c0_34, %c0_35], %53 {strides = array<i32>} : memref<4x8x8xf32, #tpu.memory_space<vmem>>, vector<1x8x8xf32>,
    %54 = vector.extract_strided_slice %41 {offsets = [0, 24], sizes = [8, 8], strides = [1, 1]} : vector<8x32xf32> to vector<8x8xf32>
    %c3_36 = arith.constant 3 : index
    %c0_37 = arith.constant 0 : index
    %c0_38 = arith.constant 0 : index
    %55 = vector.load %arg17[%c3_36, %c0_37, %c0_38] : memref<4x8x8xf32, #tpu.memory_space<vmem>>, vector<1x8x8xf32>
    %56 = vector.shape_cast %55 : vector<1x8x8xf32> to vector<8x8xf32>
    %57 = vector.shape_cast %54 : vector<8x8xf32> to vector<1x8x8xf32>
    tpu.vector_store %arg17[%c3_36, %c0_37, %c0_38], %57 {strides = array<i32>} : memref<4x8x8xf32, #tpu.memory_space<vmem>>, vector<1x8x8xf32>,
    %c0_39 = arith.constant 0 : index
    %c0_40 = arith.constant 0 : index
    %58 = vector.load %arg5[%c0_39, %c0_40] : memref<1x32xf32, #tpu.memory_space<vmem>>, vector<1x32xf32>
    %59 = vector.broadcast %58 : vector<1x32xf32> to vector<8x32xf32>
    %60 = arith.addf %1, %59 : vector<8x32xf32>
    %c0_41 = arith.constant 0 : index
    %c0_42 = arith.constant 0 : index
    %61 = vector.load %arg18[%c0_41, %c0_42] : memref<8x32xf32, #tpu.memory_space<vmem>>, vector<8x32xf32>
    tpu.vector_store %arg18[%c0_41, %c0_42], %60 {strides = array<i32>} : memref<8x32xf32, #tpu.memory_space<vmem>>, vector<8x32xf32>,
    %c0_i32 = arith.constant 0 : i32
    %c4_i32 = arith.constant 4 : i32
    %62 = arith.addi %c0_i32, %c4_i32 : i32
    %c1_i32 = arith.constant 1 : i32
    scf.for %arg19 = %c0_i32 to %62 step %c1_i32  : i32 {
      %124 = arith.index_cast %arg19 : i32 to index
      %c0_78 = arith.constant 0 : index
      %c0_79 = arith.constant 0 : index
      %125 = vector.load %arg15[%124, %c0_78, %c0_79] : memref<4x8x8xf32, #tpu.memory_space<vmem>>, vector<1x8x8xf32>
      %126 = vector.shape_cast %125 : vector<1x8x8xf32> to vector<8x8xf32>
      %127 = arith.index_cast %arg19 : i32 to index
      %c0_80 = arith.constant 0 : index
      %c0_81 = arith.constant 0 : index
      %128 = vector.load %arg16[%127, %c0_80, %c0_81] : memref<4x8x8xf32, #tpu.memory_space<vmem>>, vector<1x8x8xf32>
      %129 = vector.shape_cast %128 : vector<1x8x8xf32> to vector<8x8xf32>
      %130 = arith.index_cast %arg19 : i32 to index
      %c0_82 = arith.constant 0 : index
      %c0_83 = arith.constant 0 : index
      %131 = vector.load %arg17[%130, %c0_82, %c0_83] : memref<4x8x8xf32, #tpu.memory_space<vmem>>, vector<1x8x8xf32>
      %132 = vector.shape_cast %131 : vector<1x8x8xf32> to vector<8x8xf32>
      %cst_84 = arith.constant dense<0.000000e+00> : vector<8x8xf32>
      %133 = tpu.matmul %126, %129, %cst_84 {dimension_numbers = #tpu.dot_dimension_numbers<[1], [1], [0], [0], [0, 0, 1, 0], [], []>} : vector<8x8xf32>, vector<8x8xf32>, vector<8x8xf32> -> vector<8x8xf32>
      %cst_85 = arith.constant dense<0xFF800000> : vector<8xf32>
      %134 = vector.multi_reduction <maximumf>, %133, %cst_85 [1] : vector<8x8xf32> to vector<8xf32>
      %135 = vector.shape_cast %134 : vector<8xf32> to vector<8x1xf32>
      %136 = vector.broadcast %135 : vector<8x1xf32> to vector<8x8xf32>
      %137 = arith.subf %133, %136 : vector<8x8xf32>
      %138 = math.exp %137 : vector<8x8xf32>
      %cst_86 = arith.constant dense<0.000000e+00> : vector<8xf32>
      %139 = vector.multi_reduction <add>, %138, %cst_86 [1] : vector<8x8xf32> to vector<8xf32>
      %140 = vector.shape_cast %139 : vector<8xf32> to vector<8x1xf32>
      %141 = tpu.reciprocal %140 : vector<8x1xf32> -> vector<8x1xf32>
      %cst_87 = arith.constant dense<0.000000e+00> : vector<8x8xf32>
      %142 = tpu.matmul %138, %132, %cst_87 {dimension_numbers = #tpu.dot_dimension_numbers<[1], [0], [0], [1], [0, 0, 1, 1], [], []>} : vector<8x8xf32>, vector<8x8xf32>, vector<8x8xf32> -> vector<8x8xf32>
      %143 = vector.broadcast %141 : vector<8x1xf32> to vector<8x8xf32>
      %144 = arith.mulf %142, %143 : vector<8x8xf32>
      %c0_88 = arith.constant 0 : index
      %c0_89 = arith.constant 0 : index
      %145 = vector.load %arg18[%c0_88, %c0_89] : memref<8x32xf32, #tpu.memory_space<vmem>>, vector<8x32xf32>
      %146 = arith.index_cast %arg19 : i32 to index
      %c0_90 = arith.constant 0 : index
      %c0_91 = arith.constant 0 : index
      %147 = vector.load %arg4[%146, %c0_90, %c0_91] : memref<4x8x32xf32, #tpu.memory_space<vmem>>, vector<1x8x32xf32>
      %148 = vector.shape_cast %147 : vector<1x8x32xf32> to vector<8x32xf32>
      %cst_92 = arith.constant dense<0.000000e+00> : vector<8x32xf32>
      %149 = tpu.matmul %144, %148, %cst_92 {dimension_numbers = #tpu.dot_dimension_numbers<[1], [0], [0], [1], [0, 0, 1, 1], [], []>} : vector<8x8xf32>, vector<8x32xf32>, vector<8x32xf32> -> vector<8x32xf32>
      %150 = arith.addf %145, %149 : vector<8x32xf32>
      %c0_93 = arith.constant 0 : index
      %c0_94 = arith.constant 0 : index
      %151 = vector.load %arg18[%c0_93, %c0_94] : memref<8x32xf32, #tpu.memory_space<vmem>>, vector<8x32xf32>
      tpu.vector_store %arg18[%c0_93, %c0_94], %150 {strides = array<i32>} : memref<8x32xf32, #tpu.memory_space<vmem>>, vector<8x32xf32>,
    }
    %c4_i32_43 = arith.constant 4 : i32
    %c0_44 = arith.constant 0 : index
    %c0_45 = arith.constant 0 : index
    %63 = vector.load %arg18[%c0_44, %c0_45] : memref<8x32xf32, #tpu.memory_space<vmem>>, vector<8x32xf32>
    %c0_46 = arith.constant 0 : index
    %c0_47 = arith.constant 0 : index
    %64 = vector.load %arg6[%c0_46, %c0_47] : memref<1x32xf32, #tpu.memory_space<vmem>>, vector<1x32xf32>
    %c0_48 = arith.constant 0 : index
    %c0_49 = arith.constant 0 : index
    %65 = vector.load %arg7[%c0_48, %c0_49] : memref<1x32xf32, #tpu.memory_space<vmem>>, vector<1x32xf32>
    %cst_50 = arith.constant dense<0.000000e+00> : vector<8xf32>
    %66 = vector.multi_reduction <add>, %63, %cst_50 [1] : vector<8x32xf32> to vector<8xf32>
    %67 = vector.shape_cast %66 : vector<8xf32> to vector<8x1xf32>
    %cst_51 = arith.constant 3.200000e+01 : f32
    %68 = vector.broadcast %cst_51 : f32 to vector<8x1xf32>
    %69 = arith.divf %67, %68 : vector<8x1xf32>
    %70 = vector.broadcast %69 : vector<8x1xf32> to vector<8x32xf32>
    %71 = arith.subf %63, %70 : vector<8x32xf32>
    %72 = arith.mulf %71, %71 : vector<8x32xf32>
    %cst_52 = arith.constant dense<0.000000e+00> : vector<8xf32>
    %73 = vector.multi_reduction <add>, %72, %cst_52 [1] : vector<8x32xf32> to vector<8xf32>
    %74 = vector.shape_cast %73 : vector<8xf32> to vector<8x1xf32>
    %cst_53 = arith.constant 3.200000e+01 : f32
    %75 = vector.broadcast %cst_53 : f32 to vector<8x1xf32>
    %76 = arith.divf %74, %75 : vector<8x1xf32>
    %cst_54 = arith.constant 9.99999974E-6 : f32
    %77 = vector.broadcast %cst_54 : f32 to vector<8x1xf32>
    %78 = arith.addf %76, %77 : vector<8x1xf32>
    %79 = math.rsqrt %78 : vector<8x1xf32>
    %80 = vector.broadcast %79 : vector<8x1xf32> to vector<8x32xf32>
    %81 = arith.mulf %71, %80 : vector<8x32xf32>
    %82 = vector.broadcast %64 : vector<1x32xf32> to vector<8x32xf32>
    %83 = arith.mulf %81, %82 : vector<8x32xf32>
    %84 = vector.broadcast %65 : vector<1x32xf32> to vector<8x32xf32>
    %85 = arith.addf %83, %84 : vector<8x32xf32>
    %c0_55 = arith.constant 0 : index
    %c0_56 = arith.constant 0 : index
    %86 = vector.load %arg8[%c0_55, %c0_56] : memref<32x64xf32, #tpu.memory_space<vmem>>, vector<32x64xf32>
    %cst_57 = arith.constant dense<0.000000e+00> : vector<8x64xf32>
    %87 = tpu.matmul %85, %86, %cst_57 {dimension_numbers = #tpu.dot_dimension_numbers<[1], [0], [0], [1], [0, 0, 1, 1], [], []>} : vector<8x32xf32>, vector<32x64xf32>, vector<8x64xf32> -> vector<8x64xf32>
    %c0_58 = arith.constant 0 : index
    %c0_59 = arith.constant 0 : index
    %88 = vector.load %arg9[%c0_58, %c0_59] : memref<1x64xf32, #tpu.memory_space<vmem>>, vector<1x64xf32>
    %89 = vector.broadcast %88 : vector<1x64xf32> to vector<8x64xf32>
    %90 = arith.addf %87, %89 : vector<8x64xf32>
    %cst_60 = arith.constant 0.000000e+00 : f32
    %91 = vector.broadcast %cst_60 : f32 to vector<8x64xf32>
    %92 = arith.maximumf %90, %91 : vector<8x64xf32>
    %c0_61 = arith.constant 0 : index
    %c0_62 = arith.constant 0 : index
    %93 = vector.load %arg10[%c0_61, %c0_62] : memref<64x32xf32, #tpu.memory_space<vmem>>, vector<64x32xf32>
    %cst_63 = arith.constant dense<0.000000e+00> : vector<8x32xf32>
    %94 = tpu.matmul %92, %93, %cst_63 {dimension_numbers = #tpu.dot_dimension_numbers<[1], [0], [0], [1], [0, 0, 1, 1], [], []>} : vector<8x64xf32>, vector<64x32xf32>, vector<8x32xf32> -> vector<8x32xf32>
    %c0_64 = arith.constant 0 : index
    %c0_65 = arith.constant 0 : index
    %95 = vector.load %arg11[%c0_64, %c0_65] : memref<1x32xf32, #tpu.memory_space<vmem>>, vector<1x32xf32>
    %96 = vector.broadcast %95 : vector<1x32xf32> to vector<8x32xf32>
    %97 = arith.addf %94, %96 : vector<8x32xf32>
    %98 = arith.addf %85, %97 : vector<8x32xf32>
    %c0_66 = arith.constant 0 : index
    %c0_67 = arith.constant 0 : index
    %99 = vector.load %arg12[%c0_66, %c0_67] : memref<1x32xf32, #tpu.memory_space<vmem>>, vector<1x32xf32>
    %c0_68 = arith.constant 0 : index
    %c0_69 = arith.constant 0 : index
    %100 = vector.load %arg13[%c0_68, %c0_69] : memref<1x32xf32, #tpu.memory_space<vmem>>, vector<1x32xf32>
    %cst_70 = arith.constant dense<0.000000e+00> : vector<8xf32>
    %101 = vector.multi_reduction <add>, %98, %cst_70 [1] : vector<8x32xf32> to vector<8xf32>
    %102 = vector.shape_cast %101 : vector<8xf32> to vector<8x1xf32>
    %cst_71 = arith.constant 3.200000e+01 : f32
    %103 = vector.broadcast %cst_71 : f32 to vector<8x1xf32>
    %104 = arith.divf %102, %103 : vector<8x1xf32>
    %105 = vector.broadcast %104 : vector<8x1xf32> to vector<8x32xf32>
    %106 = arith.subf %98, %105 : vector<8x32xf32>
    %107 = arith.mulf %106, %106 : vector<8x32xf32>
    %cst_72 = arith.constant dense<0.000000e+00> : vector<8xf32>
    %108 = vector.multi_reduction <add>, %107, %cst_72 [1] : vector<8x32xf32> to vector<8xf32>
    %109 = vector.shape_cast %108 : vector<8xf32> to vector<8x1xf32>
    %cst_73 = arith.constant 3.200000e+01 : f32
    %110 = vector.broadcast %cst_73 : f32 to vector<8x1xf32>
    %111 = arith.divf %109, %110 : vector<8x1xf32>
    %cst_74 = arith.constant 9.99999974E-6 : f32
    %112 = vector.broadcast %cst_74 : f32 to vector<8x1xf32>
    %113 = arith.addf %111, %112 : vector<8x1xf32>
    %114 = math.rsqrt %113 : vector<8x1xf32>
    %115 = vector.broadcast %114 : vector<8x1xf32> to vector<8x32xf32>
    %116 = arith.mulf %106, %115 : vector<8x32xf32>
    %117 = vector.broadcast %99 : vector<1x32xf32> to vector<8x32xf32>
    %118 = arith.mulf %116, %117 : vector<8x32xf32>
    %119 = vector.broadcast %100 : vector<1x32xf32> to vector<8x32xf32>
    %120 = arith.addf %118, %119 : vector<8x32xf32>
    %c0_75 = arith.constant 0 : index
    %c0_76 = arith.constant 0 : index
    %c0_77 = arith.constant 0 : index
    %121 = vector.load %arg14[%c0_75, %c0_76, %c0_77] : memref<1x8x32xf32, #tpu.memory_space<vmem>>, vector<1x8x32xf32>
    %122 = vector.shape_cast %121 : vector<1x8x32xf32> to vector<8x32xf32>
    %123 = vector.shape_cast %120 : vector<8x32xf32> to vector<1x8x32xf32>
    tpu.vector_store %arg14[%c0_75, %c0_76, %c0_77], %123 {strides = array<i32>} : memref<1x8x32xf32, #tpu.memory_space<vmem>>, vector<1x8x32xf32>,
    return
  }
  func.func @transform_0(%arg0: i32) -> (i32, i32, i32) {
    %c0_i32 = arith.constant 0 : i32
    %c0_i32_0 = arith.constant 0 : i32
    %c0_i32_1 = arith.constant 0 : i32
    return %arg0, %c0_i32, %c0_i32_0 : i32, i32, i32
  }
  func.func @transform_1(%arg0: i32) -> (i32, i32) {
    %c0_i32 = arith.constant 0 : i32
    %c0_i32_0 = arith.constant 0 : i32
    %c0_i32_1 = arith.constant 0 : i32
    return %c0_i32, %c0_i32_0 : i32, i32
  }
  func.func @transform_2(%arg0: i32) -> (i32, i32) {
    %c0_i32 = arith.constant 0 : i32
    %c0_i32_0 = arith.constant 0 : i32
    %c0_i32_1 = arith.constant 0 : i32
    return %c0_i32, %c0_i32_0 : i32, i32
  }
  func.func @transform_3(%arg0: i32) -> (i32, i32, i32) {
    %c0_i32 = arith.constant 0 : i32
    %c0_i32_0 = arith.constant 0 : i32
    %c0_i32_1 = arith.constant 0 : i32
    %c0_i32_2 = arith.constant 0 : i32
    return %c0_i32, %c0_i32_0, %c0_i32_1 : i32, i32, i32
  }
  func.func @transform_4(%arg0: i32) -> (i32, i32) {
    %c0_i32 = arith.constant 0 : i32
    %c0_i32_0 = arith.constant 0 : i32
    %c0_i32_1 = arith.constant 0 : i32
    return %c0_i32, %c0_i32_0 : i32, i32
  }
  func.func @transform_5(%arg0: i32) -> (i32, i32) {
    %c0_i32 = arith.constant 0 : i32
    %c0_i32_0 = arith.constant 0 : i32
    %c0_i32_1 = arith.constant 0 : i32
    return %c0_i32, %c0_i32_0 : i32, i32
  }
  func.func @transform_6(%arg0: i32) -> (i32, i32) {
    %c0_i32 = arith.constant 0 : i32
    %c0_i32_0 = arith.constant 0 : i32
    %c0_i32_1 = arith.constant 0 : i32
    return %c0_i32, %c0_i32_0 : i32, i32
  }
  func.func @transform_7(%arg0: i32) -> (i32, i32) {
    %c0_i32 = arith.constant 0 : i32
    %c0_i32_0 = arith.constant 0 : i32
    %c0_i32_1 = arith.constant 0 : i32
    return %c0_i32, %c0_i32_0 : i32, i32
  }
  func.func @transform_8(%arg0: i32) -> (i32, i32) {
    %c0_i32 = arith.constant 0 : i32
    %c0_i32_0 = arith.constant 0 : i32
    %c0_i32_1 = arith.constant 0 : i32
    return %c0_i32, %c0_i32_0 : i32, i32
  }
  func.func @transform_9(%arg0: i32) -> (i32, i32) {
    %c0_i32 = arith.constant 0 : i32
    %c0_i32_0 = arith.constant 0 : i32
    %c0_i32_1 = arith.constant 0 : i32
    return %c0_i32, %c0_i32_0 : i32, i32
  }
  func.func @transform_10(%arg0: i32) -> (i32, i32) {
    %c0_i32 = arith.constant 0 : i32
    %c0_i32_0 = arith.constant 0 : i32
    %c0_i32_1 = arith.constant 0 : i32
    return %c0_i32, %c0_i32_0 : i32, i32
  }
  func.func @transform_11(%arg0: i32) -> (i32, i32) {
    %c0_i32 = arith.constant 0 : i32
    %c0_i32_0 = arith.constant 0 : i32
    %c0_i32_1 = arith.constant 0 : i32
    return %c0_i32, %c0_i32_0 : i32, i32
  }
  func.func @transform_12(%arg0: i32) -> (i32, i32) {
    %c0_i32 = arith.constant 0 : i32
    %c0_i32_0 = arith.constant 0 : i32
    %c0_i32_1 = arith.constant 0 : i32
    return %c0_i32, %c0_i32_0 : i32, i32
  }
  func.func @transform_13(%arg0: i32) -> (i32, i32, i32) {
    %c0_i32 = arith.constant 0 : i32
    %c0_i32_0 = arith.constant 0 : i32
    %c0_i32_1 = arith.constant 0 : i32
    return %arg0, %c0_i32, %c0_i32_0 : i32, i32, i32
  }
}

module attributes {stable_mosaic.version = 11 : i64} {
  func.func @attn_block_kernel(%arg0: i32, %arg1: memref<1x8x32xf32, #tpu.memory_space<vmem>>, %arg2: memref<32x96xf32, #tpu.memory_space<vmem>>, %arg3: memref<1x32xf32, #tpu.memory_space<vmem>>, %arg4: memref<4x8x32xf32, #tpu.memory_space<vmem>>, %arg5: memref<1x32xf32, #tpu.memory_space<vmem>>, %arg6: memref<1x32xf32, #tpu.memory_space<vmem>>, %arg7: memref<1x32xf32, #tpu.memory_space<vmem>>, %arg8: memref<32x64xf32, #tpu.memory_space<vmem>>, %arg9: memref<1x64xf32, #tpu.memory_space<vmem>>, %arg10: memref<64x32xf32, #tpu.memory_space<vmem>>, %arg11: memref<1x32xf32, #tpu.memory_space<vmem>>, %arg12: memref<1x32xf32, #tpu.memory_space<vmem>>, %arg13: memref<1x32xf32, #tpu.memory_space<vmem>>, %arg14: memref<1x8x32xf32, #tpu.memory_space<vmem>>, %arg15: memref<4x8x8xf32, #tpu.memory_space<vmem>>, %arg16: memref<4x8x8xf32, #tpu.memory_space<vmem>>, %arg17: memref<4x8x8xf32, #tpu.memory_space<vmem>>, %arg18: memref<8x32xf32, #tpu.memory_space<vmem>>) attributes {dimension_semantics = [#tpu.dimension_semantics<parallel>], iteration_bounds = array<i64: 2>, scalar_prefetch = 0 : i64, scratch_operands = 4 : i64, tpu.core_type = #tpu.core_type<tc>, window_params = [{transform_indices = @transform_0, window_bounds = array<i64: 1, 8, 32>}, {pipeline_mode = #tpu.pipeline_mode<synchronous>, transform_indices = @transform_1, window_bounds = array<i64: 32, 96>}, {pipeline_mode = #tpu.pipeline_mode<synchronous>, transform_indices = @transform_2, window_bounds = array<i64: 1, 32>}, {pipeline_mode = #tpu.pipeline_mode<synchronous>, transform_indices = @transform_3, window_bounds = array<i64: 4, 8, 32>}, {pipeline_mode = #tpu.pipeline_mode<synchronous>, transform_indices = @transform_4, window_bounds = array<i64: 1, 32>}, {pipeline_mode = #tpu.pipeline_mode<synchronous>, transform_indices = @transform_5, window_bounds = array<i64: 1, 32>}, {pipeline_mode = #tpu.pipeline_mode<synchronous>, transform_indices = @transform_6, window_bounds = array<i64: 1, 32>}, {pipeline_mode = #tpu.pipeline_mode<synchronous>, transform_indices = @transform_7, window_bounds = array<i64: 32, 64>}, {pipeline_mode = #tpu.pipeline_mode<synchronous>, transform_indices = @transform_8, window_bounds = array<i64: 1, 64>}, {pipeline_mode = #tpu.pipeline_mode<synchronous>, transform_indices = @transform_9, window_bounds = array<i64: 64, 32>}, {pipeline_mode = #tpu.pipeline_mode<synchronous>, transform_indices = @transform_10, window_bounds = array<i64: 1, 32>}, {pipeline_mode = #tpu.pipeline_mode<synchronous>, transform_indices = @transform_11, window_bounds = array<i64: 1, 32>}, {pipeline_mode = #tpu.pipeline_mode<synchronous>, transform_indices = @transform_12, window_bounds = array<i64: 1, 32>}, {transform_indices = @transform_13, window_bounds = array<i64: 1, 8, 32>}]} {
    %c0 = arith.constant 0 : index
    %c0_0 = arith.constant 0 : index
    %c0_1 = arith.constant 0 : index
    %0 = vector.load %arg1[%c0, %c0_0, %c0_1] : memref<1x8x32xf32, #tpu.memory_space<vmem>>, vector<1x8x32xf32>
    %1 = vector.shape_cast %0 : vector<1x8x32xf32> to vector<8x32xf32>
    %c0_2 = arith.constant 0 : index
    %c0_3 = arith.constant 0 : index
    %2 = vector.load %arg3[%c0_2, %c0_3] : memref<1x32xf32, #tpu.memory_space<vmem>>, vector<1x32xf32>
    %c0_4 = arith.constant 0 : index
    %c0_5 = arith.constant 0 : index
    %3 = vector.load %arg2[%c0_4, %c0_5] : memref<32x96xf32, #tpu.memory_space<vmem>>, vector<32x96xf32>
    %cst = arith.constant dense<0.000000e+00> : vector<8x96xf32>
    %4 = tpu.matmul %1, %3, %cst {dimension_numbers = #tpu.dot_dimension_numbers<[1], [0], [0], [1], [0, 0, 1, 1], [], []>} : vector<8x32xf32>, vector<32x96xf32>, vector<8x96xf32> -> vector<8x96xf32>
    %5 = vector.extract_strided_slice %4 {offsets = [0, 0], sizes = [8, 32], strides = [1, 1]} : vector<8x96xf32> to vector<8x32xf32>
    %6 = vector.broadcast %2 : vector<1x32xf32> to vector<8x32xf32>
    %7 = arith.addf %5, %6 : vector<8x32xf32>
    %8 = vector.extract_strided_slice %7 {offsets = [0, 0], sizes = [8, 8], strides = [1, 1]} : vector<8x32xf32> to vector<8x8xf32>
    %c0_6 = arith.constant 0 : index
    %c0_7 = arith.constant 0 : index
    %c0_8 = arith.constant 0 : index
    %9 = vector.load %arg15[%c0_6, %c0_7, %c0_8] : memref<4x8x8xf32, #tpu.memory_space<vmem>>, vector<1x8x8xf32>
    %10 = vector.shape_cast %9 : vector<1x8x8xf32> to vector<8x8xf32>
    %11 = vector.shape_cast %8 : vector<8x8xf32> to vector<1x8x8xf32>
    tpu.vector_store %arg15[%c0_6, %c0_7, %c0_8], %11 {strides = array<i32>} : memref<4x8x8xf32, #tpu.memory_space<vmem>>, vector<1x8x8xf32>,
    %12 = vector.extract_strided_slice %7 {offsets = [0, 8], sizes = [8, 8], strides = [1, 1]} : vector<8x32xf32> to vector<8x8xf32>
    %c1 = arith.constant 1 : index
    %c0_9 = arith.constant 0 : index
    %c0_10 = arith.constant 0 : index
    %13 = vector.load %arg15[%c1, %c0_9, %c0_10] : memref<4x8x8xf32, #tpu.memory_space<vmem>>, vector<1x8x8xf32>
    %14 = vector.shape_cast %13 : vector<1x8x8xf32> to vector<8x8xf32>
    %15 = vector.shape_cast %12 : vector<8x8xf32> to vector<1x8x8xf32>
    tpu.vector_store %arg15[%c1, %c0_9, %c0_10], %15 {strides = array<i32>} : memref<4x8x8xf32, #tpu.memory_space<vmem>>, vector<1x8x8xf32>,
    %16 = vector.extract_strided_slice %7 {offsets = [0, 16], sizes = [8, 8], strides = [1, 1]} : vector<8x32xf32> to vector<8x8xf32>
    %c2 = arith.constant 2 : index
    %c0_11 = arith.constant 0 : index
    %c0_12 = arith.constant 0 : index
    %17 = vector.load %arg15[%c2, %c0_11, %c0_12] : memref<4x8x8xf32, #tpu.memory_space<vmem>>, vector<1x8x8xf32>
    %18 = vector.shape_cast %17 : vector<1x8x8xf32> to vector<8x8xf32>
    %19 = vector.shape_cast %16 : vector<8x8xf32> to vector<1x8x8xf32>
    tpu.vector_store %arg15[%c2, %c0_11, %c0_12], %19 {strides = array<i32>} : memref<4x8x8xf32, #tpu.memory_space<vmem>>, vector<1x8x8xf32>,
    %20 = vector.extract_strided_slice %7 {offsets = [0, 24], sizes = [8, 8], strides = [1, 1]} : vector<8x32xf32> to vector<8x8xf32>
    %c3 = arith.constant 3 : index
    %c0_13 = arith.constant 0 : index
    %c0_14 = arith.constant 0 : index
    %21 = vector.load %arg15[%c3, %c0_13, %c0_14] : memref<4x8x8xf32, #tpu.memory_space<vmem>>, vector<1x8x8xf32>
    %22 = vector.shape_cast %21 : vector<1x8x8xf32> to vector<8x8xf32>
    %23 = vector.shape_cast %20 : vector<8x8xf32> to vector<1x8x8xf32>
    tpu.vector_store %arg15[%c3, %c0_13, %c0_14], %23 {strides = array<i32>} : memref<4x8x8xf32, #tpu.memory_space<vmem>>, vector<1x8x8xf32>,
    %24 = vector.extract_strided_slice %4 {offsets = [0, 32], sizes = [8, 32], strides = [1, 1]} : vector<8x96xf32> to vector<8x32xf32>
    %25 = vector.extract_strided_slice %24 {offsets = [0, 0], sizes = [8, 8], strides = [1, 1]} : vector<8x32xf32> to vector<8x8xf32>
    %c0_15 = arith.constant 0 : index
    %c0_16 = arith.constant 0 : index
    %c0_17 = arith.constant 0 : index
    %26 = vector.load %arg16[%c0_15, %c0_16, %c0_17] : memref<4x8x8xf32, #tpu.memory_space<vmem>>, vector<1x8x8xf32>
    %27 = vector.shape_cast %26 : vector<1x8x8xf32> to vector<8x8xf32>
    %28 = vector.shape_cast %25 : vector<8x8xf32> to vector<1x8x8xf32>
    tpu.vector_store %arg16[%c0_15, %c0_16, %c0_17], %28 {strides = array<i32>} : memref<4x8x8xf32, #tpu.memory_space<vmem>>, vector<1x8x8xf32>,
    %29 = vector.extract_strided_slice %24 {offsets = [0, 8], sizes = [8, 8], strides = [1, 1]} : vector<8x32xf32> to vector<8x8xf32>
    %c1_18 = arith.constant 1 : index
    %c0_19 = arith.constant 0 : index
    %c0_20 = arith.constant 0 : index
    %30 = vector.load %arg16[%c1_18, %c0_19, %c0_20] : memref<4x8x8xf32, #tpu.memory_space<vmem>>, vector<1x8x8xf32>
    %31 = vector.shape_cast %30 : vector<1x8x8xf32> to vector<8x8xf32>
    %32 = vector.shape_cast %29 : vector<8x8xf32> to vector<1x8x8xf32>
    tpu.vector_store %arg16[%c1_18, %c0_19, %c0_20], %32 {strides = array<i32>} : memref<4x8x8xf32, #tpu.memory_space<vmem>>, vector<1x8x8xf32>,
    %33 = vector.extract_strided_slice %24 {offsets = [0, 16], sizes = [8, 8], strides = [1, 1]} : vector<8x32xf32> to vector<8x8xf32>
    %c2_21 = arith.constant 2 : index
    %c0_22 = arith.constant 0 : index
    %c0_23 = arith.constant 0 : index
    %34 = vector.load %arg16[%c2_21, %c0_22, %c0_23] : memref<4x8x8xf32, #tpu.memory_space<vmem>>, vector<1x8x8xf32>
    %35 = vector.shape_cast %34 : vector<1x8x8xf32> to vector<8x8xf32>
    %36 = vector.shape_cast %33 : vector<8x8xf32> to vector<1x8x8xf32>
    tpu.vector_store %arg16[%c2_21, %c0_22, %c0_23], %36 {strides = array<i32>} : memref<4x8x8xf32, #tpu.memory_space<vmem>>, vector<1x8x8xf32>,
    %37 = vector.extract_strided_slice %24 {offsets = [0, 24], sizes = [8, 8], strides = [1, 1]} : vector<8x32xf32> to vector<8x8xf32>
    %c3_24 = arith.constant 3 : index
    %c0_25 = arith.constant 0 : index
    %c0_26 = arith.constant 0 : index
    %38 = vector.load %arg16[%c3_24, %c0_25, %c0_26] : memref<4x8x8xf32, #tpu.memory_space<vmem>>, vector<1x8x8xf32>
    %39 = vector.shape_cast %38 : vector<1x8x8xf32> to vector<8x8xf32>
    %40 = vector.shape_cast %37 : vector<8x8xf32> to vector<1x8x8xf32>
    tpu.vector_store %arg16[%c3_24, %c0_25, %c0_26], %40 {strides = array<i32>} : memref<4x8x8xf32, #tpu.memory_space<vmem>>, vector<1x8x8xf32>,
    %41 = vector.extract_strided_slice %4 {offsets = [0, 64], sizes = [8, 32], strides = [1, 1]} : vector<8x96xf32> to vector<8x32xf32>
    %42 = vector.extract_strided_slice %41 {offsets = [0, 0], sizes = [8, 8], strides = [1, 1]} : vector<8x32xf32> to vector<8x8xf32>
    %c0_27 = arith.constant 0 : index
    %c0_28 = arith.constant 0 : index
    %c0_29 = arith.constant 0 : index
    %43 = vector.load %arg17[%c0_27, %c0_28, %c0_29] : memref<4x8x8xf32, #tpu.memory_space<vmem>>, vector<1x8x8xf32>
    %44 = vector.shape_cast %43 : vector<1x8x8xf32> to vector<8x8xf32>
    %45 = vector.shape_cast %42 : vector<8x8xf32> to vector<1x8x8xf32>
    tpu.vector_store %arg17[%c0_27, %c0_28, %c0_29], %45 {strides = array<i32>} : memref<4x8x8xf32, #tpu.memory_space<vmem>>, vector<1x8x8xf32>,
    %46 = vector.extract_strided_slice %41 {offsets = [0, 8], sizes = [8, 8], strides = [1, 1]} : vector<8x32xf32> to vector<8x8xf32>
    %c1_30 = arith.constant 1 : index
    %c0_31 = arith.constant 0 : index
    %c0_32 = arith.constant 0 : index
    %47 = vector.load %arg17[%c1_30, %c0_31, %c0_32] : memref<4x8x8xf32, #tpu.memory_space<vmem>>, vector<1x8x8xf32>
    %48 = vector.shape_cast %47 : vector<1x8x8xf32> to vector<8x8xf32>
    %49 = vector.shape_cast %46 : vector<8x8xf32> to vector<1x8x8xf32>
    tpu.vector_store %arg17[%c1_30, %c0_31, %c0_32], %49 {strides = array<i32>} : memref<4x8x8xf32, #tpu.memory_space<vmem>>, vector<1x8x8xf32>,
    %50 = vector.extract_strided_slice %41 {offsets = [0, 16], sizes = [8, 8], strides = [1, 1]} : vector<8x32xf32> to vector<8x8xf32>
    %c2_33 = arith.constant 2 : index
    %c0_34 = arith.constant 0 : index
    %c0_35 = arith.constant 0 : index
    %51 = vector.load %arg17[%c2_33, %c0_34, %c0_35] : memref<4x8x8xf32, #tpu.memory_space<vmem>>, vector<1x8x8xf32>
    %52 = vector.shape_cast %51 : vector<1x8x8xf32> to vector<8x8xf32>
    %53 = vector.shape_cast %50 : vector<8x8xf32> to vector<1x8x8xf32>
    tpu.vector_store %arg17[%c2_33, %c0_34, %c0_35], %53 {strides = array<i32>} : memref<4x8x8xf32, #tpu.memory_space<vmem>>, vector<1x8x8xf32>,
    %54 = vector.extract_strided_slice %41 {offsets = [0, 24], sizes = [8, 8], strides = [1, 1]} : vector<8x32xf32> to vector<8x8xf32>
    %c3_36 = arith.constant 3 : index
    %c0_37 = arith.constant 0 : index
    %c0_38 = arith.constant 0 : index
    %55 = vector.load %arg17[%c3_36, %c0_37, %c0_38] : memref<4x8x8xf32, #tpu.memory_space<vmem>>, vector<1x8x8xf32>
    %56 = vector.shape_cast %55 : vector<1x8x8xf32> to vector<8x8xf32>
    %57 = vector.shape_cast %54 : vector<8x8xf32> to vector<1x8x8xf32>
    tpu.vector_store %arg17[%c3_36, %c0_37, %c0_38], %57 {strides = array<i32>} : memref<4x8x8xf32, #tpu.memory_space<vmem>>, vector<1x8x8xf32>,
    %c0_39 = arith.constant 0 : index
    %c0_40 = arith.constant 0 : index
    %58 = vector.load %arg5[%c0_39, %c0_40] : memref<1x32xf32, #tpu.memory_space<vmem>>, vector<1x32xf32>
    %59 = vector.broadcast %58 : vector<1x32xf32> to vector<8x32xf32>
    %60 = arith.addf %1, %59 : vector<8x32xf32>
    %c0_41 = arith.constant 0 : index
    %c0_42 = arith.constant 0 : index
    %61 = vector.load %arg18[%c0_41, %c0_42] : memref<8x32xf32, #tpu.memory_space<vmem>>, vector<8x32xf32>
    tpu.vector_store %arg18[%c0_41, %c0_42], %60 {strides = array<i32>} : memref<8x32xf32, #tpu.memory_space<vmem>>, vector<8x32xf32>,
    %c0_i32 = arith.constant 0 : i32
    %c4_i32 = arith.constant 4 : i32
    %62 = arith.addi %c0_i32, %c4_i32 : i32
    %c1_i32 = arith.constant 1 : i32
    scf.for %arg19 = %c0_i32 to %62 step %c1_i32  : i32 {
      %124 = arith.index_cast %arg19 : i32 to index
      %c0_78 = arith.constant 0 : index
      %c0_79 = arith.constant 0 : index
      %125 = vector.load %arg15[%124, %c0_78, %c0_79] : memref<4x8x8xf32, #tpu.memory_space<vmem>>, vector<1x8x8xf32>
      %126 = vector.shape_cast %125 : vector<1x8x8xf32> to vector<8x8xf32>
      %127 = arith.index_cast %arg19 : i32 to index
      %c0_80 = arith.constant 0 : index
      %c0_81 = arith.constant 0 : index
      %128 = vector.load %arg16[%127, %c0_80, %c0_81] : memref<4x8x8xf32, #tpu.memory_space<vmem>>, vector<1x8x8xf32>
      %129 = vector.shape_cast %128 : vector<1x8x8xf32> to vector<8x8xf32>
      %130 = arith.index_cast %arg19 : i32 to index
      %c0_82 = arith.constant 0 : index
      %c0_83 = arith.constant 0 : index
      %131 = vector.load %arg17[%130, %c0_82, %c0_83] : memref<4x8x8xf32, #tpu.memory_space<vmem>>, vector<1x8x8xf32>
      %132 = vector.shape_cast %131 : vector<1x8x8xf32> to vector<8x8xf32>
      %cst_84 = arith.constant dense<0.000000e+00> : vector<8x8xf32>
      %133 = tpu.matmul %126, %129, %cst_84 {dimension_numbers = #tpu.dot_dimension_numbers<[1], [1], [0], [0], [0, 0, 1, 0], [], []>} : vector<8x8xf32>, vector<8x8xf32>, vector<8x8xf32> -> vector<8x8xf32>
      %cst_85 = arith.constant dense<0xFF800000> : vector<8xf32>
      %134 = vector.multi_reduction <maximumf>, %133, %cst_85 [1] : vector<8x8xf32> to vector<8xf32>
      %135 = vector.shape_cast %134 : vector<8xf32> to vector<8x1xf32>
      %136 = vector.broadcast %135 : vector<8x1xf32> to vector<8x8xf32>
      %137 = arith.subf %133, %136 : vector<8x8xf32>
      %138 = math.exp %137 : vector<8x8xf32>
      %cst_86 = arith.constant dense<0.000000e+00> : vector<8xf32>
      %139 = vector.multi_reduction <add>, %138, %cst_86 [1] : vector<8x8xf32> to vector<8xf32>
      %140 = vector.shape_cast %139 : vector<8xf32> to vector<8x1xf32>
      %141 = tpu.reciprocal %140 : vector<8x1xf32> -> vector<8x1xf32>
      %cst_87 = arith.constant dense<0.000000e+00> : vector<8x8xf32>
      %142 = tpu.matmul %138, %132, %cst_87 {dimension_numbers = #tpu.dot_dimension_numbers<[1], [0], [0], [1], [0, 0, 1, 1], [], []>} : vector<8x8xf32>, vector<8x8xf32>, vector<8x8xf32> -> vector<8x8xf32>
      %143 = vector.broadcast %141 : vector<8x1xf32> to vector<8x8xf32>
      %144 = arith.mulf %142, %143 : vector<8x8xf32>
      %c0_88 = arith.constant 0 : index
      %c0_89 = arith.constant 0 : index
      %145 = vector.load %arg18[%c0_88, %c0_89] : memref<8x32xf32, #tpu.memory_space<vmem>>, vector<8x32xf32>
      %146 = arith.index_cast %arg19 : i32 to index
      %c0_90 = arith.constant 0 : index
      %c0_91 = arith.constant 0 : index
      %147 = vector.load %arg4[%146, %c0_90, %c0_91] : memref<4x8x32xf32, #tpu.memory_space<vmem>>, vector<1x8x32xf32>
      %148 = vector.shape_cast %147 : vector<1x8x32xf32> to vector<8x32xf32>
      %cst_92 = arith.constant dense<0.000000e+00> : vector<8x32xf32>
      %149 = tpu.matmul %144, %148, %cst_92 {dimension_numbers = #tpu.dot_dimension_numbers<[1], [0], [0], [1], [0, 0, 1, 1], [], []>} : vector<8x8xf32>, vector<8x32xf32>, vector<8x32xf32> -> vector<8x32xf32>
      %150 = arith.addf %145, %149 : vector<8x32xf32>
      %c0_93 = arith.constant 0 : index
      %c0_94 = arith.constant 0 : index
      %151 = vector.load %arg18[%c0_93, %c0_94] : memref<8x32xf32, #tpu.memory_space<vmem>>, vector<8x32xf32>
      tpu.vector_store %arg18[%c0_93, %c0_94], %150 {strides = array<i32>} : memref<8x32xf32, #tpu.memory_space<vmem>>, vector<8x32xf32>,
    }
    %c4_i32_43 = arith.constant 4 : i32
    %c0_44 = arith.constant 0 : index
    %c0_45 = arith.constant 0 : index
    %63 = vector.load %arg18[%c0_44, %c0_45] : memref<8x32xf32, #tpu.memory_space<vmem>>, vector<8x32xf32>
    %c0_46 = arith.constant 0 : index
    %c0_47 = arith.constant 0 : index
    %64 = vector.load %arg6[%c0_46, %c0_47] : memref<1x32xf32, #tpu.memory_space<vmem>>, vector<1x32xf32>
    %c0_48 = arith.constant 0 : index
    %c0_49 = arith.constant 0 : index
    %65 = vector.load %arg7[%c0_48, %c0_49] : memref<1x32xf32, #tpu.memory_space<vmem>>, vector<1x32xf32>
    %cst_50 = arith.constant dense<0.000000e+00> : vector<8xf32>
    %66 = vector.multi_reduction <add>, %63, %cst_50 [1] : vector<8x32xf32> to vector<8xf32>
    %67 = vector.shape_cast %66 : vector<8xf32> to vector<8x1xf32>
    %cst_51 = arith.constant 3.200000e+01 : f32
    %68 = vector.broadcast %cst_51 : f32 to vector<8x1xf32>
    %69 = arith.divf %67, %68 : vector<8x1xf32>
    %70 = vector.broadcast %69 : vector<8x1xf32> to vector<8x32xf32>
    %71 = arith.subf %63, %70 : vector<8x32xf32>
    %72 = arith.mulf %71, %71 : vector<8x32xf32>
    %cst_52 = arith.constant dense<0.000000e+00> : vector<8xf32>
    %73 = vector.multi_reduction <add>, %72, %cst_52 [1] : vector<8x32xf32> to vector<8xf32>
    %74 = vector.shape_cast %73 : vector<8xf32> to vector<8x1xf32>
    %cst_53 = arith.constant 3.200000e+01 : f32
    %75 = vector.broadcast %cst_53 : f32 to vector<8x1xf32>
    %76 = arith.divf %74, %75 : vector<8x1xf32>
    %cst_54 = arith.constant 9.99999974E-6 : f32
    %77 = vector.broadcast %cst_54 : f32 to vector<8x1xf32>
    %78 = arith.addf %76, %77 : vector<8x1xf32>
    %79 = math.rsqrt %78 : vector<8x1xf32>
    %80 = vector.broadcast %79 : vector<8x1xf32> to vector<8x32xf32>
    %81 = arith.mulf %71, %80 : vector<8x32xf32>
    %82 = vector.broadcast %64 : vector<1x32xf32> to vector<8x32xf32>
    %83 = arith.mulf %81, %82 : vector<8x32xf32>
    %84 = vector.broadcast %65 : vector<1x32xf32> to vector<8x32xf32>
    %85 = arith.addf %83, %84 : vector<8x32xf32>
    %c0_55 = arith.constant 0 : index
    %c0_56 = arith.constant 0 : index
    %86 = vector.load %arg8[%c0_55, %c0_56] : memref<32x64xf32, #tpu.memory_space<vmem>>, vector<32x64xf32>
    %cst_57 = arith.constant dense<0.000000e+00> : vector<8x64xf32>
    %87 = tpu.matmul %85, %86, %cst_57 {dimension_numbers = #tpu.dot_dimension_numbers<[1], [0], [0], [1], [0, 0, 1, 1], [], []>} : vector<8x32xf32>, vector<32x64xf32>, vector<8x64xf32> -> vector<8x64xf32>
    %c0_58 = arith.constant 0 : index
    %c0_59 = arith.constant 0 : index
    %88 = vector.load %arg9[%c0_58, %c0_59] : memref<1x64xf32, #tpu.memory_space<vmem>>, vector<1x64xf32>
    %89 = vector.broadcast %88 : vector<1x64xf32> to vector<8x64xf32>
    %90 = arith.addf %87, %89 : vector<8x64xf32>
    %cst_60 = arith.constant 0.000000e+00 : f32
    %91 = vector.broadcast %cst_60 : f32 to vector<8x64xf32>
    %92 = arith.maximumf %90, %91 : vector<8x64xf32>
    %c0_61 = arith.constant 0 : index
    %c0_62 = arith.constant 0 : index
    %93 = vector.load %arg10[%c0_61, %c0_62] : memref<64x32xf32, #tpu.memory_space<vmem>>, vector<64x32xf32>
    %cst_63 = arith.constant dense<0.000000e+00> : vector<8x32xf32>
    %94 = tpu.matmul %92, %93, %cst_63 {dimension_numbers = #tpu.dot_dimension_numbers<[1], [0], [0], [1], [0, 0, 1, 1], [], []>} : vector<8x64xf32>, vector<64x32xf32>, vector<8x32xf32> -> vector<8x32xf32>
    %c0_64 = arith.constant 0 : index
    %c0_65 = arith.constant 0 : index
    %95 = vector.load %arg11[%c0_64, %c0_65] : memref<1x32xf32, #tpu.memory_space<vmem>>, vector<1x32xf32>
    %96 = vector.broadcast %95 : vector<1x32xf32> to vector<8x32xf32>
    %97 = arith.addf %94, %96 : vector<8x32xf32>
    %98 = arith.addf %85, %97 : vector<8x32xf32>
    %c0_66 = arith.constant 0 : index
    %c0_67 = arith.constant 0 : index
    %99 = vector.load %arg12[%c0_66, %c0_67] : memref<1x32xf32, #tpu.memory_space<vmem>>, vector<1x32xf32>
    %c0_68 = arith.constant 0 : index
    %c0_69 = arith.constant 0 : index
    %100 = vector.load %arg13[%c0_68, %c0_69] : memref<1x32xf32, #tpu.memory_space<vmem>>, vector<1x32xf32>
    %cst_70 = arith.constant dense<0.000000e+00> : vector<8xf32>
    %101 = vector.multi_reduction <add>, %98, %cst_70 [1] : vector<8x32xf32> to vector<8xf32>
    %102 = vector.shape_cast %101 : vector<8xf32> to vector<8x1xf32>
    %cst_71 = arith.constant 3.200000e+01 : f32
    %103 = vector.broadcast %cst_71 : f32 to vector<8x1xf32>
    %104 = arith.divf %102, %103 : vector<8x1xf32>
    %105 = vector.broadcast %104 : vector<8x1xf32> to vector<8x32xf32>
    %106 = arith.subf %98, %105 : vector<8x32xf32>
    %107 = arith.mulf %106, %106 : vector<8x32xf32>
    %cst_72 = arith.constant dense<0.000000e+00> : vector<8xf32>
    %108 = vector.multi_reduction <add>, %107, %cst_72 [1] : vector<8x32xf32> to vector<8xf32>
    %109 = vector.shape_cast %108 : vector<8xf32> to vector<8x1xf32>
    %cst_73 = arith.constant 3.200000e+01 : f32
    %110 = vector.broadcast %cst_73 : f32 to vector<8x1xf32>
    %111 = arith.divf %109, %110 : vector<8x1xf32>
    %cst_74 = arith.constant 9.99999974E-6 : f32
    %112 = vector.broadcast %cst_74 : f32 to vector<8x1xf32>
    %113 = arith.addf %111, %112 : vector<8x1xf32>
    %114 = math.rsqrt %113 : vector<8x1xf32>
    %115 = vector.broadcast %114 : vector<8x1xf32> to vector<8x32xf32>
    %116 = arith.mulf %106, %115 : vector<8x32xf32>
    %117 = vector.broadcast %99 : vector<1x32xf32> to vector<8x32xf32>
    %118 = arith.mulf %116, %117 : vector<8x32xf32>
    %119 = vector.broadcast %100 : vector<1x32xf32> to vector<8x32xf32>
    %120 = arith.addf %118, %119 : vector<8x32xf32>
    %c0_75 = arith.constant 0 : index
    %c0_76 = arith.constant 0 : index
    %c0_77 = arith.constant 0 : index
    %121 = vector.load %arg14[%c0_75, %c0_76, %c0_77] : memref<1x8x32xf32, #tpu.memory_space<vmem>>, vector<1x8x32xf32>
    %122 = vector.shape_cast %121 : vector<1x8x32xf32> to vector<8x32xf32>
    %123 = vector.shape_cast %120 : vector<8x32xf32> to vector<1x8x32xf32>
    tpu.vector_store %arg14[%c0_75, %c0_76, %c0_77], %123 {strides = array<i32>} : memref<1x8x32xf32, #tpu.memory_space<vmem>>, vector<1x8x32xf32>,
    return
  }
  func.func @transform_0(%arg0: i32) -> (i32, i32, i32) {
    %c0_i32 = arith.constant 0 : i32
    %c0_i32_0 = arith.constant 0 : i32
    %c0_i32_1 = arith.constant 0 : i32
    return %arg0, %c0_i32, %c0_i32_0 : i32, i32, i32
  }
  func.func @transform_1(%arg0: i32) -> (i32, i32) {
    %c0_i32 = arith.constant 0 : i32
    %c0_i32_0 = arith.constant 0 : i32
    %c0_i32_1 = arith.constant 0 : i32
    return %c0_i32, %c0_i32_0 : i32, i32
  }
  func.func @transform_2(%arg0: i32) -> (i32, i32) {
    %c0_i32 = arith.constant 0 : i32
    %c0_i32_0 = arith.constant 0 : i32
    %c0_i32_1 = arith.constant 0 : i32
    return %c0_i32, %c0_i32_0 : i32, i32
  }
  func.func @transform_3(%arg0: i32) -> (i32, i32, i32) {
    %c0_i32 = arith.constant 0 : i32
    %c0_i32_0 = arith.constant 0 : i32
    %c0_i32_1 = arith.constant 0 : i32
    %c0_i32_2 = arith.constant 0 : i32
    return %c0_i32, %c0_i32_0, %c0_i32_1 : i32, i32, i32
  }
  func.func @transform_4(%arg0: i32) -> (i32, i32) {
    %c0_i32 = arith.constant 0 : i32
    %c0_i32_0 = arith.constant 0 : i32
    %c0_i32_1 = arith.constant 0 : i32
    return %c0_i32, %c0_i32_0 : i32, i32
  }
  func.func @transform_5(%arg0: i32) -> (i32, i32) {
    %c0_i32 = arith.constant 0 : i32
    %c0_i32_0 = arith.constant 0 : i32
    %c0_i32_1 = arith.constant 0 : i32
    return %c0_i32, %c0_i32_0 : i32, i32
  }
  func.func @transform_6(%arg0: i32) -> (i32, i32) {
    %c0_i32 = arith.constant 0 : i32
    %c0_i32_0 = arith.constant 0 : i32
    %c0_i32_1 = arith.constant 0 : i32
    return %c0_i32, %c0_i32_0 : i32, i32
  }
  func.func @transform_7(%arg0: i32) -> (i32, i32) {
    %c0_i32 = arith.constant 0 : i32
    %c0_i32_0 = arith.constant 0 : i32
    %c0_i32_1 = arith.constant 0 : i32
    return %c0_i32, %c0_i32_0 : i32, i32
  }
  func.func @transform_8(%arg0: i32) -> (i32, i32) {
    %c0_i32 = arith.constant 0 : i32
    %c0_i32_0 = arith.constant 0 : i32
    %c0_i32_1 = arith.constant 0 : i32
    return %c0_i32, %c0_i32_0 : i32, i32
  }
  func.func @transform_9(%arg0: i32) -> (i32, i32) {
    %c0_i32 = arith.constant 0 : i32
    %c0_i32_0 = arith.constant 0 : i32
    %c0_i32_1 = arith.constant 0 : i32
    return %c0_i32, %c0_i32_0 : i32, i32
  }
  func.func @transform_10(%arg0: i32) -> (i32, i32) {
    %c0_i32 = arith.constant 0 : i32
    %c0_i32_0 = arith.constant 0 : i32
    %c0_i32_1 = arith.constant 0 : i32
    return %c0_i32, %c0_i32_0 : i32, i32
  }
  func.func @transform_11(%arg0: i32) -> (i32, i32) {
    %c0_i32 = arith.constant 0 : i32
    %c0_i32_0 = arith.constant 0 : i32
    %c0_i32_1 = arith.constant 0 : i32
    return %c0_i32, %c0_i32_0 : i32, i32
  }
  func.func @transform_12(%arg0: i32) -> (i32, i32) {
    %c0_i32 = arith.constant 0 : i32
    %c0_i32_0 = arith.constant 0 : i32
    %c0_i32_1 = arith.constant 0 : i32
    return %c0_i32, %c0_i32_0 : i32, i32
  }
  func.func @transform_13(%arg0: i32) -> (i32, i32, i32) {
    %c0_i32 = arith.constant 0 : i32
    %c0_i32_0 = arith.constant 0 : i32
    %c0_i32_1 = arith.constant 0 : i32
    return %arg0, %c0_i32, %c0_i32_0 : i32, i32, i32
  }
}

</mosaic_0001>

<llo_original>
// kernel: tpu_custom_call.1
$region0: #{tpu_custom_call.1}
  #allocation0 [shape = 'u32[]', space=smem, size = 0x4, offset = 0x4, fixed_abs, tag = 'smem constant byte address 0x4 - core index']
  #allocation1 [shape = 'u32[144,128]{1,0:T(1,128)}', space=vmem, size = 0x12000, scoped, tag = 'internal scratch']
  #allocation2 [shape = 'f32[4,8,8]{2,1,0:T(8,128)}', space=vmem, size = 0x4000, scoped, tag = 'scratch operand']
  #allocation3 [shape = 'f32[4,8,8]{2,1,0:T(8,128)}', space=vmem, size = 0x4000, scoped, tag = 'scratch operand']
  #allocation4 [shape = 'f32[4,8,8]{2,1,0:T(8,128)}', space=vmem, size = 0x4000, scoped, tag = 'scratch operand']
  #allocation5 [shape = 'f32[8,32]{1,0:T(8,128)}', space=vmem, size = 0x1000, scoped, tag = 'scratch operand']
  %s0 = inlined_call_operand.hbm [shape: f32[2,8,32], index: 0, kind: input, shape index: {}]
  %s1 = inlined_call_operand.hbm [shape: f32[32,96], index: 1, kind: input, shape index: {}]
  %s2 = inlined_call_operand.hbm [shape: f32[1,32], index: 2, kind: input, shape index: {}]
  %s3 = inlined_call_operand.hbm [shape: f32[4,8,32], index: 3, kind: input, shape index: {}]
  %s4 = inlined_call_operand.hbm [shape: f32[1,32], index: 4, kind: input, shape index: {}]
  %s5 = inlined_call_operand.hbm [shape: f32[1,32], index: 5, kind: input, shape index: {}]
  %s6 = inlined_call_operand.hbm [shape: f32[1,32], index: 6, kind: input, shape index: {}]
  %s7 = inlined_call_operand.hbm [shape: f32[32,64], index: 7, kind: input, shape index: {}]
  %s8 = inlined_call_operand.hbm [shape: f32[1,64], index: 8, kind: input, shape index: {}]
  %s9 = inlined_call_operand.hbm [shape: f32[64,32], index: 9, kind: input, shape index: {}]
  %s10 = inlined_call_operand.hbm [shape: f32[1,32], index: 10, kind: input, shape index: {}]
  %s11 = inlined_call_operand.hbm [shape: f32[1,32], index: 11, kind: input, shape index: {}]
  %s12 = inlined_call_operand.hbm [shape: f32[1,32], index: 12, kind: input, shape index: {}]
  %s13 = inlined_call_operand.hbm [shape: f32[2,8,32], index: 13, kind: output, shape index: {}]
  %s14 = sld [smem:[#allocation0]]
  $region144: #{tpu_custom_call.1} parent=0
    _
  %s16 = ssub.s32 1, %s14
  %s17 = scalar_select 0, %s16, %s14
  $region1: #{tpu_custom_call.1} parent=0
    #allocation6 [shape = 'u8[8192]{0}', space=vmem, size = 0x2000, scoped, tag = 'input window, operand 0']
    #allocation7 [shape = 's32[2]{0}', space=sflag, size = 0x8, scoped, tag = 'scoped memory for tpu_custom_call.1']
    #allocation8 [shape = 's32[2]{0}', space=sflag, size = 0x8, scoped, tag = 'scoped memory for tpu_custom_call.1']
    #allocation9 [shape = 'u8[16384]{0}', space=vmem, size = 0x4000, scoped, tag = 'input window, operand 1, single buffered']
    #allocation10 [shape = 's32[1]{0}', space=sflag, size = 0x4, scoped, tag = 'scoped memory for tpu_custom_call.1']
    #allocation11 [shape = 'u8[512]{0}', space=vmem, size = 0x400, scoped, tag = 'input window, operand 2, single buffered']
    #allocation12 [shape = 'u8[16384]{0}', space=vmem, size = 0x4000, scoped, tag = 'input window, operand 3, single buffered']
    #allocation13 [shape = 's32[1]{0}', space=sflag, size = 0x4, scoped, tag = 'scoped memory for tpu_custom_call.1']
    #allocation14 [shape = 'u8[512]{0}', space=vmem, size = 0x400, scoped, tag = 'input window, operand 4, single buffered']
    #allocation15 [shape = 'u8[512]{0}', space=vmem, size = 0x400, scoped, tag = 'input window, operand 5, single buffered']
    #allocation16 [shape = 's32[1]{0}', space=sflag, size = 0x4, scoped, tag = 'scoped memory for tpu_custom_call.1']
    #allocation17 [shape = 'u8[512]{0}', space=vmem, size = 0x400, scoped, tag = 'input window, operand 6, single buffered']
    #allocation18 [shape = 'u8[16384]{0}', space=vmem, size = 0x4000, scoped, tag = 'input window, operand 7, single buffered']
    #allocation19 [shape = 's32[1]{0}', space=sflag, size = 0x4, scoped, tag = 'scoped memory for tpu_custom_call.1']
    #allocation20 [shape = 'u8[512]{0}', space=vmem, size = 0x400, scoped, tag = 'input window, operand 8, single buffered']
    #allocation21 [shape = 'u8[32768]{0}', space=vmem, size = 0x8000, scoped, tag = 'input window, operand 9, single buffered']
    #allocation22 [shape = 's32[1]{0}', space=sflag, size = 0x4, scoped, tag = 'scoped memory for tpu_custom_call.1']
    #allocation23 [shape = 'u8[512]{0}', space=vmem, size = 0x400, scoped, tag = 'input window, operand 10, single buffered']
    #allocation24 [shape = 'u8[512]{0}', space=vmem, size = 0x400, scoped, tag = 'input window, operand 11, single buffered']
    #allocation25 [shape = 's32[1]{0}', space=sflag, size = 0x4, scoped, tag = 'scoped memory for tpu_custom_call.1']
    #allocation26 [shape = 'u8[512]{0}', space=vmem, size = 0x400, scoped, tag = 'input window, operand 12, single buffered']
    #allocation27 [shape = 'u8[8192]{0}', space=vmem, size = 0x2000, scoped, tag = 'output window, operand 0']
    %18 = vsyncpa [#allocation7], 0
    %s19 = scalar_lea.sflag [#allocation7], 1
    %20 = vsyncpa %s19, 0
    %21 = vsyncpa [#allocation10], 0
    %22 = vsyncpa [#allocation13], 0
    %23 = vsyncpa [#allocation16], 0
    %24 = vsyncpa [#allocation19], 0
    %25 = vsyncpa [#allocation22], 0
    %26 = vsyncpa [#allocation25], 0
    %27 = vsyncpa [#allocation8], 0
    %s28 = scalar_lea.sflag [#allocation8], 1
    %29 = vsyncpa %s28, 0
    loop: start=0, step=1, limit=4
    $region2: #{tpu_custom_call.1} parent=1 // loop_pre_header
      _
    $region3: #{tpu_custom_call.1} parent=1 // loop_header
      %s31 = sphi 0, %s35
      %p32 = scmp.ge.s32.totalorder %s31, 4
      %s41 = sphi 0, %s43
      %s44 = sphi 0, %s41
      %s45 = sphi 0, %s44
      %s61 = sphi 0, %s45
      %s65 = sphi 0, %s65
      %s67 = sphi 0, %s65
      %s68 = sphi 0, %s67
      %s82 = sphi 0, %s68
      %s86 = sphi 0, %s86
      %s88 = sphi 0, %s86
      %s89 = sphi 0, %s88
      %s103 = sphi 0, %s89
      %s107 = sphi 0, %s107
      %s109 = sphi 0, %s107
      %s110 = sphi 0, %s109
      %s124 = sphi 0, %s110
      %s128 = sphi 0, %s128
      %s130 = sphi 0, %s128
      %s131 = sphi 0, %s130
      %s145 = sphi 0, %s131
      %s149 = sphi 0, %s149
      %s151 = sphi 0, %s149
      %s152 = sphi 0, %s151
      %s166 = sphi 0, %s152
      %s170 = sphi 0, %s170
      %s172 = sphi 0, %s170
      %s173 = sphi 0, %s172
      %s187 = sphi 0, %s173
      %s191 = sphi 0, %s191
      %s193 = sphi 0, %s191
      %s194 = sphi 0, %s193
      %s208 = sphi 0, %s194
      %s212 = sphi 0, %s212
      %s214 = sphi 0, %s212
      %s215 = sphi 0, %s214
      %s229 = sphi 0, %s215
      %s233 = sphi 0, %s233
      %s235 = sphi 0, %s233
      %s236 = sphi 0, %s235
      %s250 = sphi 0, %s236
      %s254 = sphi 0, %s254
      %s256 = sphi 0, %s254
      %s257 = sphi 0, %s256
      %s271 = sphi 0, %s257
      %s275 = sphi 0, %s275
      %s277 = sphi 0, %s275
      %s278 = sphi 0, %s277
      %s292 = sphi 0, %s278
      %s296 = sphi 0, %s296
      %s298 = sphi 0, %s296
      %s299 = sphi 0, %s298
      %s313 = sphi 0, %s299
      %s319 = sphi 0, %s321
      %s322 = sphi 0, %s319
      %s323 = sphi 0, %s322
      %s339 = sphi 0, %s323
    $region4: #{tpu_custom_call.1} parent=1 // loop_header_branch
      %34 = sbr.rel (%p32) target = $region8
    $region5: #{tpu_custom_call.1} parent=1 // loop_body
      %s36 = ssub.s32 %s31, 1
      %s37 = ssub.s32 %s31, 2
      %s38 = sadd.s32 %s31, 1
      %s39 = ssub.s32 %s31, %s38
      %p40 = scmp.eq.s32.totalorder %s39, 0
      %s42 = sadd.s32 %s41, 1
      %s43 = scalar_select %p40, %s41, %s42
      %p46 = pneg %p40
      %p47 = scmp.eq.s32.totalorder %s31, 1
      %p48 = por %p46, %p47
      %p49 = scmp.ne.s32.totalorder %s41, %s44
      %p50 = scmp.eq.s32.totalorder %s31, 0
      %p51 = por %p49, %p50
      %p52 = scmp.ne.s32.totalorder %s41, %s44
      %p53 = scmp.eq.s32.totalorder %s36, 1
      %p54 = por %p52, %p53
      %p55 = scmp.ne.s32.totalorder %s44, %s45
      %p56 = scmp.eq.s32.totalorder %s36, 0
      %p57 = por %p55, %p56
      %p58 = scmp.ne.s32.totalorder %s44, %s45
      %p59 = scmp.eq.s32.totalorder %s37, 1
      %p60 = por %p58, %p59
      %p62 = scmp.ne.s32.totalorder %s45, %s61
      %p63 = scmp.eq.s32.totalorder %s37, 0
      %p64 = por %p62, %p63
      %s66 = sadd.s32 %s65, 1
      %p69 = scmp.eq.s32.totalorder %s31, 1
      %p70 = scmp.ne.s32.totalorder %s65, %s67
      %p71 = scmp.eq.s32.totalorder %s31, 0
      %p72 = por %p70, %p71
      %p73 = scmp.ne.s32.totalorder %s65, %s67
      %p74 = scmp.eq.s32.totalorder %s36, 1
      %p75 = por %p73, %p74
      %p76 = scmp.ne.s32.totalorder %s67, %s68
      %p77 = scmp.eq.s32.totalorder %s36, 0
      %p78 = por %p76, %p77
      %p79 = scmp.ne.s32.totalorder %s67, %s68
      %p80 = scmp.eq.s32.totalorder %s37, 1
      %p81 = por %p79, %p80
      %p83 = scmp.ne.s32.totalorder %s68, %s82
      %p84 = scmp.eq.s32.totalorder %s37, 0
      %p85 = por %p83, %p84
      %s87 = sadd.s32 %s86, 1
      %p90 = scmp.eq.s32.totalorder %s31, 1
      %p91 = scmp.ne.s32.totalorder %s86, %s88
      %p92 = scmp.eq.s32.totalorder %s31, 0
      %p93 = por %p91, %p92
      %p94 = scmp.ne.s32.totalorder %s86, %s88
      %p95 = scmp.eq.s32.totalorder %s36, 1
      %p96 = por %p94, %p95
      %p97 = scmp.ne.s32.totalorder %s88, %s89
      %p98 = scmp.eq.s32.totalorder %s36, 0
      %p99 = por %p97, %p98
      %p100 = scmp.ne.s32.totalorder %s88, %s89
      %p101 = scmp.eq.s32.totalorder %s37, 1
      %p102 = por %p100, %p101
      %p104 = scmp.ne.s32.totalorder %s89, %s103
      %p105 = scmp.eq.s32.totalorder %s37, 0
      %p106 = por %p104, %p105
      %s108 = sadd.s32 %s107, 1
      %p111 = scmp.eq.s32.totalorder %s31, 1
      %p112 = scmp.ne.s32.totalorder %s107, %s109
      %p113 = scmp.eq.s32.totalorder %s31, 0
      %p114 = por %p112, %p113
      %p115 = scmp.ne.s32.totalorder %s107, %s109
      %p116 = scmp.eq.s32.totalorder %s36, 1
      %p117 = por %p115, %p116
      %p118 = scmp.ne.s32.totalorder %s109, %s110
      %p119 = scmp.eq.s32.totalorder %s36, 0
      %p120 = por %p118, %p119
      %p121 = scmp.ne.s32.totalorder %s109, %s110
      %p122 = scmp.eq.s32.totalorder %s37, 1
      %p123 = por %p121, %p122
      %p125 = scmp.ne.s32.totalorder %s110, %s124
      %p126 = scmp.eq.s32.totalorder %s37, 0
      %p127 = por %p125, %p126
      %s129 = sadd.s32 %s128, 1
      %p132 = scmp.eq.s32.totalorder %s31, 1
      %p133 = scmp.ne.s32.totalorder %s128, %s130
      %p134 = scmp.eq.s32.totalorder %s31, 0
      %p135 = por %p133, %p134
      %p136 = scmp.ne.s32.totalorder %s128, %s130
      %p137 = scmp.eq.s32.totalorder %s36, 1
      %p138 = por %p136, %p137
      %p139 = scmp.ne.s32.totalorder %s130, %s131
      %p140 = scmp.eq.s32.totalorder %s36, 0
      %p141 = por %p139, %p140
      %p142 = scmp.ne.s32.totalorder %s130, %s131
      %p143 = scmp.eq.s32.totalorder %s37, 1
      %p144 = por %p142, %p143
      %p146 = scmp.ne.s32.totalorder %s131, %s145
      %p147 = scmp.eq.s32.totalorder %s37, 0
      %p148 = por %p146, %p147
      %s150 = sadd.s32 %s149, 1
      %p153 = scmp.eq.s32.totalorder %s31, 1
      %p154 = scmp.ne.s32.totalorder %s149, %s151
      %p155 = scmp.eq.s32.totalorder %s31, 0
      %p156 = por %p154, %p155
      %p157 = scmp.ne.s32.totalorder %s149, %s151
      %p158 = scmp.eq.s32.totalorder %s36, 1
      %p159 = por %p157, %p158
      %p160 = scmp.ne.s32.totalorder %s151, %s152
      %p161 = scmp.eq.s32.totalorder %s36, 0
      %p162 = por %p160, %p161
      %p163 = scmp.ne.s32.totalorder %s151, %s152
      %p164 = scmp.eq.s32.totalorder %s37, 1
      %p165 = por %p163, %p164
      %p167 = scmp.ne.s32.totalorder %s152, %s166
      %p168 = scmp.eq.s32.totalorder %s37, 0
      %p169 = por %p167, %p168
      %s171 = sadd.s32 %s170, 1
      %p174 = scmp.eq.s32.totalorder %s31, 1
      %p175 = scmp.ne.s32.totalorder %s170, %s172
      %p176 = scmp.eq.s32.totalorder %s31, 0
      %p177 = por %p175, %p176
      %p178 = scmp.ne.s32.totalorder %s170, %s172
      %p179 = scmp.eq.s32.totalorder %s36, 1
      %p180 = por %p178, %p179
      %p181 = scmp.ne.s32.totalorder %s172, %s173
      %p182 = scmp.eq.s32.totalorder %s36, 0
      %p183 = por %p181, %p182
      %p184 = scmp.ne.s32.totalorder %s172, %s173
      %p185 = scmp.eq.s32.totalorder %s37, 1
      %p186 = por %p184, %p185
      %p188 = scmp.ne.s32.totalorder %s173, %s187
      %p189 = scmp.eq.s32.totalorder %s37, 0
      %p190 = por %p188, %p189
      %s192 = sadd.s32 %s191, 1
      %p195 = scmp.eq.s32.totalorder %s31, 1
      %p196 = scmp.ne.s32.totalorder %s191, %s193
      %p197 = scmp.eq.s32.totalorder %s31, 0
      %p198 = por %p196, %p197
      %p199 = scmp.ne.s32.totalorder %s191, %s193
      %p200 = scmp.eq.s32.totalorder %s36, 1
      %p201 = por %p199, %p200
      %p202 = scmp.ne.s32.totalorder %s193, %s194
      %p203 = scmp.eq.s32.totalorder %s36, 0
      %p204 = por %p202, %p203
      %p205 = scmp.ne.s32.totalorder %s193, %s194
      %p206 = scmp.eq.s32.totalorder %s37, 1
      %p207 = por %p205, %p206
      %p209 = scmp.ne.s32.totalorder %s194, %s208
      %p210 = scmp.eq.s32.totalorder %s37, 0
      %p211 = por %p209, %p210
      %s213 = sadd.s32 %s212, 1
      %p216 = scmp.eq.s32.totalorder %s31, 1
      %p217 = scmp.ne.s32.totalorder %s212, %s214
      %p218 = scmp.eq.s32.totalorder %s31, 0
      %p219 = por %p217, %p218
      %p220 = scmp.ne.s32.totalorder %s212, %s214
      %p221 = scmp.eq.s32.totalorder %s36, 1
      %p222 = por %p220, %p221
      %p223 = scmp.ne.s32.totalorder %s214, %s215
      %p224 = scmp.eq.s32.totalorder %s36, 0
      %p225 = por %p223, %p224
      %p226 = scmp.ne.s32.totalorder %s214, %s215
      %p227 = scmp.eq.s32.totalorder %s37, 1
      %p228 = por %p226, %p227
      %p230 = scmp.ne.s32.totalorder %s215, %s229
      %p231 = scmp.eq.s32.totalorder %s37, 0
      %p232 = por %p230, %p231
      %s234 = sadd.s32 %s233, 1
      %p237 = scmp.eq.s32.totalorder %s31, 1
      %p238 = scmp.ne.s32.totalorder %s233, %s235
      %p239 = scmp.eq.s32.totalorder %s31, 0
      %p240 = por %p238, %p239
      %p241 = scmp.ne.s32.totalorder %s233, %s235
      %p242 = scmp.eq.s32.totalorder %s36, 1
      %p243 = por %p241, %p242
      %p244 = scmp.ne.s32.totalorder %s235, %s236
      %p245 = scmp.eq.s32.totalorder %s36, 0
      %p246 = por %p244, %p245
      %p247 = scmp.ne.s32.totalorder %s235, %s236
      %p248 = scmp.eq.s32.totalorder %s37, 1
      %p249 = por %p247, %p248
      %p251 = scmp.ne.s32.totalorder %s236, %s250
      %p252 = scmp.eq.s32.totalorder %s37, 0
      %p253 = por %p251, %p252
      %s255 = sadd.s32 %s254, 1
      %p258 = scmp.eq.s32.totalorder %s31, 1
      %p259 = scmp.ne.s32.totalorder %s254, %s256
      %p260 = scmp.eq.s32.totalorder %s31, 0
      %p261 = por %p259, %p260
      %p262 = scmp.ne.s32.totalorder %s254, %s256
      %p263 = scmp.eq.s32.totalorder %s36, 1
      %p264 = por %p262, %p263
      %p265 = scmp.ne.s32.totalorder %s256, %s257
      %p266 = scmp.eq.s32.totalorder %s36, 0
      %p267 = por %p265, %p266
      %p268 = scmp.ne.s32.totalorder %s256, %s257
      %p269 = scmp.eq.s32.totalorder %s37, 1
      %p270 = por %p268, %p269
      %p272 = scmp.ne.s32.totalorder %s257, %s271
      %p273 = scmp.eq.s32.totalorder %s37, 0
      %p274 = por %p272, %p273
      %s276 = sadd.s32 %s275, 1
      %p279 = scmp.eq.s32.totalorder %s31, 1
      %p280 = scmp.ne.s32.totalorder %s275, %s277
      %p281 = scmp.eq.s32.totalorder %s31, 0
      %p282 = por %p280, %p281
      %p283 = scmp.ne.s32.totalorder %s275, %s277
      %p284 = scmp.eq.s32.totalorder %s36, 1
      %p285 = por %p283, %p284
      %p286 = scmp.ne.s32.totalorder %s277, %s278
      %p287 = scmp.eq.s32.totalorder %s36, 0
      %p288 = por %p286, %p287
      %p289 = scmp.ne.s32.totalorder %s277, %s278
      %p290 = scmp.eq.s32.totalorder %s37, 1
      %p291 = por %p289, %p290
      %p293 = scmp.ne.s32.totalorder %s278, %s292
      %p294 = scmp.eq.s32.totalorder %s37, 0
      %p295 = por %p293, %p294
      %s297 = sadd.s32 %s296, 1
      %p300 = scmp.eq.s32.totalorder %s31, 1
      %p301 = scmp.ne.s32.totalorder %s296, %s298
      %p302 = scmp.eq.s32.totalorder %s31, 0
      %p303 = por %p301, %p302
      %p304 = scmp.ne.s32.totalorder %s296, %s298
      %p305 = scmp.eq.s32.totalorder %s36, 1
      %p306 = por %p304, %p305
      %p307 = scmp.ne.s32.totalorder %s298, %s299
      %p308 = scmp.eq.s32.totalorder %s36, 0
      %p309 = por %p307, %p308
      %p310 = scmp.ne.s32.totalorder %s298, %s299
      %p311 = scmp.eq.s32.totalorder %s37, 1
      %p312 = por %p310, %p311
      %p314 = scmp.ne.s32.totalorder %s299, %s313
      %p315 = scmp.eq.s32.totalorder %s37, 0
      %p316 = por %p314, %p315
      %s317 = ssub.s32 %s31, %s38
      %p318 = scmp.eq.s32.totalorder %s317, 0
      %s320 = sadd.s32 %s319, 1
      %s321 = scalar_select %p318, %s319, %s320
      %p324 = pneg %p318
      %p325 = scmp.eq.s32.totalorder %s31, 1
      %p326 = por %p324, %p325
      %p327 = scmp.ne.s32.totalorder %s319, %s322
      %p328 = scmp.eq.s32.totalorder %s31, 0
      %p329 = por %p327, %p328
      %p330 = scmp.ne.s32.totalorder %s319, %s322
      %p331 = scmp.eq.s32.totalorder %s36, 1
      %p332 = por %p330, %p331
      %p333 = scmp.ne.s32.totalorder %s322, %s323
      %p334 = scmp.eq.s32.totalorder %s36, 0
      %p335 = por %p333, %p334
      %p336 = scmp.ne.s32.totalorder %s322, %s323
      %p337 = scmp.eq.s32.totalorder %s37, 1
      %p338 = por %p336, %p337
      %p340 = scmp.ne.s32.totalorder %s323, %s339
      %p341 = scmp.eq.s32.totalorder %s37, 0
      %p342 = por %p340, %p341
      %p343 = scmp.le.s32.totalorder 1, %s31
      %p344 = scmp.lt.s32.totalorder %s31, 3
      %p345 = pnand %p343, %p344
      %p346 = pneg %p345
      // Predicated region
      $region9: #{tpu_custom_call.1} parent=5 // pred_check
        _
      $region10: #{tpu_custom_call.1} parent=5 // pred_check_branch
        %348 = sbr.rel (%p345) target = $region12
      $region11: #{tpu_custom_call.1} parent=5 // pred_region
        %s349 = ssub.s32 %s31, 1
        // Predicated region
        $region13: #{tpu_custom_call.1} parent=11 // pred_check
          %p350 = pneg %p78
        $region14: #{tpu_custom_call.1} parent=11 // pred_check_branch
          %352 = sbr.rel (%p350) target = $region16
        $region15: #{tpu_custom_call.1} parent=11 // pred_region
          %s354 = ssub.s32 512, 512
          %355 = vsyncadd [#allocation10], %s354
          %s356 = sshll.u32 [#allocation9], 4
          %s357 = int_to_ptr.vmem [resolvable:$true] %s356
          %362 = dma.hbm_to_vmem [thread:$0]  %s1, 512, %s357, [#allocation10], 128, 128, 8
        $region16: #{tpu_custom_call.1} parent=11 // pred_fallthru
          _
        // Predicated region
        $region17: #{tpu_custom_call.1} parent=11 // pred_check
          %p363 = pneg %p99
        $region18: #{tpu_custom_call.1} parent=11 // pred_check_branch
          %365 = sbr.rel (%p363) target = $region20
        $region19: #{tpu_custom_call.1} parent=11 // pred_region
          %s367 = ssub.s32 16, 16
          %368 = vsyncadd [#allocation10], %s367
          %s370 = sshll.u32 [#allocation11], 4
          %s371 = int_to_ptr.vmem [resolvable:$true] %s370
          %373 = dma.hbm_to_vmem [thread:$0]  %s2, 16, %s371, [#allocation10]
        $region20: #{tpu_custom_call.1} parent=11 // pred_fallthru
          _
        // Predicated region
        $region21: #{tpu_custom_call.1} parent=11 // pred_check
          %p374 = pneg %p120
        $region22: #{tpu_custom_call.1} parent=11 // pred_check_branch
          %376 = sbr.rel (%p374) target = $region24
        $region23: #{tpu_custom_call.1} parent=11 // pred_region
          %s378 = ssub.s32 512, 512
          %379 = vsyncadd [#allocation13], %s378
          %s380 = sshll.u32 [#allocation12], 4
          %s381 = int_to_ptr.vmem [resolvable:$true] %s380
          %386 = dma.hbm_to_vmem [thread:$0]  %s3, 512, %s381, [#allocation13], 128, 128, 8
        $region24: #{tpu_custom_call.1} parent=11 // pred_fallthru
          _
        // Predicated region
        $region25: #{tpu_custom_call.1} parent=11 // pred_check
          %p387 = pneg %p141
        $region26: #{tpu_custom_call.1} parent=11 // pred_check_branch
          %389 = sbr.rel (%p387) target = $region28
        $region27: #{tpu_custom_call.1} parent=11 // pred_region
          %s391 = ssub.s32 16, 16
          %392 = vsyncadd [#allocation13], %s391
          %s394 = sshll.u32 [#allocation14], 4
          %s395 = int_to_ptr.vmem [resolvable:$true] %s394
          %397 = dma.hbm_to_vmem [thread:$0]  %s4, 16, %s395, [#allocation13]
        $region28: #{tpu_custom_call.1} parent=11 // pred_fallthru
          _
        // Predicated region
        $region29: #{tpu_custom_call.1} parent=11 // pred_check
          %p398 = pneg %p162
        $region30: #{tpu_custom_call.1} parent=11 // pred_check_branch
          %400 = sbr.rel (%p398) target = $region32
        $region31: #{tpu_custom_call.1} parent=11 // pred_region
          %s402 = ssub.s32 16, 16
          %403 = vsyncadd [#allocation16], %s402
          %s405 = sshll.u32 [#allocation15], 4
          %s406 = int_to_ptr.vmem [resolvable:$true] %s405
          %408 = dma.hbm_to_vmem [thread:$0]  %s5, 16, %s406, [#allocation16]
        $region32: #{tpu_custom_call.1} parent=11 // pred_fallthru
          _
        // Predicated region
        $region33: #{tpu_custom_call.1} parent=11 // pred_check
          %p409 = pneg %p183
        $region34: #{tpu_custom_call.1} parent=11 // pred_check_branch
          %411 = sbr.rel (%p409) target = $region36
        $region35: #{tpu_custom_call.1} parent=11 // pred_region
          %s413 = ssub.s32 16, 16
          %414 = vsyncadd [#allocation16], %s413
          %s416 = sshll.u32 [#allocation17], 4
          %s417 = int_to_ptr.vmem [resolvable:$true] %s416
          %419 = dma.hbm_to_vmem [thread:$0]  %s6, 16, %s417, [#allocation16]
        $region36: #{tpu_custom_call.1} parent=11 // pred_fallthru
          _
        // Predicated region
        $region37: #{tpu_custom_call.1} parent=11 // pred_check
          %p420 = pneg %p204
        $region38: #{tpu_custom_call.1} parent=11 // pred_check_branch
          %422 = sbr.rel (%p420) target = $region40
        $region39: #{tpu_custom_call.1} parent=11 // pred_region
          %s424 = ssub.s32 512, 512
          %425 = vsyncadd [#allocation19], %s424
          %s426 = sshll.u32 [#allocation18], 4
          %s427 = int_to_ptr.vmem [resolvable:$true] %s426
          %432 = dma.hbm_to_vmem [thread:$0]  %s7, 512, %s427, [#allocation19], 128, 128, 8
        $region40: #{tpu_custom_call.1} parent=11 // pred_fallthru
          _
        // Predicated region
        $region41: #{tpu_custom_call.1} parent=11 // pred_check
          %p433 = pneg %p225
        $region42: #{tpu_custom_call.1} parent=11 // pred_check_branch
          %435 = sbr.rel (%p433) target = $region44
        $region43: #{tpu_custom_call.1} parent=11 // pred_region
          %s437 = ssub.s32 16, 16
          %438 = vsyncadd [#allocation19], %s437
          %s440 = sshll.u32 [#allocation20], 4
          %s441 = int_to_ptr.vmem [resolvable:$true] %s440
          %443 = dma.hbm_to_vmem [thread:$0]  %s8, 16, %s441, [#allocation19]
        $region44: #{tpu_custom_call.1} parent=11 // pred_fallthru
          _
        // Predicated region
        $region45: #{tpu_custom_call.1} parent=11 // pred_check
          %p444 = pneg %p246
        $region46: #{tpu_custom_call.1} parent=11 // pred_check_branch
          %446 = sbr.rel (%p444) target = $region48
        $region47: #{tpu_custom_call.1} parent=11 // pred_region
          %s448 = ssub.s32 1024, 1024
          %449 = vsyncadd [#allocation22], %s448
          %s450 = sshll.u32 [#allocation21], 4
          %s451 = int_to_ptr.vmem [resolvable:$true] %s450
          %456 = dma.hbm_to_vmem [thread:$0]  %s9, 1024, %s451, [#allocation22], 128, 128, 8
        $region48: #{tpu_custom_call.1} parent=11 // pred_fallthru
          _
        // Predicated region
        $region49: #{tpu_custom_call.1} parent=11 // pred_check
          %p457 = pneg %p267
        $region50: #{tpu_custom_call.1} parent=11 // pred_check_branch
          %459 = sbr.rel (%p457) target = $region52
        $region51: #{tpu_custom_call.1} parent=11 // pred_region
          %s461 = ssub.s32 16, 16
          %462 = vsyncadd [#allocation22], %s461
          %s464 = sshll.u32 [#allocation23], 4
          %s465 = int_to_ptr.vmem [resolvable:$true] %s464
          %467 = dma.hbm_to_vmem [thread:$0]  %s10, 16, %s465, [#allocation22]
        $region52: #{tpu_custom_call.1} parent=11 // pred_fallthru
          _
        // Predicated region
        $region53: #{tpu_custom_call.1} parent=11 // pred_check
          %p468 = pneg %p288
        $region54: #{tpu_custom_call.1} parent=11 // pred_check_branch
          %470 = sbr.rel (%p468) target = $region56
        $region55: #{tpu_custom_call.1} parent=11 // pred_region
          %s472 = ssub.s32 16, 16
          %473 = vsyncadd [#allocation25], %s472
          %s475 = sshll.u32 [#allocation24], 4
          %s476 = int_to_ptr.vmem [resolvable:$true] %s475
          %478 = dma.hbm_to_vmem [thread:$0]  %s11, 16, %s476, [#allocation25]
        $region56: #{tpu_custom_call.1} parent=11 // pred_fallthru
          _
        // Predicated region
        $region57: #{tpu_custom_call.1} parent=11 // pred_check
          %p479 = pneg %p309
        $region58: #{tpu_custom_call.1} parent=11 // pred_check_branch
          %481 = sbr.rel (%p479) target = $region60
        $region59: #{tpu_custom_call.1} parent=11 // pred_region
          %s483 = ssub.s32 16, 16
          %484 = vsyncadd [#allocation25], %s483
          %s486 = sshll.u32 [#allocation26], 4
          %s487 = int_to_ptr.vmem [resolvable:$true] %s486
          %489 = dma.hbm_to_vmem [thread:$0]  %s12, 16, %s487, [#allocation25]
        $region60: #{tpu_custom_call.1} parent=11 // pred_fallthru
          _
      $region12: #{tpu_custom_call.1} parent=5 // pred_fallthru
        _
      %p490 = scmp.lt.s32.totalorder %s31, 2
      // Predicated region
      $region61: #{tpu_custom_call.1} parent=5 // pred_check
        %p491 = pneg %p490
      $region62: #{tpu_custom_call.1} parent=5 // pred_check_branch
        %493 = sbr.rel (%p491) target = $region64
      $region63: #{tpu_custom_call.1} parent=5 // pred_region
        // Predicated region
        $region65: #{tpu_custom_call.1} parent=63 // pred_check
          %p494 = pneg %p51
        $region66: #{tpu_custom_call.1} parent=63 // pred_check_branch
          %496 = sbr.rel (%p494) target = $region68
        $region67: #{tpu_custom_call.1} parent=63 // pred_region
          %s497 = sand.u32 %s41, 1
          %s498 = scalar_lea.sflag [#allocation7], %s497
          %s499 = sand.u32 %s41, 1
          %s500 = smul.addr %s499, 8
          %s501 = scalar_lea.vmem [#allocation6], %s500
          %s503 = ssub.s32 128, 128
          %504 = vsyncadd %s498, %s503
          %s505 = smul.addr %s31, 128
          %s506 = scalar_lea.hbm %s0, %s505
          %s508 = sshll.u32 %s501, 4
          %s509 = int_to_ptr.vmem [resolvable:$true] %s508
          %511 = dma.hbm_to_vmem [thread:$0]  %s506, 128, %s509, %s498
        $region68: #{tpu_custom_call.1} parent=63 // pred_fallthru
          _
      $region64: #{tpu_custom_call.1} parent=5 // pred_fallthru
        _
      %p512 = scmp.le.s32.totalorder 1, %s31
      %p513 = scmp.lt.s32.totalorder %s31, 3
      %p514 = pnand %p512, %p513
      %p515 = pneg %p514
      // Predicated region
      $region69: #{tpu_custom_call.1} parent=5 // pred_check
        _
      $region70: #{tpu_custom_call.1} parent=5 // pred_check_branch
        %517 = sbr.rel (%p514) target = $region72
      $region71: #{tpu_custom_call.1} parent=5 // pred_region
        %s518 = ssub.s32 %s31, 1
        %s519 = sand.u32 %s44, 1
        %s520 = scalar_lea.sflag [#allocation7], %s519
        %s521 = sand.u32 %s44, 1
        %s522 = smul.addr %s521, 8
        %s523 = scalar_lea.vmem [#allocation6], %s522
        // Predicated region
        $region73: #{tpu_custom_call.1} parent=71 // pred_check
          %p524 = pneg %p57
        $region74: #{tpu_custom_call.1} parent=71 // pred_check_branch
          %526 = sbr.rel (%p524) target = $region76
        $region75: #{tpu_custom_call.1} parent=71 // pred_region
          %527 = dma.done %s520, 128
        $region76: #{tpu_custom_call.1} parent=71 // pred_fallthru
          _
        // Predicated region
        $region77: #{tpu_custom_call.1} parent=71 // pred_check
          %p528 = pneg %p78
        $region78: #{tpu_custom_call.1} parent=71 // pred_check_branch
          %530 = sbr.rel (%p528) target = $region80
        $region79: #{tpu_custom_call.1} parent=71 // pred_region
          %531 = dma.done [#allocation10], 512
        $region80: #{tpu_custom_call.1} parent=71 // pred_fallthru
          _
        // Predicated region
        $region81: #{tpu_custom_call.1} parent=71 // pred_check
          %p532 = pneg %p99
        $region82: #{tpu_custom_call.1} parent=71 // pred_check_branch
          %534 = sbr.rel (%p532) target = $region84
        $region83: #{tpu_custom_call.1} parent=71 // pred_region
          %535 = dma.done [#allocation10], 16
        $region84: #{tpu_custom_call.1} parent=71 // pred_fallthru
          _
        // Predicated region
        $region85: #{tpu_custom_call.1} parent=71 // pred_check
          %p536 = pneg %p120
        $region86: #{tpu_custom_call.1} parent=71 // pred_check_branch
          %538 = sbr.rel (%p536) target = $region88
        $region87: #{tpu_custom_call.1} parent=71 // pred_region
          %539 = dma.done [#allocation13], 512
        $region88: #{tpu_custom_call.1} parent=71 // pred_fallthru
          _
        // Predicated region
        $region89: #{tpu_custom_call.1} parent=71 // pred_check
          %p540 = pneg %p141
        $region90: #{tpu_custom_call.1} parent=71 // pred_check_branch
          %542 = sbr.rel (%p540) target = $region92
        $region91: #{tpu_custom_call.1} parent=71 // pred_region
          %543 = dma.done [#allocation13], 16
        $region92: #{tpu_custom_call.1} parent=71 // pred_fallthru
          _
        // Predicated region
        $region93: #{tpu_custom_call.1} parent=71 // pred_check
          %p544 = pneg %p162
        $region94: #{tpu_custom_call.1} parent=71 // pred_check_branch
          %546 = sbr.rel (%p544) target = $region96
        $region95: #{tpu_custom_call.1} parent=71 // pred_region
          %547 = dma.done [#allocation16], 16
        $region96: #{tpu_custom_call.1} parent=71 // pred_fallthru
          _
        // Predicated region
        $region97: #{tpu_custom_call.1} parent=71 // pred_check
          %p548 = pneg %p183
        $region98: #{tpu_custom_call.1} parent=71 // pred_check_branch
          %550 = sbr.rel (%p548) target = $region100
        $region99: #{tpu_custom_call.1} parent=71 // pred_region
          %551 = dma.done [#allocation16], 16
        $region100: #{tpu_custom_call.1} parent=71 // pred_fallthru
          _
        // Predicated region
        $region101: #{tpu_custom_call.1} parent=71 // pred_check
          %p552 = pneg %p204
        $region102: #{tpu_custom_call.1} parent=71 // pred_check_branch
          %554 = sbr.rel (%p552) target = $region104
        $region103: #{tpu_custom_call.1} parent=71 // pred_region
          %555 = dma.done [#allocation19], 512
        $region104: #{tpu_custom_call.1} parent=71 // pred_fallthru
          _
        // Predicated region
        $region105: #{tpu_custom_call.1} parent=71 // pred_check
          %p556 = pneg %p225
        $region106: #{tpu_custom_call.1} parent=71 // pred_check_branch
          %558 = sbr.rel (%p556) target = $region108
        $region107: #{tpu_custom_call.1} parent=71 // pred_region
          %559 = dma.done [#allocation19], 16
        $region108: #{tpu_custom_call.1} parent=71 // pred_fallthru
          _
        // Predicated region
        $region109: #{tpu_custom_call.1} parent=71 // pred_check
          %p560 = pneg %p246
        $region110: #{tpu_custom_call.1} parent=71 // pred_check_branch
          %562 = sbr.rel (%p560) target = $region112
        $region111: #{tpu_custom_call.1} parent=71 // pred_region
          %563 = dma.done [#allocation22], 1024
        $region112: #{tpu_custom_call.1} parent=71 // pred_fallthru
          _
        // Predicated region
        $region113: #{tpu_custom_call.1} parent=71 // pred_check
          %p564 = pneg %p267
        $region114: #{tpu_custom_call.1} parent=71 // pred_check_branch
          %566 = sbr.rel (%p564) target = $region116
        $region115: #{tpu_custom_call.1} parent=71 // pred_region
          %567 = dma.done [#allocation22], 16
        $region116: #{tpu_custom_call.1} parent=71 // pred_fallthru
          _
        // Predicated region
        $region117: #{tpu_custom_call.1} parent=71 // pred_check
          %p568 = pneg %p288
        $region118: #{tpu_custom_call.1} parent=71 // pred_check_branch
          %570 = sbr.rel (%p568) target = $region120
        $region119: #{tpu_custom_call.1} parent=71 // pred_region
          %571 = dma.done [#allocation25], 16
        $region120: #{tpu_custom_call.1} parent=71 // pred_fallthru
          _
        // Predicated region
        $region121: #{tpu_custom_call.1} parent=71 // pred_check
          %p572 = pneg %p309
        $region122: #{tpu_custom_call.1} parent=71 // pred_check_branch
          %574 = sbr.rel (%p572) target = $region124
        $region123: #{tpu_custom_call.1} parent=71 // pred_region
          %575 = dma.done [#allocation25], 16
        $region124: #{tpu_custom_call.1} parent=71 // pred_fallthru
          _
        %s576 = sand.u32 %s44, 1
        %s577 = scalar_lea.sflag [#allocation7], %s576
        %s578 = sand.u32 %s44, 1
        %s579 = smul.addr %s578, 8
        %s580 = scalar_lea.vmem [#allocation6], %s579
        %p581 = pneg %p57
        %p582 = pneg %p54
        %p583 = pneg %p78
        %p584 = pneg %p75
        %p585 = pneg %p99
        %p586 = pneg %p96
        %p587 = pneg %p120
        %p588 = pneg %p117
        %p589 = pneg %p141
        %p590 = pneg %p138
        %p591 = pneg %p162
        %p592 = pneg %p159
        %p593 = pneg %p183
        %p594 = pneg %p180
        %p595 = pneg %p204
        %p596 = pneg %p201
        %p597 = pneg %p225
        %p598 = pneg %p222
        %p599 = pneg %p246
        %p600 = pneg %p243
        %p601 = pneg %p267
        %p602 = pneg %p264
        %p603 = pneg %p288
        %p604 = pneg %p285
        %p605 = pneg %p309
        %p606 = pneg %p306
        %p607 = pneg %p335
        %p608 = pneg %p332
        %s609 = sand.u32 %s322, 1
        %s610 = scalar_lea.sflag [#allocation8], %s609
        %s611 = sand.u32 %s322, 1
        %s612 = smul.addr %s611, 8
        %s613 = scalar_lea.vmem [#allocation27], %s612
        %v614 = vld [vmem:[%s523] sm:$0xff]
        %v615 = vld [vmem:[#allocation11] sm:$0x1]
        %v616 = vld [vmem:[#allocation9] sm:$0xff]
        %v617 = vld [vmem:[#allocation9 + $0x8] sm:$0xff]
        %v618 = vld [vmem:[#allocation9 + $0x10] sm:$0xff]
        %v619 = vld [vmem:[#allocation9 + $0x18] sm:$0xff]
        %vm620 = vcmask 261120
        %v622 = vsel %vm620, %v614, 0
        %624 = vmatprep.subr.mxu0 0.0
        %625 = vmatpush1.msra.mxu0 %v616
        %626 = vmatprep.subr.mxu0 0.0
        %627 = vmatpush1.msra.mxu0 %v617
        %628 = vmatprep.subr.mxu0 0.0
        %629 = vmatpush1.msra.mxu0 %v618
        %630 = vmatprep.subr.mxu0 0.0
        %631 = vmatpush1.msra.mxu0 %v619
        %632 = vmatprep.subr.mxu0 0.0
        %633 = vmatpush1.msra.mxu0 0.0
        %634 = vmatprep.subr.mxu0 0.0
        %635 = vmatpush1.msra.mxu0 0.0
        %636 = vmatprep.subr.mxu0 0.0
        %637 = vmatpush1.msra.mxu0 0.0
        %638 = vmatprep.subr.mxu0 0.0
        %639 = vmatpush1.msra.mxu0 0.0
        %640 = vmatprep.subr.mxu0 0.0
        %641 = vmatpush1.msra.mxu0 0.0
        %642 = vmatprep.subr.mxu0 0.0
        %643 = vmatpush1.msra.mxu0 0.0
        %644 = vmatprep.subr.mxu0 0.0
        %645 = vmatpush1.msra.mxu0 0.0
        %646 = vmatprep.subr.mxu0 0.0
        %647 = vmatpush1.msra.mxu0 0.0
        %648 = vmatprep.subr.mxu0 0.0
        %649 = vmatpush1.msra.mxu0 0.0
        %650 = vmatprep.subr.mxu0 0.0
        %651 = vmatpush1.msra.mxu0 0.0
        %652 = vmatprep.subr.mxu0 0.0
        %653 = vmatpush1.msra.mxu0 0.0
        %654 = vmatprep.subr.mxu0 0.0
        %655 = vmatpush1.msra.mxu0 0.0
        %656 = vmatprep.subr.mxu0 0.0
        %657 = vmatpush1.msra.mxu0 0.0
        %658 = vmatprep.subr.mxu0 0.0
        %659 = vmatpush1.msra.mxu0 0.0
        %660 = vmatprep.subr.mxu0 0.0
        %661 = vmatpush1.msra.mxu0 0.0
        %662 = vmatprep.subr.mxu0 0.0
        %663 = vmatpush1.msra.mxu0 0.0
        %664 = vmatprep.subr.mxu0 0.0
        %665 = vmatpush1.msra.mxu0 0.0
        %666 = vmatprep.subr.mxu0 0.0
        %667 = vmatpush1.msra.mxu0 0.0
        %668 = vmatprep.subr.mxu0 0.0
        %669 = vmatpush1.msra.mxu0 0.0
        %670 = vmatprep.subr.mxu0 0.0
        %671 = vmatpush1.msra.mxu0 0.0
        %672 = vmatprep.subr.mxu0 0.0
        %673 = vmatpush1.msra.mxu0 0.0
        %674 = vmatprep.subr.mxu0 0.0
        %675 = vmatpush1.msra.mxu0 0.0
        %676 = vmatprep.subr.mxu0 0.0
        %677 = vmatpush1.msra.mxu0 0.0
        %678 = vmatprep.subr.mxu0 0.0
        %679 = vmatpush1.msra.mxu0 0.0
        %680 = vmatprep.subr.mxu0 0.0
        %681 = vmatpush1.msra.mxu0 0.0
        %682 = vmatprep.subr.mxu0 0.0
        %683 = vmatpush1.msra.mxu0 0.0
        %684 = vmatprep.subr.mxu0 0.0
        %685 = vmatpush1.msra.mxu0 0.0
        %686 = vmatprep.subr.mxu0 0.0
        %687 = vmatpush1.msra.mxu0 0.0
        %688 = vmatprep.mubr.f32.mxu0 0.0
        %689 = vmatmul.mubr.f32.gmra.mrb[0].mxu0 %v622
        %v690 = vpop.f32.mrb[0].mxu0
        %v691 = vadd.f32 0.0, %v690
        %v692 = vpop.f32.mrb[0].mxu0
        %693 = vdwg.mxu0
        %v695 = vlaneseq
        %v696 = vshrl.u32 %v695, 7
        %v697 = vsub.s32 0, %v696
        %v698 = vrot.slane %v615, %v697
        %v700 = vadd.f32 %v691, %v698
        %vm701 = vcmask 64512
        %702 = vst.msk [vmem:[#allocation2] sm:$0xff] %vm701, %v700
        %704 = vrot.lane.b32.xlu0 %v700, 120
        %v705 = vpop.permute.xlu0 %704
        %s707 = scalar_lea.vmem [#allocation2], 8
        %708 = vst.msk [vmem:[%s707] sm:$0xff] %vm701, %v705
        %709 = vrot.lane.b32.xlu0 %v700, 112
        %v710 = vpop.permute.xlu0 %709
        %s712 = scalar_lea.vmem [#allocation2], 16
        %713 = vst.msk [vmem:[%s712] sm:$0xff] %vm701, %v710
        %714 = vrot.lane.b32.xlu0 %v700, 104
        %v715 = vpop.permute.xlu0 %714
        %s717 = scalar_lea.vmem [#allocation2], 24
        %718 = vst.msk [vmem:[%s717] sm:$0xff] %vm701, %v715
        %720 = vrot.lane.b32.xlu0 %v691, 96
        %v721 = vpop.permute.xlu0 %720
        %723 = vst.msk [vmem:[#allocation3] sm:$0xff] %vm701, %v721
        %724 = vrot.lane.b32.xlu0 %v691, 88
        %v725 = vpop.permute.xlu0 %724
        %s727 = scalar_lea.vmem [#allocation3], 8
        %728 = vst.msk [vmem:[%s727] sm:$0xff] %vm701, %v725
        %729 = vrot.lane.b32.xlu0 %v691, 80
        %v730 = vpop.permute.xlu0 %729
        %s732 = scalar_lea.vmem [#allocation3], 16
        %733 = vst.msk [vmem:[%s732] sm:$0xff] %vm701, %v730
        %734 = vrot.lane.b32.xlu0 %v691, 72
        %v735 = vpop.permute.xlu0 %734
        %s737 = scalar_lea.vmem [#allocation3], 24
        %738 = vst.msk [vmem:[%s737] sm:$0xff] %vm701, %v735
        %739 = vrot.lane.b32.xlu0 %v691, 64
        %v740 = vpop.permute.xlu0 %739
        %742 = vst.msk [vmem:[#allocation4] sm:$0xff] %vm701, %v740
        %743 = vrot.lane.b32.xlu0 %v691, 56
        %v744 = vpop.permute.xlu0 %743
        %s746 = scalar_lea.vmem [#allocation4], 8
        %747 = vst.msk [vmem:[%s746] sm:$0xff] %vm701, %v744
        %748 = vrot.lane.b32.xlu0 %v691, 48
        %v749 = vpop.permute.xlu0 %748
        %s751 = scalar_lea.vmem [#allocation4], 16
        %752 = vst.msk [vmem:[%s751] sm:$0xff] %vm701, %v749
        %753 = vrot.lane.b32.xlu0 %v691, 40
        %v754 = vpop.permute.xlu0 %753
        %s756 = scalar_lea.vmem [#allocation4], 24
        %757 = vst.msk [vmem:[%s756] sm:$0xff] %vm701, %v754
        %v758 = vld [vmem:[#allocation14] sm:$0x1]
        %v760 = vlaneseq
        %v761 = vshrl.u32 %v760, 7
        %v762 = vsub.s32 0, %v761
        %v763 = vrot.slane %v758, %v762
        %v765 = vadd.f32 %v614, %v763
        %766 = vst.msk [vmem:[#allocation5] sm:$0xff] %vm620, %v765
        loop: start=0, step=1, limit=4
        $region125: #{tpu_custom_call.1} parent=71 // loop_pre_header
          _
        $region126: #{tpu_custom_call.1} parent=71 // loop_header
          %s768 = sphi 0, %s772
          %p769 = scmp.ge.s32.totalorder %s768, 4
        $region127: #{tpu_custom_call.1} parent=71 // loop_header_branch
          %771 = sbr.rel (%p769) target = $region131
        $region128: #{tpu_custom_call.1} parent=71 // loop_body
          %s773 = smul.u32 %s768, 8
          %s774 = scalar_lea.vmem [#allocation2], %s773
          %v775 = vld [vmem:[%s774] sm:$0xff]
          %s776 = scalar_lea.vmem [#allocation3], %s773
          %v777 = vld [vmem:[%s776] sm:$0xff]
          %s778 = scalar_lea.vmem [#allocation4], %s773
          %v779 = vld [vmem:[%s778] sm:$0xff]
          %v781 = vsel %vm701, %v775, 0
          %v784 = vsel %vm701, %v777, 0
          %786 = vmatprep.subr.mxu0 0.0
          %787 = vmatpush1.xpose.msra.mxu0 %v784
          %788 = vmatprep.subr.mxu0 0.0
          %789 = vmatpush1.xpose.msra.mxu0 0.0
          %790 = vmatprep.subr.mxu0 0.0
          %791 = vmatpush1.xpose.msra.mxu0 0.0
          %792 = vmatprep.subr.mxu0 0.0
          %793 = vmatpush1.xpose.msra.mxu0 0.0
          %794 = vmatprep.subr.mxu0 0.0
          %795 = vmatpush1.xpose.msra.mxu0 0.0
          %796 = vmatprep.subr.mxu0 0.0
          %797 = vmatpush1.xpose.msra.mxu0 0.0
          %798 = vmatprep.subr.mxu0 0.0
          %799 = vmatpush1.xpose.msra.mxu0 0.0
          %800 = vmatprep.subr.mxu0 0.0
          %801 = vmatpush1.xpose.msra.mxu0 0.0
          %802 = vmatprep.subr.mxu0 0.0
          %803 = vmatpush1.xpose.msra.mxu0 0.0
          %804 = vmatprep.subr.mxu0 0.0
          %805 = vmatpush1.xpose.msra.mxu0 0.0
          %806 = vmatprep.subr.mxu0 0.0
          %807 = vmatpush1.xpose.msra.mxu0 0.0
          %808 = vmatprep.subr.mxu0 0.0
          %809 = vmatpush1.xpose.msra.mxu0 0.0
          %810 = vmatprep.subr.mxu0 0.0
          %811 = vmatpush1.xpose.msra.mxu0 0.0
          %812 = vmatprep.subr.mxu0 0.0
          %813 = vmatpush1.xpose.msra.mxu0 0.0
          %814 = vmatprep.subr.mxu0 0.0
          %815 = vmatpush1.xpose.msra.mxu0 0.0
          %816 = vmatprep.subr.mxu0 0.0
          %817 = vmatpush1.xpose.msra.mxu0 0.0
          %818 = vmatprep.subr.mxu0 0.0
          %819 = vmatpush1.xpose.msra.mxu0 0.0
          %820 = vmatprep.subr.mxu0 0.0
          %821 = vmatpush1.xpose.msra.mxu0 0.0
          %822 = vmatprep.subr.mxu0 0.0
          %823 = vmatpush1.xpose.msra.mxu0 0.0
          %824 = vmatprep.subr.mxu0 0.0
          %825 = vmatpush1.xpose.msra.mxu0 0.0
          %826 = vmatprep.subr.mxu0 0.0
          %827 = vmatpush1.xpose.msra.mxu0 0.0
          %828 = vmatprep.subr.mxu0 0.0
          %829 = vmatpush1.xpose.msra.mxu0 0.0
          %830 = vmatprep.subr.mxu0 0.0
          %831 = vmatpush1.xpose.msra.mxu0 0.0
          %832 = vmatprep.subr.mxu0 0.0
          %833 = vmatpush1.xpose.msra.mxu0 0.0
          %834 = vmatprep.subr.mxu0 0.0
          %835 = vmatpush1.xpose.msra.mxu0 0.0
          %836 = vmatprep.subr.mxu0 0.0
          %837 = vmatpush1.xpose.msra.mxu0 0.0
          %838 = vmatprep.subr.mxu0 0.0
          %839 = vmatpush1.xpose.msra.mxu0 0.0
          %840 = vmatprep.subr.mxu0 0.0
          %841 = vmatpush1.xpose.msra.mxu0 0.0
          %842 = vmatprep.subr.mxu0 0.0
          %843 = vmatpush1.xpose.msra.mxu0 0.0
          %844 = vmatprep.subr.mxu0 0.0
          %845 = vmatpush1.xpose.msra.mxu0 0.0
          %846 = vmatprep.subr.mxu0 0.0
          %847 = vmatpush1.xpose.msra.mxu0 0.0
          %848 = vmatprep.subr.mxu0 0.0
          %849 = vmatpush1.xpose.msra.mxu0 0.0
          %850 = vmatprep.mubr.f32.mxu0 0.0
          %851 = vmatmul.mubr.f32.gmra.mrb[0].mxu0 %v781
          %v852 = vpop.f32.mrb[0].mxu0
          %v853 = vadd.f32 0.0, %v852
          %v854 = vpop.f32.mrb[0].mxu0
          %855 = vdwg.mxu0
          %v856 = vsel %vm701, %v853, -inf
          %857 = vmax.xlane.f32.xlu0 %v856
          %v858 = vpop.xlane.xlu0 %857
          %v859 = vsub.f32 %v853, %v858
          %v860 = vmul.f32 %v859, 1.442695
          %v861 = vpow.pop %v860
          %v862 = vsel %vm701, %v861, 0.0
          %863 = vadd.xlane.f32.xlu0 %v862
          %v864 = vpop.xlane.xlu0 %863
          %v865 = vrcp.pop %v864
          %v867 = vsel %vm701, %v861, 0
          %869 = vmatprep.subr.mxu0 0.0
          %870 = vmatpush1.msra.mxu0 %v779
          %871 = vmatprep.subr.mxu0 0.0
          %872 = vmatpush1.msra.mxu0 0.0
          %873 = vmatprep.subr.mxu0 0.0
          %874 = vmatpush1.msra.mxu0 0.0
          %875 = vmatprep.subr.mxu0 0.0
          %876 = vmatpush1.msra.mxu0 0.0
          %877 = vmatprep.subr.mxu0 0.0
          %878 = vmatpush1.msra.mxu0 0.0
          %879 = vmatprep.subr.mxu0 0.0
          %880 = vmatpush1.msra.mxu0 0.0
          %881 = vmatprep.subr.mxu0 0.0
          %882 = vmatpush1.msra.mxu0 0.0
          %883 = vmatprep.subr.mxu0 0.0
          %884 = vmatpush1.msra.mxu0 0.0
          %885 = vmatprep.subr.mxu0 0.0
          %886 = vmatpush1.msra.mxu0 0.0
          %887 = vmatprep.subr.mxu0 0.0
          %888 = vmatpush1.msra.mxu0 0.0
          %889 = vmatprep.subr.mxu0 0.0
          %890 = vmatpush1.msra.mxu0 0.0
          %891 = vmatprep.subr.mxu0 0.0
          %892 = vmatpush1.msra.mxu0 0.0
          %893 = vmatprep.subr.mxu0 0.0
          %894 = vmatpush1.msra.mxu0 0.0
          %895 = vmatprep.subr.mxu0 0.0
          %896 = vmatpush1.msra.mxu0 0.0
          %897 = vmatprep.subr.mxu0 0.0
          %898 = vmatpush1.msra.mxu0 0.0
          %899 = vmatprep.subr.mxu0 0.0
          %900 = vmatpush1.msra.mxu0 0.0
          %901 = vmatprep.subr.mxu0 0.0
          %902 = vmatpush1.msra.mxu0 0.0
          %903 = vmatprep.subr.mxu0 0.0
          %904 = vmatpush1.msra.mxu0 0.0
          %905 = vmatprep.subr.mxu0 0.0
          %906 = vmatpush1.msra.mxu0 0.0
          %907 = vmatprep.subr.mxu0 0.0
          %908 = vmatpush1.msra.mxu0 0.0
          %909 = vmatprep.subr.mxu0 0.0
          %910 = vmatpush1.msra.mxu0 0.0
          %911 = vmatprep.subr.mxu0 0.0
          %912 = vmatpush1.msra.mxu0 0.0
          %913 = vmatprep.subr.mxu0 0.0
          %914 = vmatpush1.msra.mxu0 0.0
          %915 = vmatprep.subr.mxu0 0.0
          %916 = vmatpush1.msra.mxu0 0.0
          %917 = vmatprep.subr.mxu0 0.0
          %918 = vmatpush1.msra.mxu0 0.0
          %919 = vmatprep.subr.mxu0 0.0
          %920 = vmatpush1.msra.mxu0 0.0
          %921 = vmatprep.subr.mxu0 0.0
          %922 = vmatpush1.msra.mxu0 0.0
          %923 = vmatprep.subr.mxu0 0.0
          %924 = vmatpush1.msra.mxu0 0.0
          %925 = vmatprep.subr.mxu0 0.0
          %926 = vmatpush1.msra.mxu0 0.0
          %927 = vmatprep.subr.mxu0 0.0
          %928 = vmatpush1.msra.mxu0 0.0
          %929 = vmatprep.subr.mxu0 0.0
          %930 = vmatpush1.msra.mxu0 0.0
          %931 = vmatprep.subr.mxu0 0.0
          %932 = vmatpush1.msra.mxu0 0.0
          %933 = vmatprep.mubr.f32.mxu0 0.0
          %934 = vmatmul.mubr.f32.gmra.mrb[0].mxu0 %v867
          %v935 = vpop.f32.mrb[0].mxu0
          %v936 = vadd.f32 0.0, %v935
          %v937 = vpop.f32.mrb[0].mxu0
          %938 = vdwg.mxu0
          %v939 = vmul.f32 %v936, %v865
          %v940 = vld [vmem:[#allocation5] sm:$0xff]
          %s941 = scalar_lea.vmem [#allocation12], %s773
          %v942 = vld [vmem:[%s941] sm:$0xff]
          %v944 = vsel %vm701, %v939, 0
          %946 = vmatprep.subr.mxu0 0.0
          %947 = vmatpush1.msra.mxu0 %v942
          %948 = vmatprep.subr.mxu0 0.0
          %949 = vmatpush1.msra.mxu0 0.0
          %950 = vmatprep.subr.mxu0 0.0
          %951 = vmatpush1.msra.mxu0 0.0
          %952 = vmatprep.subr.mxu0 0.0
          %953 = vmatpush1.msra.mxu0 0.0
          %954 = vmatprep.subr.mxu0 0.0
          %955 = vmatpush1.msra.mxu0 0.0
          %956 = vmatprep.subr.mxu0 0.0
          %957 = vmatpush1.msra.mxu0 0.0
          %958 = vmatprep.subr.mxu0 0.0
          %959 = vmatpush1.msra.mxu0 0.0
          %960 = vmatprep.subr.mxu0 0.0
          %961 = vmatpush1.msra.mxu0 0.0
          %962 = vmatprep.subr.mxu0 0.0
          %963 = vmatpush1.msra.mxu0 0.0
          %964 = vmatprep.subr.mxu0 0.0
          %965 = vmatpush1.msra.mxu0 0.0
          %966 = vmatprep.subr.mxu0 0.0
          %967 = vmatpush1.msra.mxu0 0.0
          %968 = vmatprep.subr.mxu0 0.0
          %969 = vmatpush1.msra.mxu0 0.0
          %970 = vmatprep.subr.mxu0 0.0
          %971 = vmatpush1.msra.mxu0 0.0
          %972 = vmatprep.subr.mxu0 0.0
          %973 = vmatpush1.msra.mxu0 0.0
          %974 = vmatprep.subr.mxu0 0.0
          %975 = vmatpush1.msra.mxu0 0.0
          %976 = vmatprep.subr.mxu0 0.0
          %977 = vmatpush1.msra.mxu0 0.0
          %978 = vmatprep.subr.mxu0 0.0
          %979 = vmatpush1.msra.mxu0 0.0
          %980 = vmatprep.subr.mxu0 0.0
          %981 = vmatpush1.msra.mxu0 0.0
          %982 = vmatprep.subr.mxu0 0.0
          %983 = vmatpush1.msra.mxu0 0.0
          %984 = vmatprep.subr.mxu0 0.0
          %985 = vmatpush1.msra.mxu0 0.0
          %986 = vmatprep.subr.mxu0 0.0
          %987 = vmatpush1.msra.mxu0 0.0
          %988 = vmatprep.subr.mxu0 0.0
          %989 = vmatpush1.msra.mxu0 0.0
          %990 = vmatprep.subr.mxu0 0.0
          %991 = vmatpush1.msra.mxu0 0.0
          %992 = vmatprep.subr.mxu0 0.0
          %993 = vmatpush1.msra.mxu0 0.0
          %994 = vmatprep.subr.mxu0 0.0
          %995 = vmatpush1.msra.mxu0 0.0
          %996 = vmatprep.subr.mxu0 0.0
          %997 = vmatpush1.msra.mxu0 0.0
          %998 = vmatprep.subr.mxu0 0.0
          %999 = vmatpush1.msra.mxu0 0.0
          %1000 = vmatprep.subr.mxu0 0.0
          %1001 = vmatpush1.msra.mxu0 0.0
          %1002 = vmatprep.subr.mxu0 0.0
          %1003 = vmatpush1.msra.mxu0 0.0
          %1004 = vmatprep.subr.mxu0 0.0
          %1005 = vmatpush1.msra.mxu0 0.0
          %1006 = vmatprep.subr.mxu0 0.0
          %1007 = vmatpush1.msra.mxu0 0.0
          %1008 = vmatprep.subr.mxu0 0.0
          %1009 = vmatpush1.msra.mxu0 0.0
          %1010 = vmatprep.mubr.f32.mxu0 0.0
          %1011 = vmatmul.mubr.f32.gmra.mrb[0].mxu0 %v944
          %v1012 = vpop.f32.mrb[0].mxu0
          %v1013 = vadd.f32 0.0, %v1012
          %v1014 = vpop.f32.mrb[0].mxu0
          %1015 = vdwg.mxu0
          %v1016 = vadd.f32 %v940, %v1013
          %1017 = vst.msk [vmem:[#allocation5] sm:$0xff] %vm620, %v1016
        $region129: #{tpu_custom_call.1} parent=71 // loop_footer
          %s772 = sadd.s32 1, %s768
        $region130: #{tpu_custom_call.1} parent=71 // loop_footer_branch
          %767 = sbr.rel target = $region126
        $region131: #{tpu_custom_call.1} parent=71 // loop_exit
          _
        %v1018 = vld [vmem:[#allocation5] sm:$0xff]
        %v1019 = vld [vmem:[#allocation15] sm:$0x1]
        %v1020 = vld [vmem:[#allocation17] sm:$0x1]
        %v1021 = vsel %vm620, %v1018, 0.0
        %1022 = vadd.xlane.f32.xlu0 %v1021
        %v1023 = vpop.xlane.xlu0 %1022
        %v1024 = vrcp.pop 32.0
        %v1025 = vmul.f32 %v1023, %v1024
        %v1026 = vsub.f32 %v1018, %v1025
        %v1027 = vmul.f32 %v1026, %v1026
        %v1028 = vsel %vm620, %v1027, 0.0
        %1029 = vadd.xlane.f32.xlu0 %v1028
        %v1030 = vpop.xlane.xlu0 %1029
        %v1031 = vmul.f32 %v1030, %v1024
        %v1032 = vadd.f32 %v1031, 1e-05
        %v1033 = vrsqrt.pop %v1032
        %v1034 = vmul.f32 %v1026, %v1033
        %v1036 = vlaneseq
        %v1037 = vshrl.u32 %v1036, 7
        %v1038 = vsub.s32 0, %v1037
        %v1039 = vrot.slane %v1019, %v1038
        %v1041 = vmul.f32 %v1034, %v1039
        %v1043 = vlaneseq
        %v1044 = vshrl.u32 %v1043, 7
        %v1045 = vsub.s32 0, %v1044
        %v1046 = vrot.slane %v1020, %v1045
        %v1048 = vadd.f32 %v1041, %v1046
        %v1049 = vld [vmem:[#allocation18] sm:$0xff]
        %v1050 = vld [vmem:[#allocation18 + $0x8] sm:$0xff]
        %v1051 = vld [vmem:[#allocation18 + $0x10] sm:$0xff]
        %v1052 = vld [vmem:[#allocation18 + $0x18] sm:$0xff]
        %v1053 = vld [vmem:[#allocation20] sm:$0x1]
        %v1055 = vlaneseq
        %v1056 = vshrl.u32 %v1055, 7
        %v1057 = vsub.s32 0, %v1056
        %v1058 = vrot.slane %v1053, %v1057
        %v1061 = vsel %vm620, %v1048, 0
        %1063 = vmatprep.subr.mxu0 0.0
        %1064 = vmatpush1.msra.mxu0 %v1049
        %1065 = vmatprep.subr.mxu0 0.0
        %1066 = vmatpush1.msra.mxu0 %v1050
        %1067 = vmatprep.subr.mxu0 0.0
        %1068 = vmatpush1.msra.mxu0 %v1051
        %1069 = vmatprep.subr.mxu0 0.0
        %1070 = vmatpush1.msra.mxu0 %v1052
        %1071 = vmatprep.subr.mxu0 0.0
        %1072 = vmatpush1.msra.mxu0 0.0
        %1073 = vmatprep.subr.mxu0 0.0
        %1074 = vmatpush1.msra.mxu0 0.0
        %1075 = vmatprep.subr.mxu0 0.0
        %1076 = vmatpush1.msra.mxu0 0.0
        %1077 = vmatprep.subr.mxu0 0.0
        %1078 = vmatpush1.msra.mxu0 0.0
        %1079 = vmatprep.subr.mxu0 0.0
        %1080 = vmatpush1.msra.mxu0 0.0
        %1081 = vmatprep.subr.mxu0 0.0
        %1082 = vmatpush1.msra.mxu0 0.0
        %1083 = vmatprep.subr.mxu0 0.0
        %1084 = vmatpush1.msra.mxu0 0.0
        %1085 = vmatprep.subr.mxu0 0.0
        %1086 = vmatpush1.msra.mxu0 0.0
        %1087 = vmatprep.subr.mxu0 0.0
        %1088 = vmatpush1.msra.mxu0 0.0
        %1089 = vmatprep.subr.mxu0 0.0
        %1090 = vmatpush1.msra.mxu0 0.0
        %1091 = vmatprep.subr.mxu0 0.0
        %1092 = vmatpush1.msra.mxu0 0.0
        %1093 = vmatprep.subr.mxu0 0.0
        %1094 = vmatpush1.msra.mxu0 0.0
        %1095 = vmatprep.subr.mxu0 0.0
        %1096 = vmatpush1.msra.mxu0 0.0
        %1097 = vmatprep.subr.mxu0 0.0
        %1098 = vmatpush1.msra.mxu0 0.0
        %1099 = vmatprep.subr.mxu0 0.0
        %1100 = vmatpush1.msra.mxu0 0.0
        %1101 = vmatprep.subr.mxu0 0.0
        %1102 = vmatpush1.msra.mxu0 0.0
        %1103 = vmatprep.subr.mxu0 0.0
        %1104 = vmatpush1.msra.mxu0 0.0
        %1105 = vmatprep.subr.mxu0 0.0
        %1106 = vmatpush1.msra.mxu0 0.0
        %1107 = vmatprep.subr.mxu0 0.0
        %1108 = vmatpush1.msra.mxu0 0.0
        %1109 = vmatprep.subr.mxu0 0.0
        %1110 = vmatpush1.msra.mxu0 0.0
        %1111 = vmatprep.subr.mxu0 0.0
        %1112 = vmatpush1.msra.mxu0 0.0
        %1113 = vmatprep.subr.mxu0 0.0
        %1114 = vmatpush1.msra.mxu0 0.0
        %1115 = vmatprep.subr.mxu0 0.0
        %1116 = vmatpush1.msra.mxu0 0.0
        %1117 = vmatprep.subr.mxu0 0.0
        %1118 = vmatpush1.msra.mxu0 0.0
        %1119 = vmatprep.subr.mxu0 0.0
        %1120 = vmatpush1.msra.mxu0 0.0
        %1121 = vmatprep.subr.mxu0 0.0
        %1122 = vmatpush1.msra.mxu0 0.0
        %1123 = vmatprep.subr.mxu0 0.0
        %1124 = vmatpush1.msra.mxu0 0.0
        %1125 = vmatprep.subr.mxu0 0.0
        %1126 = vmatpush1.msra.mxu0 0.0
        %1127 = vmatprep.mubr.f32.mxu0 0.0
        %1128 = vmatmul.mubr.f32.gmra.mrb[0].mxu0 %v1061
        %v1129 = vpop.f32.mrb[0].mxu0
        %v1130 = vadd.f32 %v1058, %v1129
        %v1131 = vpop.f32.mrb[0].mxu0
        %1132 = vdwg.mxu0
        %v1133 = vmax.f32 %v1130, 0.0
        %v1134 = vld [vmem:[#allocation21] sm:$0xff]
        %v1135 = vld [vmem:[#allocation21 + $0x8] sm:$0xff]
        %v1136 = vld [vmem:[#allocation21 + $0x10] sm:$0xff]
        %v1137 = vld [vmem:[#allocation21 + $0x18] sm:$0xff]
        %v1138 = vld [vmem:[#allocation21 + $0x20] sm:$0xff]
        %v1139 = vld [vmem:[#allocation21 + $0x28] sm:$0xff]
        %v1140 = vld [vmem:[#allocation21 + $0x30] sm:$0xff]
        %v1141 = vld [vmem:[#allocation21 + $0x38] sm:$0xff]
        %v1142 = vld [vmem:[#allocation23] sm:$0x1]
        %v1144 = vlaneseq
        %v1145 = vshrl.u32 %v1144, 7
        %v1146 = vsub.s32 0, %v1145
        %v1147 = vrot.slane %v1142, %v1146
        %vm1149 = vcmask 523264
        %v1151 = vsel %vm1149, %v1133, 0
        %1153 = vmatprep.subr.mxu0 0.0
        %1154 = vmatpush1.msra.mxu0 %v1134
        %1155 = vmatprep.subr.mxu0 0.0
        %1156 = vmatpush1.msra.mxu0 %v1135
        %1157 = vmatprep.subr.mxu0 0.0
        %1158 = vmatpush1.msra.mxu0 %v1136
        %1159 = vmatprep.subr.mxu0 0.0
        %1160 = vmatpush1.msra.mxu0 %v1137
        %1161 = vmatprep.subr.mxu0 0.0
        %1162 = vmatpush1.msra.mxu0 %v1138
        %1163 = vmatprep.subr.mxu0 0.0
        %1164 = vmatpush1.msra.mxu0 %v1139
        %1165 = vmatprep.subr.mxu0 0.0
        %1166 = vmatpush1.msra.mxu0 %v1140
        %1167 = vmatprep.subr.mxu0 0.0
        %1168 = vmatpush1.msra.mxu0 %v1141
        %1169 = vmatprep.subr.mxu0 0.0
        %1170 = vmatpush1.msra.mxu0 0.0
        %1171 = vmatprep.subr.mxu0 0.0
        %1172 = vmatpush1.msra.mxu0 0.0
        %1173 = vmatprep.subr.mxu0 0.0
        %1174 = vmatpush1.msra.mxu0 0.0
        %1175 = vmatprep.subr.mxu0 0.0
        %1176 = vmatpush1.msra.mxu0 0.0
        %1177 = vmatprep.subr.mxu0 0.0
        %1178 = vmatpush1.msra.mxu0 0.0
        %1179 = vmatprep.subr.mxu0 0.0
        %1180 = vmatpush1.msra.mxu0 0.0
        %1181 = vmatprep.subr.mxu0 0.0
        %1182 = vmatpush1.msra.mxu0 0.0
        %1183 = vmatprep.subr.mxu0 0.0
        %1184 = vmatpush1.msra.mxu0 0.0
        %1185 = vmatprep.subr.mxu0 0.0
        %1186 = vmatpush1.msra.mxu0 0.0
        %1187 = vmatprep.subr.mxu0 0.0
        %1188 = vmatpush1.msra.mxu0 0.0
        %1189 = vmatprep.subr.mxu0 0.0
        %1190 = vmatpush1.msra.mxu0 0.0
        %1191 = vmatprep.subr.mxu0 0.0
        %1192 = vmatpush1.msra.mxu0 0.0
        %1193 = vmatprep.subr.mxu0 0.0
        %1194 = vmatpush1.msra.mxu0 0.0
        %1195 = vmatprep.subr.mxu0 0.0
        %1196 = vmatpush1.msra.mxu0 0.0
        %1197 = vmatprep.subr.mxu0 0.0
        %1198 = vmatpush1.msra.mxu0 0.0
        %1199 = vmatprep.subr.mxu0 0.0
        %1200 = vmatpush1.msra.mxu0 0.0
        %1201 = vmatprep.subr.mxu0 0.0
        %1202 = vmatpush1.msra.mxu0 0.0
        %1203 = vmatprep.subr.mxu0 0.0
        %1204 = vmatpush1.msra.mxu0 0.0
        %1205 = vmatprep.subr.mxu0 0.0
        %1206 = vmatpush1.msra.mxu0 0.0
        %1207 = vmatprep.subr.mxu0 0.0
        %1208 = vmatpush1.msra.mxu0 0.0
        %1209 = vmatprep.subr.mxu0 0.0
        %1210 = vmatpush1.msra.mxu0 0.0
        %1211 = vmatprep.subr.mxu0 0.0
        %1212 = vmatpush1.msra.mxu0 0.0
        %1213 = vmatprep.subr.mxu0 0.0
        %1214 = vmatpush1.msra.mxu0 0.0
        %1215 = vmatprep.subr.mxu0 0.0
        %1216 = vmatpush1.msra.mxu0 0.0
        %1217 = vmatprep.mubr.f32.mxu0 0.0
        %1218 = vmatmul.mubr.f32.gmra.mrb[0].mxu0 %v1151
        %v1219 = vpop.f32.mrb[0].mxu0
        %v1220 = vadd.f32 %v1147, %v1219
        %v1221 = vpop.f32.mrb[0].mxu0
        %1222 = vdwg.mxu0
        %v1223 = vadd.f32 %v1048, %v1220
        %v1224 = vld [vmem:[#allocation24] sm:$0x1]
        %v1225 = vld [vmem:[#allocation26] sm:$0x1]
        %v1226 = vsel %vm620, %v1223, 0.0
        %1227 = vadd.xlane.f32.xlu0 %v1226
        %v1228 = vpop.xlane.xlu0 %1227
        %v1229 = vmul.f32 %v1228, %v1024
        %v1230 = vsub.f32 %v1223, %v1229
        %v1231 = vmul.f32 %v1230, %v1230
        %v1232 = vsel %vm620, %v1231, 0.0
        %1233 = vadd.xlane.f32.xlu0 %v1232
        %v1234 = vpop.xlane.xlu0 %1233
        %v1235 = vmul.f32 %v1234, %v1024
        %v1236 = vadd.f32 %v1235, 1e-05
        %v1237 = vrsqrt.pop %v1236
        %v1238 = vmul.f32 %v1230, %v1237
        %v1240 = vlaneseq
        %v1241 = vshrl.u32 %v1240, 7
        %v1242 = vsub.s32 0, %v1241
        %v1243 = vrot.slane %v1224, %v1242
        %v1245 = vmul.f32 %v1238, %v1243
        %v1247 = vlaneseq
        %v1248 = vshrl.u32 %v1247, 7
        %v1249 = vsub.s32 0, %v1248
        %v1250 = vrot.slane %v1225, %v1249
        %v1252 = vadd.f32 %v1245, %v1250
        %1253 = vst.msk [vmem:[%s613] sm:$0xff] %vm620, %v1252
        %s1254 = sand.u32 %s322, 1
        %s1255 = scalar_lea.sflag [#allocation8], %s1254
        %s1256 = sand.u32 %s322, 1
        %s1257 = smul.addr %s1256, 8
        %s1258 = scalar_lea.vmem [#allocation27], %s1257
        // Predicated region
        $region132: #{tpu_custom_call.1} parent=71 // pred_check
          %p1259 = pneg %p332
        $region133: #{tpu_custom_call.1} parent=71 // pred_check_branch
          %1261 = sbr.rel (%p1259) target = $region135
        $region134: #{tpu_custom_call.1} parent=71 // pred_region
          %s1263 = ssub.s32 128, 128
          %1264 = vsyncadd %s1255, %s1263
          %s1265 = smul.addr %s36, 128
          %s1266 = scalar_lea.hbm %s13, %s1265
          %s1268 = sshll.u32 %s1258, 4
          %s1269 = int_to_ptr.vmem [resolvable:$true] %s1268
          %1271 = dma.vmem_to_hbm [thread:$0]  %s1269, 128, %s1266, %s1255
        $region135: #{tpu_custom_call.1} parent=71 // pred_fallthru
          _
      $region72: #{tpu_custom_call.1} parent=5 // pred_fallthru
        _
      %p1272 = scmp.le.s32.totalorder 2, %s31
      // Predicated region
      $region136: #{tpu_custom_call.1} parent=5 // pred_check
        %p1273 = pneg %p1272
      $region137: #{tpu_custom_call.1} parent=5 // pred_check_branch
        %1275 = sbr.rel (%p1273) target = $region139
      $region138: #{tpu_custom_call.1} parent=5 // pred_region
        %s1276 = ssub.s32 %s31, 2
        // Predicated region
        $region140: #{tpu_custom_call.1} parent=138 // pred_check
          %p1277 = pneg %p338
        $region141: #{tpu_custom_call.1} parent=138 // pred_check_branch
          %1279 = sbr.rel (%p1277) target = $region143
        $region142: #{tpu_custom_call.1} parent=138 // pred_region
          %s1280 = sand.u32 %s323, 1
          %s1281 = scalar_lea.sflag [#allocation8], %s1280
          %s1282 = sand.u32 %s323, 1
          %s1283 = smul.addr %s1282, 8
          %s1284 = scalar_lea.vmem [#allocation27], %s1283
          %1285 = dma.done %s1281, 128
        $region143: #{tpu_custom_call.1} parent=138 // pred_fallthru
          _
      $region139: #{tpu_custom_call.1} parent=5 // pred_fallthru
        _
    $region6: #{tpu_custom_call.1} parent=1 // loop_footer
      %s35 = sadd.s32 1, %s31
    $region7: #{tpu_custom_call.1} parent=1 // loop_footer_branch
      %30 = sbr.rel target = $region3
    $region8: #{tpu_custom_call.1} parent=1 // loop_exit
      _
    %1286 = vsyncpa [#allocation7], 1
    %s1287 = scalar_lea.sflag [#allocation7], 1
    %1288 = vsyncpa %s1287, 1
    %1289 = vsyncpa [#allocation10], 1
    %1290 = vsyncpa [#allocation13], 1
    %1291 = vsyncpa [#allocation16], 1
    %1292 = vsyncpa [#allocation19], 1
    %1293 = vsyncpa [#allocation22], 1
    %1294 = vsyncpa [#allocation25], 1
    %1295 = vsyncpa [#allocation8], 1
    %s1296 = scalar_lea.sflag [#allocation8], 1
    %1297 = vsyncpa %s1296, 1

// kernel: tpu_custom_call.1
$region0: #{tpu_custom_call.1}
  #allocation0 [shape = 'u32[]', space=smem, size = 0x4, offset = 0x4, fixed_abs, tag = 'smem constant byte address 0x4 - core index']
  #allocation1 [shape = 'u32[144,128]{1,0:T(1,128)}', space=vmem, size = 0x12000, scoped, tag = 'internal scratch']
  #allocation2 [shape = 'f32[4,8,8]{2,1,0:T(8,128)}', space=vmem, size = 0x4000, scoped, tag = 'scratch operand']
  #allocation3 [shape = 'f32[4,8,8]{2,1,0:T(8,128)}', space=vmem, size = 0x4000, scoped, tag = 'scratch operand']
  #allocation4 [shape = 'f32[4,8,8]{2,1,0:T(8,128)}', space=vmem, size = 0x4000, scoped, tag = 'scratch operand']
  #allocation5 [shape = 'f32[8,32]{1,0:T(8,128)}', space=vmem, size = 0x1000, scoped, tag = 'scratch operand']
  %s0 = inlined_call_operand.hbm [shape: f32[2,8,32], index: 0, kind: input, shape index: {}]
  %s1 = inlined_call_operand.hbm [shape: f32[32,96], index: 1, kind: input, shape index: {}]
  %s2 = inlined_call_operand.hbm [shape: f32[1,32], index: 2, kind: input, shape index: {}]
  %s3 = inlined_call_operand.hbm [shape: f32[4,8,32], index: 3, kind: input, shape index: {}]
  %s4 = inlined_call_operand.hbm [shape: f32[1,32], index: 4, kind: input, shape index: {}]
  %s5 = inlined_call_operand.hbm [shape: f32[1,32], index: 5, kind: input, shape index: {}]
  %s6 = inlined_call_operand.hbm [shape: f32[1,32], index: 6, kind: input, shape index: {}]
  %s7 = inlined_call_operand.hbm [shape: f32[32,64], index: 7, kind: input, shape index: {}]
  %s8 = inlined_call_operand.hbm [shape: f32[1,64], index: 8, kind: input, shape index: {}]
  %s9 = inlined_call_operand.hbm [shape: f32[64,32], index: 9, kind: input, shape index: {}]
  %s10 = inlined_call_operand.hbm [shape: f32[1,32], index: 10, kind: input, shape index: {}]
  %s11 = inlined_call_operand.hbm [shape: f32[1,32], index: 11, kind: input, shape index: {}]
  %s12 = inlined_call_operand.hbm [shape: f32[1,32], index: 12, kind: input, shape index: {}]
  %s13 = inlined_call_operand.hbm [shape: f32[2,8,32], index: 13, kind: output, shape index: {}]
  %s14 = sld [smem:[#allocation0]]
  $region144: #{tpu_custom_call.1} parent=0
    _
  %s16 = ssub.s32 1, %s14
  %s17 = scalar_select 0, %s16, %s14
  $region1: #{tpu_custom_call.1} parent=0
    #allocation6 [shape = 'u8[8192]{0}', space=vmem, size = 0x2000, scoped, tag = 'input window, operand 0']
    #allocation7 [shape = 's32[2]{0}', space=sflag, size = 0x8, scoped, tag = 'scoped memory for tpu_custom_call.1']
    #allocation8 [shape = 's32[2]{0}', space=sflag, size = 0x8, scoped, tag = 'scoped memory for tpu_custom_call.1']
    #allocation9 [shape = 'u8[16384]{0}', space=vmem, size = 0x4000, scoped, tag = 'input window, operand 1, single buffered']
    #allocation10 [shape = 's32[1]{0}', space=sflag, size = 0x4, scoped, tag = 'scoped memory for tpu_custom_call.1']
    #allocation11 [shape = 'u8[512]{0}', space=vmem, size = 0x400, scoped, tag = 'input window, operand 2, single buffered']
    #allocation12 [shape = 'u8[16384]{0}', space=vmem, size = 0x4000, scoped, tag = 'input window, operand 3, single buffered']
    #allocation13 [shape = 's32[1]{0}', space=sflag, size = 0x4, scoped, tag = 'scoped memory for tpu_custom_call.1']
    #allocation14 [shape = 'u8[512]{0}', space=vmem, size = 0x400, scoped, tag = 'input window, operand 4, single buffered']
    #allocation15 [shape = 'u8[512]{0}', space=vmem, size = 0x400, scoped, tag = 'input window, operand 5, single buffered']
    #allocation16 [shape = 's32[1]{0}', space=sflag, size = 0x4, scoped, tag = 'scoped memory for tpu_custom_call.1']
    #allocation17 [shape = 'u8[512]{0}', space=vmem, size = 0x400, scoped, tag = 'input window, operand 6, single buffered']
    #allocation18 [shape = 'u8[16384]{0}', space=vmem, size = 0x4000, scoped, tag = 'input window, operand 7, single buffered']
    #allocation19 [shape = 's32[1]{0}', space=sflag, size = 0x4, scoped, tag = 'scoped memory for tpu_custom_call.1']
    #allocation20 [shape = 'u8[512]{0}', space=vmem, size = 0x400, scoped, tag = 'input window, operand 8, single buffered']
    #allocation21 [shape = 'u8[32768]{0}', space=vmem, size = 0x8000, scoped, tag = 'input window, operand 9, single buffered']
    #allocation22 [shape = 's32[1]{0}', space=sflag, size = 0x4, scoped, tag = 'scoped memory for tpu_custom_call.1']
    #allocation23 [shape = 'u8[512]{0}', space=vmem, size = 0x400, scoped, tag = 'input window, operand 10, single buffered']
    #allocation24 [shape = 'u8[512]{0}', space=vmem, size = 0x400, scoped, tag = 'input window, operand 11, single buffered']
    #allocation25 [shape = 's32[1]{0}', space=sflag, size = 0x4, scoped, tag = 'scoped memory for tpu_custom_call.1']
    #allocation26 [shape = 'u8[512]{0}', space=vmem, size = 0x400, scoped, tag = 'input window, operand 12, single buffered']
    #allocation27 [shape = 'u8[8192]{0}', space=vmem, size = 0x2000, scoped, tag = 'output window, operand 0']
    %18 = vsyncpa [#allocation7], 0
    %s19 = scalar_lea.sflag [#allocation7], 1
    %20 = vsyncpa %s19, 0
    %21 = vsyncpa [#allocation10], 0
    %22 = vsyncpa [#allocation13], 0
    %23 = vsyncpa [#allocation16], 0
    %24 = vsyncpa [#allocation19], 0
    %25 = vsyncpa [#allocation22], 0
    %26 = vsyncpa [#allocation25], 0
    %27 = vsyncpa [#allocation8], 0
    %s28 = scalar_lea.sflag [#allocation8], 1
    %29 = vsyncpa %s28, 0
    loop: start=0, step=1, limit=4
    $region2: #{tpu_custom_call.1} parent=1 // loop_pre_header
      _
    $region3: #{tpu_custom_call.1} parent=1 // loop_header
      %s31 = sphi 0, %s35
      %p32 = scmp.ge.s32.totalorder %s31, 4
      %s41 = sphi 0, %s43
      %s44 = sphi 0, %s41
      %s45 = sphi 0, %s44
      %s61 = sphi 0, %s45
      %s65 = sphi 0, %s65
      %s67 = sphi 0, %s65
      %s68 = sphi 0, %s67
      %s82 = sphi 0, %s68
      %s86 = sphi 0, %s86
      %s88 = sphi 0, %s86
      %s89 = sphi 0, %s88
      %s103 = sphi 0, %s89
      %s107 = sphi 0, %s107
      %s109 = sphi 0, %s107
      %s110 = sphi 0, %s109
      %s124 = sphi 0, %s110
      %s128 = sphi 0, %s128
      %s130 = sphi 0, %s128
      %s131 = sphi 0, %s130
      %s145 = sphi 0, %s131
      %s149 = sphi 0, %s149
      %s151 = sphi 0, %s149
      %s152 = sphi 0, %s151
      %s166 = sphi 0, %s152
      %s170 = sphi 0, %s170
      %s172 = sphi 0, %s170
      %s173 = sphi 0, %s172
      %s187 = sphi 0, %s173
      %s191 = sphi 0, %s191
      %s193 = sphi 0, %s191
      %s194 = sphi 0, %s193
      %s208 = sphi 0, %s194
      %s212 = sphi 0, %s212
      %s214 = sphi 0, %s212
      %s215 = sphi 0, %s214
      %s229 = sphi 0, %s215
      %s233 = sphi 0, %s233
      %s235 = sphi 0, %s233
      %s236 = sphi 0, %s235
      %s250 = sphi 0, %s236
      %s254 = sphi 0, %s254
      %s256 = sphi 0, %s254
      %s257 = sphi 0, %s256
      %s271 = sphi 0, %s257
      %s275 = sphi 0, %s275
      %s277 = sphi 0, %s275
      %s278 = sphi 0, %s277
      %s292 = sphi 0, %s278
      %s296 = sphi 0, %s296
      %s298 = sphi 0, %s296
      %s299 = sphi 0, %s298
      %s313 = sphi 0, %s299
      %s319 = sphi 0, %s321
      %s322 = sphi 0, %s319
      %s323 = sphi 0, %s322
      %s339 = sphi 0, %s323
    $region4: #{tpu_custom_call.1} parent=1 // loop_header_branch
      %34 = sbr.rel (%p32) target = $region8
    $region5: #{tpu_custom_call.1} parent=1 // loop_body
      %s36 = ssub.s32 %s31, 1
      %s37 = ssub.s32 %s31, 2
      %s38 = sadd.s32 %s31, 1
      %s39 = ssub.s32 %s31, %s38
      %p40 = scmp.eq.s32.totalorder %s39, 0
      %s42 = sadd.s32 %s41, 1
      %s43 = scalar_select %p40, %s41, %s42
      %p46 = pneg %p40
      %p47 = scmp.eq.s32.totalorder %s31, 1
      %p48 = por %p46, %p47
      %p49 = scmp.ne.s32.totalorder %s41, %s44
      %p50 = scmp.eq.s32.totalorder %s31, 0
      %p51 = por %p49, %p50
      %p52 = scmp.ne.s32.totalorder %s41, %s44
      %p53 = scmp.eq.s32.totalorder %s36, 1
      %p54 = por %p52, %p53
      %p55 = scmp.ne.s32.totalorder %s44, %s45
      %p56 = scmp.eq.s32.totalorder %s36, 0
      %p57 = por %p55, %p56
      %p58 = scmp.ne.s32.totalorder %s44, %s45
      %p59 = scmp.eq.s32.totalorder %s37, 1
      %p60 = por %p58, %p59
      %p62 = scmp.ne.s32.totalorder %s45, %s61
      %p63 = scmp.eq.s32.totalorder %s37, 0
      %p64 = por %p62, %p63
      %s66 = sadd.s32 %s65, 1
      %p69 = scmp.eq.s32.totalorder %s31, 1
      %p70 = scmp.ne.s32.totalorder %s65, %s67
      %p71 = scmp.eq.s32.totalorder %s31, 0
      %p72 = por %p70, %p71
      %p73 = scmp.ne.s32.totalorder %s65, %s67
      %p74 = scmp.eq.s32.totalorder %s36, 1
      %p75 = por %p73, %p74
      %p76 = scmp.ne.s32.totalorder %s67, %s68
      %p77 = scmp.eq.s32.totalorder %s36, 0
      %p78 = por %p76, %p77
      %p79 = scmp.ne.s32.totalorder %s67, %s68
      %p80 = scmp.eq.s32.totalorder %s37, 1
      %p81 = por %p79, %p80
      %p83 = scmp.ne.s32.totalorder %s68, %s82
      %p84 = scmp.eq.s32.totalorder %s37, 0
      %p85 = por %p83, %p84
      %s87 = sadd.s32 %s86, 1
      %p90 = scmp.eq.s32.totalorder %s31, 1
      %p91 = scmp.ne.s32.totalorder %s86, %s88
      %p92 = scmp.eq.s32.totalorder %s31, 0
      %p93 = por %p91, %p92
      %p94 = scmp.ne.s32.totalorder %s86, %s88
      %p95 = scmp.eq.s32.totalorder %s36, 1
      %p96 = por %p94, %p95
      %p97 = scmp.ne.s32.totalorder %s88, %s89
      %p98 = scmp.eq.s32.totalorder %s36, 0
      %p99 = por %p97, %p98
      %p100 = scmp.ne.s32.totalorder %s88, %s89
      %p101 = scmp.eq.s32.totalorder %s37, 1
      %p102 = por %p100, %p101
      %p104 = scmp.ne.s32.totalorder %s89, %s103
      %p105 = scmp.eq.s32.totalorder %s37, 0
      %p106 = por %p104, %p105
      %s108 = sadd.s32 %s107, 1
      %p111 = scmp.eq.s32.totalorder %s31, 1
      %p112 = scmp.ne.s32.totalorder %s107, %s109
      %p113 = scmp.eq.s32.totalorder %s31, 0
      %p114 = por %p112, %p113
      %p115 = scmp.ne.s32.totalorder %s107, %s109
      %p116 = scmp.eq.s32.totalorder %s36, 1
      %p117 = por %p115, %p116
      %p118 = scmp.ne.s32.totalorder %s109, %s110
      %p119 = scmp.eq.s32.totalorder %s36, 0
      %p120 = por %p118, %p119
      %p121 = scmp.ne.s32.totalorder %s109, %s110
      %p122 = scmp.eq.s32.totalorder %s37, 1
      %p123 = por %p121, %p122
      %p125 = scmp.ne.s32.totalorder %s110, %s124
      %p126 = scmp.eq.s32.totalorder %s37, 0
      %p127 = por %p125, %p126
      %s129 = sadd.s32 %s128, 1
      %p132 = scmp.eq.s32.totalorder %s31, 1
      %p133 = scmp.ne.s32.totalorder %s128, %s130
      %p134 = scmp.eq.s32.totalorder %s31, 0
      %p135 = por %p133, %p134
      %p136 = scmp.ne.s32.totalorder %s128, %s130
      %p137 = scmp.eq.s32.totalorder %s36, 1
      %p138 = por %p136, %p137
      %p139 = scmp.ne.s32.totalorder %s130, %s131
      %p140 = scmp.eq.s32.totalorder %s36, 0
      %p141 = por %p139, %p140
      %p142 = scmp.ne.s32.totalorder %s130, %s131
      %p143 = scmp.eq.s32.totalorder %s37, 1
      %p144 = por %p142, %p143
      %p146 = scmp.ne.s32.totalorder %s131, %s145
      %p147 = scmp.eq.s32.totalorder %s37, 0
      %p148 = por %p146, %p147
      %s150 = sadd.s32 %s149, 1
      %p153 = scmp.eq.s32.totalorder %s31, 1
      %p154 = scmp.ne.s32.totalorder %s149, %s151
      %p155 = scmp.eq.s32.totalorder %s31, 0
      %p156 = por %p154, %p155
      %p157 = scmp.ne.s32.totalorder %s149, %s151
      %p158 = scmp.eq.s32.totalorder %s36, 1
      %p159 = por %p157, %p158
      %p160 = scmp.ne.s32.totalorder %s151, %s152
      %p161 = scmp.eq.s32.totalorder %s36, 0
      %p162 = por %p160, %p161
      %p163 = scmp.ne.s32.totalorder %s151, %s152
      %p164 = scmp.eq.s32.totalorder %s37, 1
      %p165 = por %p163, %p164
      %p167 = scmp.ne.s32.totalorder %s152, %s166
      %p168 = scmp.eq.s32.totalorder %s37, 0
      %p169 = por %p167, %p168
      %s171 = sadd.s32 %s170, 1
      %p174 = scmp.eq.s32.totalorder %s31, 1
      %p175 = scmp.ne.s32.totalorder %s170, %s172
      %p176 = scmp.eq.s32.totalorder %s31, 0
      %p177 = por %p175, %p176
      %p178 = scmp.ne.s32.totalorder %s170, %s172
      %p179 = scmp.eq.s32.totalorder %s36, 1
      %p180 = por %p178, %p179
      %p181 = scmp.ne.s32.totalorder %s172, %s173
      %p182 = scmp.eq.s32.totalorder %s36, 0
      %p183 = por %p181, %p182
      %p184 = scmp.ne.s32.totalorder %s172, %s173
      %p185 = scmp.eq.s32.totalorder %s37, 1
      %p186 = por %p184, %p185
      %p188 = scmp.ne.s32.totalorder %s173, %s187
      %p189 = scmp.eq.s32.totalorder %s37, 0
      %p190 = por %p188, %p189
      %s192 = sadd.s32 %s191, 1
      %p195 = scmp.eq.s32.totalorder %s31, 1
      %p196 = scmp.ne.s32.totalorder %s191, %s193
      %p197 = scmp.eq.s32.totalorder %s31, 0
      %p198 = por %p196, %p197
      %p199 = scmp.ne.s32.totalorder %s191, %s193
      %p200 = scmp.eq.s32.totalorder %s36, 1
      %p201 = por %p199, %p200
      %p202 = scmp.ne.s32.totalorder %s193, %s194
      %p203 = scmp.eq.s32.totalorder %s36, 0
      %p204 = por %p202, %p203
      %p205 = scmp.ne.s32.totalorder %s193, %s194
      %p206 = scmp.eq.s32.totalorder %s37, 1
      %p207 = por %p205, %p206
      %p209 = scmp.ne.s32.totalorder %s194, %s208
      %p210 = scmp.eq.s32.totalorder %s37, 0
      %p211 = por %p209, %p210
      %s213 = sadd.s32 %s212, 1
      %p216 = scmp.eq.s32.totalorder %s31, 1
      %p217 = scmp.ne.s32.totalorder %s212, %s214
      %p218 = scmp.eq.s32.totalorder %s31, 0
      %p219 = por %p217, %p218
      %p220 = scmp.ne.s32.totalorder %s212, %s214
      %p221 = scmp.eq.s32.totalorder %s36, 1
      %p222 = por %p220, %p221
      %p223 = scmp.ne.s32.totalorder %s214, %s215
      %p224 = scmp.eq.s32.totalorder %s36, 0
      %p225 = por %p223, %p224
      %p226 = scmp.ne.s32.totalorder %s214, %s215
      %p227 = scmp.eq.s32.totalorder %s37, 1
      %p228 = por %p226, %p227
      %p230 = scmp.ne.s32.totalorder %s215, %s229
      %p231 = scmp.eq.s32.totalorder %s37, 0
      %p232 = por %p230, %p231
      %s234 = sadd.s32 %s233, 1
      %p237 = scmp.eq.s32.totalorder %s31, 1
      %p238 = scmp.ne.s32.totalorder %s233, %s235
      %p239 = scmp.eq.s32.totalorder %s31, 0
      %p240 = por %p238, %p239
      %p241 = scmp.ne.s32.totalorder %s233, %s235
      %p242 = scmp.eq.s32.totalorder %s36, 1
      %p243 = por %p241, %p242
      %p244 = scmp.ne.s32.totalorder %s235, %s236
      %p245 = scmp.eq.s32.totalorder %s36, 0
      %p246 = por %p244, %p245
      %p247 = scmp.ne.s32.totalorder %s235, %s236
      %p248 = scmp.eq.s32.totalorder %s37, 1
      %p249 = por %p247, %p248
      %p251 = scmp.ne.s32.totalorder %s236, %s250
      %p252 = scmp.eq.s32.totalorder %s37, 0
      %p253 = por %p251, %p252
      %s255 = sadd.s32 %s254, 1
      %p258 = scmp.eq.s32.totalorder %s31, 1
      %p259 = scmp.ne.s32.totalorder %s254, %s256
      %p260 = scmp.eq.s32.totalorder %s31, 0
      %p261 = por %p259, %p260
      %p262 = scmp.ne.s32.totalorder %s254, %s256
      %p263 = scmp.eq.s32.totalorder %s36, 1
      %p264 = por %p262, %p263
      %p265 = scmp.ne.s32.totalorder %s256, %s257
      %p266 = scmp.eq.s32.totalorder %s36, 0
      %p267 = por %p265, %p266
      %p268 = scmp.ne.s32.totalorder %s256, %s257
      %p269 = scmp.eq.s32.totalorder %s37, 1
      %p270 = por %p268, %p269
      %p272 = scmp.ne.s32.totalorder %s257, %s271
      %p273 = scmp.eq.s32.totalorder %s37, 0
      %p274 = por %p272, %p273
      %s276 = sadd.s32 %s275, 1
      %p279 = scmp.eq.s32.totalorder %s31, 1
      %p280 = scmp.ne.s32.totalorder %s275, %s277
      %p281 = scmp.eq.s32.totalorder %s31, 0
      %p282 = por %p280, %p281
      %p283 = scmp.ne.s32.totalorder %s275, %s277
      %p284 = scmp.eq.s32.totalorder %s36, 1
      %p285 = por %p283, %p284
      %p286 = scmp.ne.s32.totalorder %s277, %s278
      %p287 = scmp.eq.s32.totalorder %s36, 0
      %p288 = por %p286, %p287
      %p289 = scmp.ne.s32.totalorder %s277, %s278
      %p290 = scmp.eq.s32.totalorder %s37, 1
      %p291 = por %p289, %p290
      %p293 = scmp.ne.s32.totalorder %s278, %s292
      %p294 = scmp.eq.s32.totalorder %s37, 0
      %p295 = por %p293, %p294
      %s297 = sadd.s32 %s296, 1
      %p300 = scmp.eq.s32.totalorder %s31, 1
      %p301 = scmp.ne.s32.totalorder %s296, %s298
      %p302 = scmp.eq.s32.totalorder %s31, 0
      %p303 = por %p301, %p302
      %p304 = scmp.ne.s32.totalorder %s296, %s298
      %p305 = scmp.eq.s32.totalorder %s36, 1
      %p306 = por %p304, %p305
      %p307 = scmp.ne.s32.totalorder %s298, %s299
      %p308 = scmp.eq.s32.totalorder %s36, 0
      %p309 = por %p307, %p308
      %p310 = scmp.ne.s32.totalorder %s298, %s299
      %p311 = scmp.eq.s32.totalorder %s37, 1
      %p312 = por %p310, %p311
      %p314 = scmp.ne.s32.totalorder %s299, %s313
      %p315 = scmp.eq.s32.totalorder %s37, 0
      %p316 = por %p314, %p315
      %s317 = ssub.s32 %s31, %s38
      %p318 = scmp.eq.s32.totalorder %s317, 0
      %s320 = sadd.s32 %s319, 1
      %s321 = scalar_select %p318, %s319, %s320
      %p324 = pneg %p318
      %p325 = scmp.eq.s32.totalorder %s31, 1
      %p326 = por %p324, %p325
      %p327 = scmp.ne.s32.totalorder %s319, %s322
      %p328 = scmp.eq.s32.totalorder %s31, 0
      %p329 = por %p327, %p328
      %p330 = scmp.ne.s32.totalorder %s319, %s322
      %p331 = scmp.eq.s32.totalorder %s36, 1
      %p332 = por %p330, %p331
      %p333 = scmp.ne.s32.totalorder %s322, %s323
      %p334 = scmp.eq.s32.totalorder %s36, 0
      %p335 = por %p333, %p334
      %p336 = scmp.ne.s32.totalorder %s322, %s323
      %p337 = scmp.eq.s32.totalorder %s37, 1
      %p338 = por %p336, %p337
      %p340 = scmp.ne.s32.totalorder %s323, %s339
      %p341 = scmp.eq.s32.totalorder %s37, 0
      %p342 = por %p340, %p341
      %p343 = scmp.le.s32.totalorder 1, %s31
      %p344 = scmp.lt.s32.totalorder %s31, 3
      %p345 = pnand %p343, %p344
      %p346 = pneg %p345
      // Predicated region
      $region9: #{tpu_custom_call.1} parent=5 // pred_check
        _
      $region10: #{tpu_custom_call.1} parent=5 // pred_check_branch
        %348 = sbr.rel (%p345) target = $region12
      $region11: #{tpu_custom_call.1} parent=5 // pred_region
        %s349 = ssub.s32 %s31, 1
        // Predicated region
        $region13: #{tpu_custom_call.1} parent=11 // pred_check
          %p350 = pneg %p78
        $region14: #{tpu_custom_call.1} parent=11 // pred_check_branch
          %352 = sbr.rel (%p350) target = $region16
        $region15: #{tpu_custom_call.1} parent=11 // pred_region
          %s354 = ssub.s32 512, 512
          %355 = vsyncadd [#allocation10], %s354
          %s356 = sshll.u32 [#allocation9], 4
          %s357 = int_to_ptr.vmem [resolvable:$true] %s356
          %362 = dma.hbm_to_vmem [thread:$0]  %s1, 512, %s357, [#allocation10], 128, 128, 8
        $region16: #{tpu_custom_call.1} parent=11 // pred_fallthru
          _
        // Predicated region
        $region17: #{tpu_custom_call.1} parent=11 // pred_check
          %p363 = pneg %p99
        $region18: #{tpu_custom_call.1} parent=11 // pred_check_branch
          %365 = sbr.rel (%p363) target = $region20
        $region19: #{tpu_custom_call.1} parent=11 // pred_region
          %s367 = ssub.s32 16, 16
          %368 = vsyncadd [#allocation10], %s367
          %s370 = sshll.u32 [#allocation11], 4
          %s371 = int_to_ptr.vmem [resolvable:$true] %s370
          %373 = dma.hbm_to_vmem [thread:$0]  %s2, 16, %s371, [#allocation10]
        $region20: #{tpu_custom_call.1} parent=11 // pred_fallthru
          _
        // Predicated region
        $region21: #{tpu_custom_call.1} parent=11 // pred_check
          %p374 = pneg %p120
        $region22: #{tpu_custom_call.1} parent=11 // pred_check_branch
          %376 = sbr.rel (%p374) target = $region24
        $region23: #{tpu_custom_call.1} parent=11 // pred_region
          %s378 = ssub.s32 512, 512
          %379 = vsyncadd [#allocation13], %s378
          %s380 = sshll.u32 [#allocation12], 4
          %s381 = int_to_ptr.vmem [resolvable:$true] %s380
          %386 = dma.hbm_to_vmem [thread:$0]  %s3, 512, %s381, [#allocation13], 128, 128, 8
        $region24: #{tpu_custom_call.1} parent=11 // pred_fallthru
          _
        // Predicated region
        $region25: #{tpu_custom_call.1} parent=11 // pred_check
          %p387 = pneg %p141
        $region26: #{tpu_custom_call.1} parent=11 // pred_check_branch
          %389 = sbr.rel (%p387) target = $region28
        $region27: #{tpu_custom_call.1} parent=11 // pred_region
          %s391 = ssub.s32 16, 16
          %392 = vsyncadd [#allocation13], %s391
          %s394 = sshll.u32 [#allocation14], 4
          %s395 = int_to_ptr.vmem [resolvable:$true] %s394
          %397 = dma.hbm_to_vmem [thread:$0]  %s4, 16, %s395, [#allocation13]
        $region28: #{tpu_custom_call.1} parent=11 // pred_fallthru
          _
        // Predicated region
        $region29: #{tpu_custom_call.1} parent=11 // pred_check
          %p398 = pneg %p162
        $region30: #{tpu_custom_call.1} parent=11 // pred_check_branch
          %400 = sbr.rel (%p398) target = $region32
        $region31: #{tpu_custom_call.1} parent=11 // pred_region
          %s402 = ssub.s32 16, 16
          %403 = vsyncadd [#allocation16], %s402
          %s405 = sshll.u32 [#allocation15], 4
          %s406 = int_to_ptr.vmem [resolvable:$true] %s405
          %408 = dma.hbm_to_vmem [thread:$0]  %s5, 16, %s406, [#allocation16]
        $region32: #{tpu_custom_call.1} parent=11 // pred_fallthru
          _
        // Predicated region
        $region33: #{tpu_custom_call.1} parent=11 // pred_check
          %p409 = pneg %p183
        $region34: #{tpu_custom_call.1} parent=11 // pred_check_branch
          %411 = sbr.rel (%p409) target = $region36
        $region35: #{tpu_custom_call.1} parent=11 // pred_region
          %s413 = ssub.s32 16, 16
          %414 = vsyncadd [#allocation16], %s413
          %s416 = sshll.u32 [#allocation17], 4
          %s417 = int_to_ptr.vmem [resolvable:$true] %s416
          %419 = dma.hbm_to_vmem [thread:$0]  %s6, 16, %s417, [#allocation16]
        $region36: #{tpu_custom_call.1} parent=11 // pred_fallthru
          _
        // Predicated region
        $region37: #{tpu_custom_call.1} parent=11 // pred_check
          %p420 = pneg %p204
        $region38: #{tpu_custom_call.1} parent=11 // pred_check_branch
          %422 = sbr.rel (%p420) target = $region40
        $region39: #{tpu_custom_call.1} parent=11 // pred_region
          %s424 = ssub.s32 512, 512
          %425 = vsyncadd [#allocation19], %s424
          %s426 = sshll.u32 [#allocation18], 4
          %s427 = int_to_ptr.vmem [resolvable:$true] %s426
          %432 = dma.hbm_to_vmem [thread:$0]  %s7, 512, %s427, [#allocation19], 128, 128, 8
        $region40: #{tpu_custom_call.1} parent=11 // pred_fallthru
          _
        // Predicated region
        $region41: #{tpu_custom_call.1} parent=11 // pred_check
          %p433 = pneg %p225
        $region42: #{tpu_custom_call.1} parent=11 // pred_check_branch
          %435 = sbr.rel (%p433) target = $region44
        $region43: #{tpu_custom_call.1} parent=11 // pred_region
          %s437 = ssub.s32 16, 16
          %438 = vsyncadd [#allocation19], %s437
          %s440 = sshll.u32 [#allocation20], 4
          %s441 = int_to_ptr.vmem [resolvable:$true] %s440
          %443 = dma.hbm_to_vmem [thread:$0]  %s8, 16, %s441, [#allocation19]
        $region44: #{tpu_custom_call.1} parent=11 // pred_fallthru
          _
        // Predicated region
        $region45: #{tpu_custom_call.1} parent=11 // pred_check
          %p444 = pneg %p246
        $region46: #{tpu_custom_call.1} parent=11 // pred_check_branch
          %446 = sbr.rel (%p444) target = $region48
        $region47: #{tpu_custom_call.1} parent=11 // pred_region
          %s448 = ssub.s32 1024, 1024
          %449 = vsyncadd [#allocation22], %s448
          %s450 = sshll.u32 [#allocation21], 4
          %s451 = int_to_ptr.vmem [resolvable:$true] %s450
          %456 = dma.hbm_to_vmem [thread:$0]  %s9, 1024, %s451, [#allocation22], 128, 128, 8
        $region48: #{tpu_custom_call.1} parent=11 // pred_fallthru
          _
        // Predicated region
        $region49: #{tpu_custom_call.1} parent=11 // pred_check
          %p457 = pneg %p267
        $region50: #{tpu_custom_call.1} parent=11 // pred_check_branch
          %459 = sbr.rel (%p457) target = $region52
        $region51: #{tpu_custom_call.1} parent=11 // pred_region
          %s461 = ssub.s32 16, 16
          %462 = vsyncadd [#allocation22], %s461
          %s464 = sshll.u32 [#allocation23], 4
          %s465 = int_to_ptr.vmem [resolvable:$true] %s464
          %467 = dma.hbm_to_vmem [thread:$0]  %s10, 16, %s465, [#allocation22]
        $region52: #{tpu_custom_call.1} parent=11 // pred_fallthru
          _
        // Predicated region
        $region53: #{tpu_custom_call.1} parent=11 // pred_check
          %p468 = pneg %p288
        $region54: #{tpu_custom_call.1} parent=11 // pred_check_branch
          %470 = sbr.rel (%p468) target = $region56
        $region55: #{tpu_custom_call.1} parent=11 // pred_region
          %s472 = ssub.s32 16, 16
          %473 = vsyncadd [#allocation25], %s472
          %s475 = sshll.u32 [#allocation24], 4
          %s476 = int_to_ptr.vmem [resolvable:$true] %s475
          %478 = dma.hbm_to_vmem [thread:$0]  %s11, 16, %s476, [#allocation25]
        $region56: #{tpu_custom_call.1} parent=11 // pred_fallthru
          _
        // Predicated region
        $region57: #{tpu_custom_call.1} parent=11 // pred_check
          %p479 = pneg %p309
        $region58: #{tpu_custom_call.1} parent=11 // pred_check_branch
          %481 = sbr.rel (%p479) target = $region60
        $region59: #{tpu_custom_call.1} parent=11 // pred_region
          %s483 = ssub.s32 16, 16
          %484 = vsyncadd [#allocation25], %s483
          %s486 = sshll.u32 [#allocation26], 4
          %s487 = int_to_ptr.vmem [resolvable:$true] %s486
          %489 = dma.hbm_to_vmem [thread:$0]  %s12, 16, %s487, [#allocation25]
        $region60: #{tpu_custom_call.1} parent=11 // pred_fallthru
          _
      $region12: #{tpu_custom_call.1} parent=5 // pred_fallthru
        _
      %p490 = scmp.lt.s32.totalorder %s31, 2
      // Predicated region
      $region61: #{tpu_custom_call.1} parent=5 // pred_check
        %p491 = pneg %p490
      $region62: #{tpu_custom_call.1} parent=5 // pred_check_branch
        %493 = sbr.rel (%p491) target = $region64
      $region63: #{tpu_custom_call.1} parent=5 // pred_region
        // Predicated region
        $region65: #{tpu_custom_call.1} parent=63 // pred_check
          %p494 = pneg %p51
        $region66: #{tpu_custom_call.1} parent=63 // pred_check_branch
          %496 = sbr.rel (%p494) target = $region68
        $region67: #{tpu_custom_call.1} parent=63 // pred_region
          %s497 = sand.u32 %s41, 1
          %s498 = scalar_lea.sflag [#allocation7], %s497
          %s499 = sand.u32 %s41, 1
          %s500 = smul.addr %s499, 8
          %s501 = scalar_lea.vmem [#allocation6], %s500
          %s503 = ssub.s32 128, 128
          %504 = vsyncadd %s498, %s503
          %s505 = smul.addr %s31, 128
          %s506 = scalar_lea.hbm %s0, %s505
          %s508 = sshll.u32 %s501, 4
          %s509 = int_to_ptr.vmem [resolvable:$true] %s508
          %511 = dma.hbm_to_vmem [thread:$0]  %s506, 128, %s509, %s498
        $region68: #{tpu_custom_call.1} parent=63 // pred_fallthru
          _
      $region64: #{tpu_custom_call.1} parent=5 // pred_fallthru
        _
      %p512 = scmp.le.s32.totalorder 1, %s31
      %p513 = scmp.lt.s32.totalorder %s31, 3
      %p514 = pnand %p512, %p513
      %p515 = pneg %p514
      // Predicated region
      $region69: #{tpu_custom_call.1} parent=5 // pred_check
        _
      $region70: #{tpu_custom_call.1} parent=5 // pred_check_branch
        %517 = sbr.rel (%p514) target = $region72
      $region71: #{tpu_custom_call.1} parent=5 // pred_region
        %s518 = ssub.s32 %s31, 1
        %s519 = sand.u32 %s44, 1
        %s520 = scalar_lea.sflag [#allocation7], %s519
        %s521 = sand.u32 %s44, 1
        %s522 = smul.addr %s521, 8
        %s523 = scalar_lea.vmem [#allocation6], %s522
        // Predicated region
        $region73: #{tpu_custom_call.1} parent=71 // pred_check
          %p524 = pneg %p57
        $region74: #{tpu_custom_call.1} parent=71 // pred_check_branch
          %526 = sbr.rel (%p524) target = $region76
        $region75: #{tpu_custom_call.1} parent=71 // pred_region
          %527 = dma.done %s520, 128
        $region76: #{tpu_custom_call.1} parent=71 // pred_fallthru
          _
        // Predicated region
        $region77: #{tpu_custom_call.1} parent=71 // pred_check
          %p528 = pneg %p78
        $region78: #{tpu_custom_call.1} parent=71 // pred_check_branch
          %530 = sbr.rel (%p528) target = $region80
        $region79: #{tpu_custom_call.1} parent=71 // pred_region
          %531 = dma.done [#allocation10], 512
        $region80: #{tpu_custom_call.1} parent=71 // pred_fallthru
          _
        // Predicated region
        $region81: #{tpu_custom_call.1} parent=71 // pred_check
          %p532 = pneg %p99
        $region82: #{tpu_custom_call.1} parent=71 // pred_check_branch
          %534 = sbr.rel (%p532) target = $region84
        $region83: #{tpu_custom_call.1} parent=71 // pred_region
          %535 = dma.done [#allocation10], 16
        $region84: #{tpu_custom_call.1} parent=71 // pred_fallthru
          _
        // Predicated region
        $region85: #{tpu_custom_call.1} parent=71 // pred_check
          %p536 = pneg %p120
        $region86: #{tpu_custom_call.1} parent=71 // pred_check_branch
          %538 = sbr.rel (%p536) target = $region88
        $region87: #{tpu_custom_call.1} parent=71 // pred_region
          %539 = dma.done [#allocation13], 512
        $region88: #{tpu_custom_call.1} parent=71 // pred_fallthru
          _
        // Predicated region
        $region89: #{tpu_custom_call.1} parent=71 // pred_check
          %p540 = pneg %p141
        $region90: #{tpu_custom_call.1} parent=71 // pred_check_branch
          %542 = sbr.rel (%p540) target = $region92
        $region91: #{tpu_custom_call.1} parent=71 // pred_region
          %543 = dma.done [#allocation13], 16
        $region92: #{tpu_custom_call.1} parent=71 // pred_fallthru
          _
        // Predicated region
        $region93: #{tpu_custom_call.1} parent=71 // pred_check
          %p544 = pneg %p162
        $region94: #{tpu_custom_call.1} parent=71 // pred_check_branch
          %546 = sbr.rel (%p544) target = $region96
        $region95: #{tpu_custom_call.1} parent=71 // pred_region
          %547 = dma.done [#allocation16], 16
        $region96: #{tpu_custom_call.1} parent=71 // pred_fallthru
          _
        // Predicated region
        $region97: #{tpu_custom_call.1} parent=71 // pred_check
          %p548 = pneg %p183
        $region98: #{tpu_custom_call.1} parent=71 // pred_check_branch
          %550 = sbr.rel (%p548) target = $region100
        $region99: #{tpu_custom_call.1} parent=71 // pred_region
          %551 = dma.done [#allocation16], 16
        $region100: #{tpu_custom_call.1} parent=71 // pred_fallthru
          _
        // Predicated region
        $region101: #{tpu_custom_call.1} parent=71 // pred_check
          %p552 = pneg %p204
        $region102: #{tpu_custom_call.1} parent=71 // pred_check_branch
          %554 = sbr.rel (%p552) target = $region104
        $region103: #{tpu_custom_call.1} parent=71 // pred_region
          %555 = dma.done [#allocation19], 512
        $region104: #{tpu_custom_call.1} parent=71 // pred_fallthru
          _
        // Predicated region
        $region105: #{tpu_custom_call.1} parent=71 // pred_check
          %p556 = pneg %p225
        $region106: #{tpu_custom_call.1} parent=71 // pred_check_branch
          %558 = sbr.rel (%p556) target = $region108
        $region107: #{tpu_custom_call.1} parent=71 // pred_region
          %559 = dma.done [#allocation19], 16
        $region108: #{tpu_custom_call.1} parent=71 // pred_fallthru
          _
        // Predicated region
        $region109: #{tpu_custom_call.1} parent=71 // pred_check
          %p560 = pneg %p246
        $region110: #{tpu_custom_call.1} parent=71 // pred_check_branch
          %562 = sbr.rel (%p560) target = $region112
        $region111: #{tpu_custom_call.1} parent=71 // pred_region
          %563 = dma.done [#allocation22], 1024
        $region112: #{tpu_custom_call.1} parent=71 // pred_fallthru
          _
        // Predicated region
        $region113: #{tpu_custom_call.1} parent=71 // pred_check
          %p564 = pneg %p267
        $region114: #{tpu_custom_call.1} parent=71 // pred_check_branch
          %566 = sbr.rel (%p564) target = $region116
        $region115: #{tpu_custom_call.1} parent=71 // pred_region
          %567 = dma.done [#allocation22], 16
        $region116: #{tpu_custom_call.1} parent=71 // pred_fallthru
          _
        // Predicated region
        $region117: #{tpu_custom_call.1} parent=71 // pred_check
          %p568 = pneg %p288
        $region118: #{tpu_custom_call.1} parent=71 // pred_check_branch
          %570 = sbr.rel (%p568) target = $region120
        $region119: #{tpu_custom_call.1} parent=71 // pred_region
          %571 = dma.done [#allocation25], 16
        $region120: #{tpu_custom_call.1} parent=71 // pred_fallthru
          _
        // Predicated region
        $region121: #{tpu_custom_call.1} parent=71 // pred_check
          %p572 = pneg %p309
        $region122: #{tpu_custom_call.1} parent=71 // pred_check_branch
          %574 = sbr.rel (%p572) target = $region124
        $region123: #{tpu_custom_call.1} parent=71 // pred_region
          %575 = dma.done [#allocation25], 16
        $region124: #{tpu_custom_call.1} parent=71 // pred_fallthru
          _
        %s576 = sand.u32 %s44, 1
        %s577 = scalar_lea.sflag [#allocation7], %s576
        %s578 = sand.u32 %s44, 1
        %s579 = smul.addr %s578, 8
        %s580 = scalar_lea.vmem [#allocation6], %s579
        %p581 = pneg %p57
        %p582 = pneg %p54
        %p583 = pneg %p78
        %p584 = pneg %p75
        %p585 = pneg %p99
        %p586 = pneg %p96
        %p587 = pneg %p120
        %p588 = pneg %p117
        %p589 = pneg %p141
        %p590 = pneg %p138
        %p591 = pneg %p162
        %p592 = pneg %p159
        %p593 = pneg %p183
        %p594 = pneg %p180
        %p595 = pneg %p204
        %p596 = pneg %p201
        %p597 = pneg %p225
        %p598 = pneg %p222
        %p599 = pneg %p246
        %p600 = pneg %p243
        %p601 = pneg %p267
        %p602 = pneg %p264
        %p603 = pneg %p288
        %p604 = pneg %p285
        %p605 = pneg %p309
        %p606 = pneg %p306
        %p607 = pneg %p335
        %p608 = pneg %p332
        %s609 = sand.u32 %s322, 1
        %s610 = scalar_lea.sflag [#allocation8], %s609
        %s611 = sand.u32 %s322, 1
        %s612 = smul.addr %s611, 8
        %s613 = scalar_lea.vmem [#allocation27], %s612
        %v614 = vld [vmem:[%s523] sm:$0xff]
        %v615 = vld [vmem:[#allocation11] sm:$0x1]
        %v616 = vld [vmem:[#allocation9] sm:$0xff]
        %v617 = vld [vmem:[#allocation9 + $0x8] sm:$0xff]
        %v618 = vld [vmem:[#allocation9 + $0x10] sm:$0xff]
        %v619 = vld [vmem:[#allocation9 + $0x18] sm:$0xff]
        %vm620 = vcmask 261120
        %v622 = vsel %vm620, %v614, 0
        %624 = vmatprep.subr.mxu0 0.0
        %625 = vmatpush1.msra.mxu0 %v616
        %626 = vmatprep.subr.mxu0 0.0
        %627 = vmatpush1.msra.mxu0 %v617
        %628 = vmatprep.subr.mxu0 0.0
        %629 = vmatpush1.msra.mxu0 %v618
        %630 = vmatprep.subr.mxu0 0.0
        %631 = vmatpush1.msra.mxu0 %v619
        %632 = vmatprep.subr.mxu0 0.0
        %633 = vmatpush1.msra.mxu0 0.0
        %634 = vmatprep.subr.mxu0 0.0
        %635 = vmatpush1.msra.mxu0 0.0
        %636 = vmatprep.subr.mxu0 0.0
        %637 = vmatpush1.msra.mxu0 0.0
        %638 = vmatprep.subr.mxu0 0.0
        %639 = vmatpush1.msra.mxu0 0.0
        %640 = vmatprep.subr.mxu0 0.0
        %641 = vmatpush1.msra.mxu0 0.0
        %642 = vmatprep.subr.mxu0 0.0
        %643 = vmatpush1.msra.mxu0 0.0
        %644 = vmatprep.subr.mxu0 0.0
        %645 = vmatpush1.msra.mxu0 0.0
        %646 = vmatprep.subr.mxu0 0.0
        %647 = vmatpush1.msra.mxu0 0.0
        %648 = vmatprep.subr.mxu0 0.0
        %649 = vmatpush1.msra.mxu0 0.0
        %650 = vmatprep.subr.mxu0 0.0
        %651 = vmatpush1.msra.mxu0 0.0
        %652 = vmatprep.subr.mxu0 0.0
        %653 = vmatpush1.msra.mxu0 0.0
        %654 = vmatprep.subr.mxu0 0.0
        %655 = vmatpush1.msra.mxu0 0.0
        %656 = vmatprep.subr.mxu0 0.0
        %657 = vmatpush1.msra.mxu0 0.0
        %658 = vmatprep.subr.mxu0 0.0
        %659 = vmatpush1.msra.mxu0 0.0
        %660 = vmatprep.subr.mxu0 0.0
        %661 = vmatpush1.msra.mxu0 0.0
        %662 = vmatprep.subr.mxu0 0.0
        %663 = vmatpush1.msra.mxu0 0.0
        %664 = vmatprep.subr.mxu0 0.0
        %665 = vmatpush1.msra.mxu0 0.0
        %666 = vmatprep.subr.mxu0 0.0
        %667 = vmatpush1.msra.mxu0 0.0
        %668 = vmatprep.subr.mxu0 0.0
        %669 = vmatpush1.msra.mxu0 0.0
        %670 = vmatprep.subr.mxu0 0.0
        %671 = vmatpush1.msra.mxu0 0.0
        %672 = vmatprep.subr.mxu0 0.0
        %673 = vmatpush1.msra.mxu0 0.0
        %674 = vmatprep.subr.mxu0 0.0
        %675 = vmatpush1.msra.mxu0 0.0
        %676 = vmatprep.subr.mxu0 0.0
        %677 = vmatpush1.msra.mxu0 0.0
        %678 = vmatprep.subr.mxu0 0.0
        %679 = vmatpush1.msra.mxu0 0.0
        %680 = vmatprep.subr.mxu0 0.0
        %681 = vmatpush1.msra.mxu0 0.0
        %682 = vmatprep.subr.mxu0 0.0
        %683 = vmatpush1.msra.mxu0 0.0
        %684 = vmatprep.subr.mxu0 0.0
        %685 = vmatpush1.msra.mxu0 0.0
        %686 = vmatprep.subr.mxu0 0.0
        %687 = vmatpush1.msra.mxu0 0.0
        %688 = vmatprep.mubr.f32.mxu0 0.0
        %689 = vmatmul.mubr.f32.gmra.mrb[0].mxu0 %v622
        %v690 = vpop.f32.mrb[0].mxu0
        %v691 = vadd.f32 0.0, %v690
        %v692 = vpop.f32.mrb[0].mxu0
        %693 = vdwg.mxu0
        %v695 = vlaneseq
        %v696 = vshrl.u32 %v695, 7
        %v697 = vsub.s32 0, %v696
        %v698 = vrot.slane %v615, %v697
        %v700 = vadd.f32 %v691, %v698
        %vm701 = vcmask 64512
        %702 = vst.msk [vmem:[#allocation2] sm:$0xff] %vm701, %v700
        %704 = vrot.lane.b32.xlu0 %v700, 120
        %v705 = vpop.permute.xlu0 %704
        %s707 = scalar_lea.vmem [#allocation2], 8
        %708 = vst.msk [vmem:[%s707] sm:$0xff] %vm701, %v705
        %709 = vrot.lane.b32.xlu0 %v700, 112
        %v710 = vpop.permute.xlu0 %709
        %s712 = scalar_lea.vmem [#allocation2], 16
        %713 = vst.msk [vmem:[%s712] sm:$0xff] %vm701, %v710
        %714 = vrot.lane.b32.xlu0 %v700, 104
        %v715 = vpop.permute.xlu0 %714
        %s717 = scalar_lea.vmem [#allocation2], 24
        %718 = vst.msk [vmem:[%s717] sm:$0xff] %vm701, %v715
        %720 = vrot.lane.b32.xlu0 %v691, 96
        %v721 = vpop.permute.xlu0 %720
        %723 = vst.msk [vmem:[#allocation3] sm:$0xff] %vm701, %v721
        %724 = vrot.lane.b32.xlu0 %v691, 88
        %v725 = vpop.permute.xlu0 %724
        %s727 = scalar_lea.vmem [#allocation3], 8
        %728 = vst.msk [vmem:[%s727] sm:$0xff] %vm701, %v725
        %729 = vrot.lane.b32.xlu0 %v691, 80
        %v730 = vpop.permute.xlu0 %729
        %s732 = scalar_lea.vmem [#allocation3], 16
        %733 = vst.msk [vmem:[%s732] sm:$0xff] %vm701, %v730
        %734 = vrot.lane.b32.xlu0 %v691, 72
        %v735 = vpop.permute.xlu0 %734
        %s737 = scalar_lea.vmem [#allocation3], 24
        %738 = vst.msk [vmem:[%s737] sm:$0xff] %vm701, %v735
        %739 = vrot.lane.b32.xlu0 %v691, 64
        %v740 = vpop.permute.xlu0 %739
        %742 = vst.msk [vmem:[#allocation4] sm:$0xff] %vm701, %v740
        %743 = vrot.lane.b32.xlu0 %v691, 56
        %v744 = vpop.permute.xlu0 %743
        %s746 = scalar_lea.vmem [#allocation4], 8
        %747 = vst.msk [vmem:[%s746] sm:$0xff] %vm701, %v744
        %748 = vrot.lane.b32.xlu0 %v691, 48
        %v749 = vpop.permute.xlu0 %748
        %s751 = scalar_lea.vmem [#allocation4], 16
        %752 = vst.msk [vmem:[%s751] sm:$0xff] %vm701, %v749
        %753 = vrot.lane.b32.xlu0 %v691, 40
        %v754 = vpop.permute.xlu0 %753
        %s756 = scalar_lea.vmem [#allocation4], 24
        %757 = vst.msk [vmem:[%s756] sm:$0xff] %vm701, %v754
        %v758 = vld [vmem:[#allocation14] sm:$0x1]
        %v760 = vlaneseq
        %v761 = vshrl.u32 %v760, 7
        %v762 = vsub.s32 0, %v761
        %v763 = vrot.slane %v758, %v762
        %v765 = vadd.f32 %v614, %v763
        %766 = vst.msk [vmem:[#allocation5] sm:$0xff] %vm620, %v765
        loop: start=0, step=1, limit=4
        $region125: #{tpu_custom_call.1} parent=71 // loop_pre_header
          _
        $region126: #{tpu_custom_call.1} parent=71 // loop_header
          %s768 = sphi 0, %s772
          %p769 = scmp.ge.s32.totalorder %s768, 4
        $region127: #{tpu_custom_call.1} parent=71 // loop_header_branch
          %771 = sbr.rel (%p769) target = $region131
        $region128: #{tpu_custom_call.1} parent=71 // loop_body
          %s773 = smul.u32 %s768, 8
          %s774 = scalar_lea.vmem [#allocation2], %s773
          %v775 = vld [vmem:[%s774] sm:$0xff]
          %s776 = scalar_lea.vmem [#allocation3], %s773
          %v777 = vld [vmem:[%s776] sm:$0xff]
          %s778 = scalar_lea.vmem [#allocation4], %s773
          %v779 = vld [vmem:[%s778] sm:$0xff]
          %v781 = vsel %vm701, %v775, 0
          %v784 = vsel %vm701, %v777, 0
          %786 = vmatprep.subr.mxu0 0.0
          %787 = vmatpush1.xpose.msra.mxu0 %v784
          %788 = vmatprep.subr.mxu0 0.0
          %789 = vmatpush1.xpose.msra.mxu0 0.0
          %790 = vmatprep.subr.mxu0 0.0
          %791 = vmatpush1.xpose.msra.mxu0 0.0
          %792 = vmatprep.subr.mxu0 0.0
          %793 = vmatpush1.xpose.msra.mxu0 0.0
          %794 = vmatprep.subr.mxu0 0.0
          %795 = vmatpush1.xpose.msra.mxu0 0.0
          %796 = vmatprep.subr.mxu0 0.0
          %797 = vmatpush1.xpose.msra.mxu0 0.0
          %798 = vmatprep.subr.mxu0 0.0
          %799 = vmatpush1.xpose.msra.mxu0 0.0
          %800 = vmatprep.subr.mxu0 0.0
          %801 = vmatpush1.xpose.msra.mxu0 0.0
          %802 = vmatprep.subr.mxu0 0.0
          %803 = vmatpush1.xpose.msra.mxu0 0.0
          %804 = vmatprep.subr.mxu0 0.0
          %805 = vmatpush1.xpose.msra.mxu0 0.0
          %806 = vmatprep.subr.mxu0 0.0
          %807 = vmatpush1.xpose.msra.mxu0 0.0
          %808 = vmatprep.subr.mxu0 0.0
          %809 = vmatpush1.xpose.msra.mxu0 0.0
          %810 = vmatprep.subr.mxu0 0.0
          %811 = vmatpush1.xpose.msra.mxu0 0.0
          %812 = vmatprep.subr.mxu0 0.0
          %813 = vmatpush1.xpose.msra.mxu0 0.0
          %814 = vmatprep.subr.mxu0 0.0
          %815 = vmatpush1.xpose.msra.mxu0 0.0
          %816 = vmatprep.subr.mxu0 0.0
          %817 = vmatpush1.xpose.msra.mxu0 0.0
          %818 = vmatprep.subr.mxu0 0.0
          %819 = vmatpush1.xpose.msra.mxu0 0.0
          %820 = vmatprep.subr.mxu0 0.0
          %821 = vmatpush1.xpose.msra.mxu0 0.0
          %822 = vmatprep.subr.mxu0 0.0
          %823 = vmatpush1.xpose.msra.mxu0 0.0
          %824 = vmatprep.subr.mxu0 0.0
          %825 = vmatpush1.xpose.msra.mxu0 0.0
          %826 = vmatprep.subr.mxu0 0.0
          %827 = vmatpush1.xpose.msra.mxu0 0.0
          %828 = vmatprep.subr.mxu0 0.0
          %829 = vmatpush1.xpose.msra.mxu0 0.0
          %830 = vmatprep.subr.mxu0 0.0
          %831 = vmatpush1.xpose.msra.mxu0 0.0
          %832 = vmatprep.subr.mxu0 0.0
          %833 = vmatpush1.xpose.msra.mxu0 0.0
          %834 = vmatprep.subr.mxu0 0.0
          %835 = vmatpush1.xpose.msra.mxu0 0.0
          %836 = vmatprep.subr.mxu0 0.0
          %837 = vmatpush1.xpose.msra.mxu0 0.0
          %838 = vmatprep.subr.mxu0 0.0
          %839 = vmatpush1.xpose.msra.mxu0 0.0
          %840 = vmatprep.subr.mxu0 0.0
          %841 = vmatpush1.xpose.msra.mxu0 0.0
          %842 = vmatprep.subr.mxu0 0.0
          %843 = vmatpush1.xpose.msra.mxu0 0.0
          %844 = vmatprep.subr.mxu0 0.0
          %845 = vmatpush1.xpose.msra.mxu0 0.0
          %846 = vmatprep.subr.mxu0 0.0
          %847 = vmatpush1.xpose.msra.mxu0 0.0
          %848 = vmatprep.subr.mxu0 0.0
          %849 = vmatpush1.xpose.msra.mxu0 0.0
          %850 = vmatprep.mubr.f32.mxu0 0.0
          %851 = vmatmul.mubr.f32.gmra.mrb[0].mxu0 %v781
          %v852 = vpop.f32.mrb[0].mxu0
          %v853 = vadd.f32 0.0, %v852
          %v854 = vpop.f32.mrb[0].mxu0
          %855 = vdwg.mxu0
          %v856 = vsel %vm701, %v853, -inf
          %857 = vmax.xlane.f32.xlu0 %v856
          %v858 = vpop.xlane.xlu0 %857
          %v859 = vsub.f32 %v853, %v858
          %v860 = vmul.f32 %v859, 1.442695
          %v861 = vpow.pop %v860
          %v862 = vsel %vm701, %v861, 0.0
          %863 = vadd.xlane.f32.xlu0 %v862
          %v864 = vpop.xlane.xlu0 %863
          %v865 = vrcp.pop %v864
          %v867 = vsel %vm701, %v861, 0
          %869 = vmatprep.subr.mxu0 0.0
          %870 = vmatpush1.msra.mxu0 %v779
          %871 = vmatprep.subr.mxu0 0.0
          %872 = vmatpush1.msra.mxu0 0.0
          %873 = vmatprep.subr.mxu0 0.0
          %874 = vmatpush1.msra.mxu0 0.0
          %875 = vmatprep.subr.mxu0 0.0
          %876 = vmatpush1.msra.mxu0 0.0
          %877 = vmatprep.subr.mxu0 0.0
          %878 = vmatpush1.msra.mxu0 0.0
          %879 = vmatprep.subr.mxu0 0.0
          %880 = vmatpush1.msra.mxu0 0.0
          %881 = vmatprep.subr.mxu0 0.0
          %882 = vmatpush1.msra.mxu0 0.0
          %883 = vmatprep.subr.mxu0 0.0
          %884 = vmatpush1.msra.mxu0 0.0
          %885 = vmatprep.subr.mxu0 0.0
          %886 = vmatpush1.msra.mxu0 0.0
          %887 = vmatprep.subr.mxu0 0.0
          %888 = vmatpush1.msra.mxu0 0.0
          %889 = vmatprep.subr.mxu0 0.0
          %890 = vmatpush1.msra.mxu0 0.0
          %891 = vmatprep.subr.mxu0 0.0
          %892 = vmatpush1.msra.mxu0 0.0
          %893 = vmatprep.subr.mxu0 0.0
          %894 = vmatpush1.msra.mxu0 0.0
          %895 = vmatprep.subr.mxu0 0.0
          %896 = vmatpush1.msra.mxu0 0.0
          %897 = vmatprep.subr.mxu0 0.0
          %898 = vmatpush1.msra.mxu0 0.0
          %899 = vmatprep.subr.mxu0 0.0
          %900 = vmatpush1.msra.mxu0 0.0
          %901 = vmatprep.subr.mxu0 0.0
          %902 = vmatpush1.msra.mxu0 0.0
          %903 = vmatprep.subr.mxu0 0.0
          %904 = vmatpush1.msra.mxu0 0.0
          %905 = vmatprep.subr.mxu0 0.0
          %906 = vmatpush1.msra.mxu0 0.0
          %907 = vmatprep.subr.mxu0 0.0
          %908 = vmatpush1.msra.mxu0 0.0
          %909 = vmatprep.subr.mxu0 0.0
          %910 = vmatpush1.msra.mxu0 0.0
          %911 = vmatprep.subr.mxu0 0.0
          %912 = vmatpush1.msra.mxu0 0.0
          %913 = vmatprep.subr.mxu0 0.0
          %914 = vmatpush1.msra.mxu0 0.0
          %915 = vmatprep.subr.mxu0 0.0
          %916 = vmatpush1.msra.mxu0 0.0
          %917 = vmatprep.subr.mxu0 0.0
          %918 = vmatpush1.msra.mxu0 0.0
          %919 = vmatprep.subr.mxu0 0.0
          %920 = vmatpush1.msra.mxu0 0.0
          %921 = vmatprep.subr.mxu0 0.0
          %922 = vmatpush1.msra.mxu0 0.0
          %923 = vmatprep.subr.mxu0 0.0
          %924 = vmatpush1.msra.mxu0 0.0
          %925 = vmatprep.subr.mxu0 0.0
          %926 = vmatpush1.msra.mxu0 0.0
          %927 = vmatprep.subr.mxu0 0.0
          %928 = vmatpush1.msra.mxu0 0.0
          %929 = vmatprep.subr.mxu0 0.0
          %930 = vmatpush1.msra.mxu0 0.0
          %931 = vmatprep.subr.mxu0 0.0
          %932 = vmatpush1.msra.mxu0 0.0
          %933 = vmatprep.mubr.f32.mxu0 0.0
          %934 = vmatmul.mubr.f32.gmra.mrb[0].mxu0 %v867
          %v935 = vpop.f32.mrb[0].mxu0
          %v936 = vadd.f32 0.0, %v935
          %v937 = vpop.f32.mrb[0].mxu0
          %938 = vdwg.mxu0
          %v939 = vmul.f32 %v936, %v865
          %v940 = vld [vmem:[#allocation5] sm:$0xff]
          %s941 = scalar_lea.vmem [#allocation12], %s773
          %v942 = vld [vmem:[%s941] sm:$0xff]
          %v944 = vsel %vm701, %v939, 0
          %946 = vmatprep.subr.mxu0 0.0
          %947 = vmatpush1.msra.mxu0 %v942
          %948 = vmatprep.subr.mxu0 0.0
          %949 = vmatpush1.msra.mxu0 0.0
          %950 = vmatprep.subr.mxu0 0.0
          %951 = vmatpush1.msra.mxu0 0.0
          %952 = vmatprep.subr.mxu0 0.0
          %953 = vmatpush1.msra.mxu0 0.0
          %954 = vmatprep.subr.mxu0 0.0
          %955 = vmatpush1.msra.mxu0 0.0
          %956 = vmatprep.subr.mxu0 0.0
          %957 = vmatpush1.msra.mxu0 0.0
          %958 = vmatprep.subr.mxu0 0.0
          %959 = vmatpush1.msra.mxu0 0.0
          %960 = vmatprep.subr.mxu0 0.0
          %961 = vmatpush1.msra.mxu0 0.0
          %962 = vmatprep.subr.mxu0 0.0
          %963 = vmatpush1.msra.mxu0 0.0
          %964 = vmatprep.subr.mxu0 0.0
          %965 = vmatpush1.msra.mxu0 0.0
          %966 = vmatprep.subr.mxu0 0.0
          %967 = vmatpush1.msra.mxu0 0.0
          %968 = vmatprep.subr.mxu0 0.0
          %969 = vmatpush1.msra.mxu0 0.0
          %970 = vmatprep.subr.mxu0 0.0
          %971 = vmatpush1.msra.mxu0 0.0
          %972 = vmatprep.subr.mxu0 0.0
          %973 = vmatpush1.msra.mxu0 0.0
          %974 = vmatprep.subr.mxu0 0.0
          %975 = vmatpush1.msra.mxu0 0.0
          %976 = vmatprep.subr.mxu0 0.0
          %977 = vmatpush1.msra.mxu0 0.0
          %978 = vmatprep.subr.mxu0 0.0
          %979 = vmatpush1.msra.mxu0 0.0
          %980 = vmatprep.subr.mxu0 0.0
          %981 = vmatpush1.msra.mxu0 0.0
          %982 = vmatprep.subr.mxu0 0.0
          %983 = vmatpush1.msra.mxu0 0.0
          %984 = vmatprep.subr.mxu0 0.0
          %985 = vmatpush1.msra.mxu0 0.0
          %986 = vmatprep.subr.mxu0 0.0
          %987 = vmatpush1.msra.mxu0 0.0
          %988 = vmatprep.subr.mxu0 0.0
          %989 = vmatpush1.msra.mxu0 0.0
          %990 = vmatprep.subr.mxu0 0.0
          %991 = vmatpush1.msra.mxu0 0.0
          %992 = vmatprep.subr.mxu0 0.0
          %993 = vmatpush1.msra.mxu0 0.0
          %994 = vmatprep.subr.mxu0 0.0
          %995 = vmatpush1.msra.mxu0 0.0
          %996 = vmatprep.subr.mxu0 0.0
          %997 = vmatpush1.msra.mxu0 0.0
          %998 = vmatprep.subr.mxu0 0.0
          %999 = vmatpush1.msra.mxu0 0.0
          %1000 = vmatprep.subr.mxu0 0.0
          %1001 = vmatpush1.msra.mxu0 0.0
          %1002 = vmatprep.subr.mxu0 0.0
          %1003 = vmatpush1.msra.mxu0 0.0
          %1004 = vmatprep.subr.mxu0 0.0
          %1005 = vmatpush1.msra.mxu0 0.0
          %1006 = vmatprep.subr.mxu0 0.0
          %1007 = vmatpush1.msra.mxu0 0.0
          %1008 = vmatprep.subr.mxu0 0.0
          %1009 = vmatpush1.msra.mxu0 0.0
          %1010 = vmatprep.mubr.f32.mxu0 0.0
          %1011 = vmatmul.mubr.f32.gmra.mrb[0].mxu0 %v944
          %v1012 = vpop.f32.mrb[0].mxu0
          %v1013 = vadd.f32 0.0, %v1012
          %v1014 = vpop.f32.mrb[0].mxu0
          %1015 = vdwg.mxu0
          %v1016 = vadd.f32 %v940, %v1013
          %1017 = vst.msk [vmem:[#allocation5] sm:$0xff] %vm620, %v1016
        $region129: #{tpu_custom_call.1} parent=71 // loop_footer
          %s772 = sadd.s32 1, %s768
        $region130: #{tpu_custom_call.1} parent=71 // loop_footer_branch
          %767 = sbr.rel target = $region126
        $region131: #{tpu_custom_call.1} parent=71 // loop_exit
          _
        %v1018 = vld [vmem:[#allocation5] sm:$0xff]
        %v1019 = vld [vmem:[#allocation15] sm:$0x1]
        %v1020 = vld [vmem:[#allocation17] sm:$0x1]
        %v1021 = vsel %vm620, %v1018, 0.0
        %1022 = vadd.xlane.f32.xlu0 %v1021
        %v1023 = vpop.xlane.xlu0 %1022
        %v1024 = vrcp.pop 32.0
        %v1025 = vmul.f32 %v1023, %v1024
        %v1026 = vsub.f32 %v1018, %v1025
        %v1027 = vmul.f32 %v1026, %v1026
        %v1028 = vsel %vm620, %v1027, 0.0
        %1029 = vadd.xlane.f32.xlu0 %v1028
        %v1030 = vpop.xlane.xlu0 %1029
        %v1031 = vmul.f32 %v1030, %v1024
        %v1032 = vadd.f32 %v1031, 1e-05
        %v1033 = vrsqrt.pop %v1032
        %v1034 = vmul.f32 %v1026, %v1033
        %v1036 = vlaneseq
        %v1037 = vshrl.u32 %v1036, 7
        %v1038 = vsub.s32 0, %v1037
        %v1039 = vrot.slane %v1019, %v1038
        %v1041 = vmul.f32 %v1034, %v1039
        %v1043 = vlaneseq
        %v1044 = vshrl.u32 %v1043, 7
        %v1045 = vsub.s32 0, %v1044
        %v1046 = vrot.slane %v1020, %v1045
        %v1048 = vadd.f32 %v1041, %v1046
        %v1049 = vld [vmem:[#allocation18] sm:$0xff]
        %v1050 = vld [vmem:[#allocation18 + $0x8] sm:$0xff]
        %v1051 = vld [vmem:[#allocation18 + $0x10] sm:$0xff]
        %v1052 = vld [vmem:[#allocation18 + $0x18] sm:$0xff]
        %v1053 = vld [vmem:[#allocation20] sm:$0x1]
        %v1055 = vlaneseq
        %v1056 = vshrl.u32 %v1055, 7
        %v1057 = vsub.s32 0, %v1056
        %v1058 = vrot.slane %v1053, %v1057
        %v1061 = vsel %vm620, %v1048, 0
        %1063 = vmatprep.subr.mxu0 0.0
        %1064 = vmatpush1.msra.mxu0 %v1049
        %1065 = vmatprep.subr.mxu0 0.0
        %1066 = vmatpush1.msra.mxu0 %v1050
        %1067 = vmatprep.subr.mxu0 0.0
        %1068 = vmatpush1.msra.mxu0 %v1051
        %1069 = vmatprep.subr.mxu0 0.0
        %1070 = vmatpush1.msra.mxu0 %v1052
        %1071 = vmatprep.subr.mxu0 0.0
        %1072 = vmatpush1.msra.mxu0 0.0
        %1073 = vmatprep.subr.mxu0 0.0
        %1074 = vmatpush1.msra.mxu0 0.0
        %1075 = vmatprep.subr.mxu0 0.0
        %1076 = vmatpush1.msra.mxu0 0.0
        %1077 = vmatprep.subr.mxu0 0.0
        %1078 = vmatpush1.msra.mxu0 0.0
        %1079 = vmatprep.subr.mxu0 0.0
        %1080 = vmatpush1.msra.mxu0 0.0
        %1081 = vmatprep.subr.mxu0 0.0
        %1082 = vmatpush1.msra.mxu0 0.0
        %1083 = vmatprep.subr.mxu0 0.0
        %1084 = vmatpush1.msra.mxu0 0.0
        %1085 = vmatprep.subr.mxu0 0.0
        %1086 = vmatpush1.msra.mxu0 0.0
        %1087 = vmatprep.subr.mxu0 0.0
        %1088 = vmatpush1.msra.mxu0 0.0
        %1089 = vmatprep.subr.mxu0 0.0
        %1090 = vmatpush1.msra.mxu0 0.0
        %1091 = vmatprep.subr.mxu0 0.0
        %1092 = vmatpush1.msra.mxu0 0.0
        %1093 = vmatprep.subr.mxu0 0.0
        %1094 = vmatpush1.msra.mxu0 0.0
        %1095 = vmatprep.subr.mxu0 0.0
        %1096 = vmatpush1.msra.mxu0 0.0
        %1097 = vmatprep.subr.mxu0 0.0
        %1098 = vmatpush1.msra.mxu0 0.0
        %1099 = vmatprep.subr.mxu0 0.0
        %1100 = vmatpush1.msra.mxu0 0.0
        %1101 = vmatprep.subr.mxu0 0.0
        %1102 = vmatpush1.msra.mxu0 0.0
        %1103 = vmatprep.subr.mxu0 0.0
        %1104 = vmatpush1.msra.mxu0 0.0
        %1105 = vmatprep.subr.mxu0 0.0
        %1106 = vmatpush1.msra.mxu0 0.0
        %1107 = vmatprep.subr.mxu0 0.0
        %1108 = vmatpush1.msra.mxu0 0.0
        %1109 = vmatprep.subr.mxu0 0.0
        %1110 = vmatpush1.msra.mxu0 0.0
        %1111 = vmatprep.subr.mxu0 0.0
        %1112 = vmatpush1.msra.mxu0 0.0
        %1113 = vmatprep.subr.mxu0 0.0
        %1114 = vmatpush1.msra.mxu0 0.0
        %1115 = vmatprep.subr.mxu0 0.0
        %1116 = vmatpush1.msra.mxu0 0.0
        %1117 = vmatprep.subr.mxu0 0.0
        %1118 = vmatpush1.msra.mxu0 0.0
        %1119 = vmatprep.subr.mxu0 0.0
        %1120 = vmatpush1.msra.mxu0 0.0
        %1121 = vmatprep.subr.mxu0 0.0
        %1122 = vmatpush1.msra.mxu0 0.0
        %1123 = vmatprep.subr.mxu0 0.0
        %1124 = vmatpush1.msra.mxu0 0.0
        %1125 = vmatprep.subr.mxu0 0.0
        %1126 = vmatpush1.msra.mxu0 0.0
        %1127 = vmatprep.mubr.f32.mxu0 0.0
        %1128 = vmatmul.mubr.f32.gmra.mrb[0].mxu0 %v1061
        %v1129 = vpop.f32.mrb[0].mxu0
        %v1130 = vadd.f32 %v1058, %v1129
        %v1131 = vpop.f32.mrb[0].mxu0
        %1132 = vdwg.mxu0
        %v1133 = vmax.f32 %v1130, 0.0
        %v1134 = vld [vmem:[#allocation21] sm:$0xff]
        %v1135 = vld [vmem:[#allocation21 + $0x8] sm:$0xff]
        %v1136 = vld [vmem:[#allocation21 + $0x10] sm:$0xff]
        %v1137 = vld [vmem:[#allocation21 + $0x18] sm:$0xff]
        %v1138 = vld [vmem:[#allocation21 + $0x20] sm:$0xff]
        %v1139 = vld [vmem:[#allocation21 + $0x28] sm:$0xff]
        %v1140 = vld [vmem:[#allocation21 + $0x30] sm:$0xff]
        %v1141 = vld [vmem:[#allocation21 + $0x38] sm:$0xff]
        %v1142 = vld [vmem:[#allocation23] sm:$0x1]
        %v1144 = vlaneseq
        %v1145 = vshrl.u32 %v1144, 7
        %v1146 = vsub.s32 0, %v1145
        %v1147 = vrot.slane %v1142, %v1146
        %vm1149 = vcmask 523264
        %v1151 = vsel %vm1149, %v1133, 0
        %1153 = vmatprep.subr.mxu0 0.0
        %1154 = vmatpush1.msra.mxu0 %v1134
        %1155 = vmatprep.subr.mxu0 0.0
        %1156 = vmatpush1.msra.mxu0 %v1135
        %1157 = vmatprep.subr.mxu0 0.0
        %1158 = vmatpush1.msra.mxu0 %v1136
        %1159 = vmatprep.subr.mxu0 0.0
        %1160 = vmatpush1.msra.mxu0 %v1137
        %1161 = vmatprep.subr.mxu0 0.0
        %1162 = vmatpush1.msra.mxu0 %v1138
        %1163 = vmatprep.subr.mxu0 0.0
        %1164 = vmatpush1.msra.mxu0 %v1139
        %1165 = vmatprep.subr.mxu0 0.0
        %1166 = vmatpush1.msra.mxu0 %v1140
        %1167 = vmatprep.subr.mxu0 0.0
        %1168 = vmatpush1.msra.mxu0 %v1141
        %1169 = vmatprep.subr.mxu0 0.0
        %1170 = vmatpush1.msra.mxu0 0.0
        %1171 = vmatprep.subr.mxu0 0.0
        %1172 = vmatpush1.msra.mxu0 0.0
        %1173 = vmatprep.subr.mxu0 0.0
        %1174 = vmatpush1.msra.mxu0 0.0
        %1175 = vmatprep.subr.mxu0 0.0
        %1176 = vmatpush1.msra.mxu0 0.0
        %1177 = vmatprep.subr.mxu0 0.0
        %1178 = vmatpush1.msra.mxu0 0.0
        %1179 = vmatprep.subr.mxu0 0.0
        %1180 = vmatpush1.msra.mxu0 0.0
        %1181 = vmatprep.subr.mxu0 0.0
        %1182 = vmatpush1.msra.mxu0 0.0
        %1183 = vmatprep.subr.mxu0 0.0
        %1184 = vmatpush1.msra.mxu0 0.0
        %1185 = vmatprep.subr.mxu0 0.0
        %1186 = vmatpush1.msra.mxu0 0.0
        %1187 = vmatprep.subr.mxu0 0.0
        %1188 = vmatpush1.msra.mxu0 0.0
        %1189 = vmatprep.subr.mxu0 0.0
        %1190 = vmatpush1.msra.mxu0 0.0
        %1191 = vmatprep.subr.mxu0 0.0
        %1192 = vmatpush1.msra.mxu0 0.0
        %1193 = vmatprep.subr.mxu0 0.0
        %1194 = vmatpush1.msra.mxu0 0.0
        %1195 = vmatprep.subr.mxu0 0.0
        %1196 = vmatpush1.msra.mxu0 0.0
        %1197 = vmatprep.subr.mxu0 0.0
        %1198 = vmatpush1.msra.mxu0 0.0
        %1199 = vmatprep.subr.mxu0 0.0
        %1200 = vmatpush1.msra.mxu0 0.0
        %1201 = vmatprep.subr.mxu0 0.0
        %1202 = vmatpush1.msra.mxu0 0.0
        %1203 = vmatprep.subr.mxu0 0.0
        %1204 = vmatpush1.msra.mxu0 0.0
        %1205 = vmatprep.subr.mxu0 0.0
        %1206 = vmatpush1.msra.mxu0 0.0
        %1207 = vmatprep.subr.mxu0 0.0
        %1208 = vmatpush1.msra.mxu0 0.0
        %1209 = vmatprep.subr.mxu0 0.0
        %1210 = vmatpush1.msra.mxu0 0.0
        %1211 = vmatprep.subr.mxu0 0.0
        %1212 = vmatpush1.msra.mxu0 0.0
        %1213 = vmatprep.subr.mxu0 0.0
        %1214 = vmatpush1.msra.mxu0 0.0
        %1215 = vmatprep.subr.mxu0 0.0
        %1216 = vmatpush1.msra.mxu0 0.0
        %1217 = vmatprep.mubr.f32.mxu0 0.0
        %1218 = vmatmul.mubr.f32.gmra.mrb[0].mxu0 %v1151
        %v1219 = vpop.f32.mrb[0].mxu0
        %v1220 = vadd.f32 %v1147, %v1219
        %v1221 = vpop.f32.mrb[0].mxu0
        %1222 = vdwg.mxu0
        %v1223 = vadd.f32 %v1048, %v1220
        %v1224 = vld [vmem:[#allocation24] sm:$0x1]
        %v1225 = vld [vmem:[#allocation26] sm:$0x1]
        %v1226 = vsel %vm620, %v1223, 0.0
        %1227 = vadd.xlane.f32.xlu0 %v1226
        %v1228 = vpop.xlane.xlu0 %1227
        %v1229 = vmul.f32 %v1228, %v1024
        %v1230 = vsub.f32 %v1223, %v1229
        %v1231 = vmul.f32 %v1230, %v1230
        %v1232 = vsel %vm620, %v1231, 0.0
        %1233 = vadd.xlane.f32.xlu0 %v1232
        %v1234 = vpop.xlane.xlu0 %1233
        %v1235 = vmul.f32 %v1234, %v1024
        %v1236 = vadd.f32 %v1235, 1e-05
        %v1237 = vrsqrt.pop %v1236
        %v1238 = vmul.f32 %v1230, %v1237
        %v1240 = vlaneseq
        %v1241 = vshrl.u32 %v1240, 7
        %v1242 = vsub.s32 0, %v1241
        %v1243 = vrot.slane %v1224, %v1242
        %v1245 = vmul.f32 %v1238, %v1243
        %v1247 = vlaneseq
        %v1248 = vshrl.u32 %v1247, 7
        %v1249 = vsub.s32 0, %v1248
        %v1250 = vrot.slane %v1225, %v1249
        %v1252 = vadd.f32 %v1245, %v1250
        %1253 = vst.msk [vmem:[%s613] sm:$0xff] %vm620, %v1252
        %s1254 = sand.u32 %s322, 1
        %s1255 = scalar_lea.sflag [#allocation8], %s1254
        %s1256 = sand.u32 %s322, 1
        %s1257 = smul.addr %s1256, 8
        %s1258 = scalar_lea.vmem [#allocation27], %s1257
        // Predicated region
        $region132: #{tpu_custom_call.1} parent=71 // pred_check
          %p1259 = pneg %p332
        $region133: #{tpu_custom_call.1} parent=71 // pred_check_branch
          %1261 = sbr.rel (%p1259) target = $region135
        $region134: #{tpu_custom_call.1} parent=71 // pred_region
          %s1263 = ssub.s32 128, 128
          %1264 = vsyncadd %s1255, %s1263
          %s1265 = smul.addr %s36, 128
          %s1266 = scalar_lea.hbm %s13, %s1265
          %s1268 = sshll.u32 %s1258, 4
          %s1269 = int_to_ptr.vmem [resolvable:$true] %s1268
          %1271 = dma.vmem_to_hbm [thread:$0]  %s1269, 128, %s1266, %s1255
        $region135: #{tpu_custom_call.1} parent=71 // pred_fallthru
          _
      $region72: #{tpu_custom_call.1} parent=5 // pred_fallthru
        _
      %p1272 = scmp.le.s32.totalorder 2, %s31
      // Predicated region
      $region136: #{tpu_custom_call.1} parent=5 // pred_check
        %p1273 = pneg %p1272
      $region137: #{tpu_custom_call.1} parent=5 // pred_check_branch
        %1275 = sbr.rel (%p1273) target = $region139
      $region138: #{tpu_custom_call.1} parent=5 // pred_region
        %s1276 = ssub.s32 %s31, 2
        // Predicated region
        $region140: #{tpu_custom_call.1} parent=138 // pred_check
          %p1277 = pneg %p338
        $region141: #{tpu_custom_call.1} parent=138 // pred_check_branch
          %1279 = sbr.rel (%p1277) target = $region143
        $region142: #{tpu_custom_call.1} parent=138 // pred_region
          %s1280 = sand.u32 %s323, 1
          %s1281 = scalar_lea.sflag [#allocation8], %s1280
          %s1282 = sand.u32 %s323, 1
          %s1283 = smul.addr %s1282, 8
          %s1284 = scalar_lea.vmem [#allocation27], %s1283
          %1285 = dma.done %s1281, 128
        $region143: #{tpu_custom_call.1} parent=138 // pred_fallthru
          _
      $region139: #{tpu_custom_call.1} parent=5 // pred_fallthru
        _
    $region6: #{tpu_custom_call.1} parent=1 // loop_footer
      %s35 = sadd.s32 1, %s31
    $region7: #{tpu_custom_call.1} parent=1 // loop_footer_branch
      %30 = sbr.rel target = $region3
    $region8: #{tpu_custom_call.1} parent=1 // loop_exit
      _
    %1286 = vsyncpa [#allocation7], 1
    %s1287 = scalar_lea.sflag [#allocation7], 1
    %1288 = vsyncpa %s1287, 1
    %1289 = vsyncpa [#allocation10], 1
    %1290 = vsyncpa [#allocation13], 1
    %1291 = vsyncpa [#allocation16], 1
    %1292 = vsyncpa [#allocation19], 1
    %1293 = vsyncpa [#allocation22], 1
    %1294 = vsyncpa [#allocation25], 1
    %1295 = vsyncpa [#allocation8], 1
    %s1296 = scalar_lea.sflag [#allocation8], 1
    %1297 = vsyncpa %s1296, 1

</llo_original>
